<compile_context>
chip_gen: v6e
topology: v6e:2x2x1
jax: 0.10.0
libtpu: 0.0.40
codegen_flags: <defaults>
</compile_context>

<pallas_src>
import math

import jax
import jax.numpy as jnp
from jax.experimental import pallas as pl
from jax.experimental.pallas import tpu as pltpu


LN_EPS = 1e-5  # torch.nn.LayerNorm default eps


def _elu_kernel(x):
    # torch.nn.ELU(alpha=1).  exp(min(x,0))-1 (instead of expm1) is identical
    # to f32 working precision and guaranteed to lower in Mosaic.
    return jnp.where(x > 0, x, jnp.exp(jnp.minimum(x, 0.0)) - 1.0)


def _elu_ref(x):
    return jnp.where(x > 0, x, jnp.expm1(x))


def _round_up(x, m):
    return ((x + m - 1) // m) * m


# --------------------------------------------------------------------------
# Kernel
# --------------------------------------------------------------------------

def make_fused_kernel(n_prev, n_pos, og, prev_out, pos_out, matmul_dtype):
    """Kernel processing `og` objects per grid step.

    Ref order: data, concat, W_prev[0..n_prev), W_top, W_bot,
               W_pos[1..n_pos), vec_slab, out.
    vec_slab rows (per object): [bias, gamma, beta] per prev layer, then one
    bias row per pos layer (last one padded to the 128-lane output width).
    """
    n_weight_refs = n_prev + 2 + (n_pos - 1)

    def _mm(a, b):
        return jnp.dot(a.astype(matmul_dtype), b.astype(matmul_dtype),
                       preferred_element_type=jnp.float32)

    def kernel(data_ref, concat_ref, *refs):
        out_ref = refs[-1]
        w_refs = refs[:n_weight_refs]
        slab_ref = refs[n_weight_refs]

        x0 = data_ref[...].astype(jnp.float32)         # shared across objects

        for j in range(og):                            # static unrolled loop
            vec = slab_ref[j]                          # (n_rows, d_max), f32
            row = 0
            x = x0

            # ---- prev head: (Linear -> LayerNorm -> ELU) x n_prev ----
            for i in range(n_prev):
                d = prev_out[i]
                W = w_refs[i][j]
                b = vec[row:row + 1, :d]
                g = vec[row + 1:row + 2, :d]
                be = vec[row + 2:row + 3, :d]
                row += 3

                x = _mm(x, W) + b
                # centered two-pass LN (torch semantics; no cancellation)
                mean = jnp.mean(x, axis=-1, keepdims=True)
                xc = x - mean
                var = jnp.mean(xc * xc, axis=-1, keepdims=True)
                x = xc * jax.lax.rsqrt(var + LN_EPS) * g + be
                x = _elu_kernel(x)

            # ---- pos head layer 0: concat folded in as a second matmul ----
            d1 = pos_out[0]
            w_top = w_refs[n_prev][j]
            w_bot = w_refs[n_prev + 1][j]
            b0 = vec[row:row + 1, :d1]
            row += 1
            c = concat_ref[j].astype(jnp.float32)
            x = _mm(x, w_top) + _mm(c, w_bot) + b0
            if n_pos > 1:
                x = _elu_kernel(x)

            # ---- remaining pos layers (no activation after the last) ----
            for i in range(1, n_pos):
                d = pos_out[i]
                W = w_refs[n_prev + 2 + (i - 1)][j]
                b = vec[row:row + 1, :d]
                row += 1
                x = _mm(x, W) + b
                if i < n_pos - 1:
                    x = _elu_kernel(x)

            out_ref[j] = x.astype(out_ref.dtype)

    return kernel


# --------------------------------------------------------------------------
# Wrapper (single pallas_call for all objects)
# --------------------------------------------------------------------------

def fused_multiobj_forward(data, concat_stacked, stacked_params, *,
                           n_prev, n_pos, og, prev_out, pos_out, out_pad,
                           matmul_dtype, per_obj_param_bytes,
                           single_buffer_weights=True):
    """data: (B, in_D); concat_stacked: (n_objs, B, concat_n);
    stacked_params: every tensor has a leading n_objs axis.
    Returns (n_objs, B, out_pad) (padded lanes beyond out_D are zero/garbage;
    the caller slices them off)."""
    B, in_D = data.shape
    n_objs, _, concat_n = concat_stacked.shape
    n_groups = n_objs // og
    max_width = max([in_D, concat_n, out_pad] + list(prev_out) + list(pos_out))

    # ---- batch tile: multiple of 8, capped, batch padded in the wrapper ----
    bm_cap = 256 if max_width <= 128 else 128
    bm = min(bm_cap, _round_up(B, 8))
    B_pad = _round_up(B, bm)
    nb = B_pad // bm
    if B_pad != B:
        pad = B_pad - B
        data = jnp.pad(data, ((0, pad), (0, 0)))
        concat_stacked = jnp.pad(concat_stacked, ((0, 0), (0, pad), (0, 0)))

    grid = (n_groups, nb)          # batch innermost -> params resident per group

    w_mode = pl.Buffered(1) if single_buffer_weights else None

    def weight_spec(p):
        blk = (og,) + p.shape[1:]
        if w_mode is not None:
            return pl.BlockSpec(blk, lambda g, b: (g, 0, 0), pipeline_mode=w_mode)
        return pl.BlockSpec(blk, lambda g, b: (g, 0, 0))

    in_specs = [
        pl.BlockSpec((bm, in_D), lambda g, b: (b, 0)),             # shared data
        pl.BlockSpec((og, bm, concat_n), lambda g, b: (g, b, 0)),  # per-obj concat
    ] + [weight_spec(p) for p in stacked_params]

    out_specs = pl.BlockSpec((og, bm, out_pad), lambda g, b: (g, b, 0))

    # ---- explicit VMEM budget (critical on v7x: 64 MiB physical VMEM) ----
    isz = 4
    data_tile = bm * in_D * isz
    concat_tile = og * bm * concat_n * isz
    out_tile = og * bm * out_pad * isz
    group_params = og * per_obj_param_bytes
    act_scratch = bm * max_width * isz * 8          # live activations headroom
    buf_factor = 1 if single_buffer_weights else 2
    need = 2 * (data_tile + concat_tile + out_tile) + buf_factor * group_params \
        + act_scratch
    vmem_limit = max(32 << 20, min(int(need * 1.5) + (4 << 20), 64 << 20))

    kernel = make_fused_kernel(n_prev, n_pos, og, prev_out, pos_out, matmul_dtype)

    out = pl.pallas_call(
        kernel,
        out_shape=jax.ShapeDtypeStruct((n_objs, B_pad, out_pad), jnp.float32),
        grid=grid,
        in_specs=in_specs,
        out_specs=out_specs,
        compiler_params=pltpu.CompilerParams(
            dimension_semantics=("parallel", "parallel"),
            vmem_limit_bytes=vmem_limit),
    )(data, concat_stacked, *stacked_params)
    return out[:, :B, :]


# --------------------------------------------------------------------------
# Parameter construction (deterministic) + module wrapper
# --------------------------------------------------------------------------

def _init_linear(key, in_d, out_d):
    kw, kb = jax.random.split(key)
    bound = 1.0 / math.sqrt(in_d)
    W = jax.random.uniform(kw, (in_d, out_d), jnp.float32, -bound, bound)
    b = jax.random.uniform(kb, (1, out_d), jnp.float32, -bound, bound)
    return W, b


class ConcatMultiObjMLPPallas:
    """JAX/Pallas re-implementation of ConcatMultiObjMLP.forward."""

    def __init__(self, objs, in_D, prev_hiddens, concat_n, pos_hiddens, out_D, key,
                 matmul_dtype=jnp.float32, param_vmem_budget_bytes=8 << 20):
        self.objs = list(objs)
        self.out_D = out_D
        self.matmul_dtype = matmul_dtype

        prev_dims = [in_D] + list(prev_hiddens)
        pos_dims = [prev_hiddens[-1] + concat_n] + list(pos_hiddens) + [out_D]
        self.n_prev = len(prev_dims) - 1
        self.n_pos = len(pos_dims) - 1
        self.out_pad = 128 * pl.cdiv(out_D, 128)       # lane-dense final store
        self.prev_out = list(prev_hiddens)
        self.pos_out = list(pos_hiddens) + [self.out_pad]

        # --- per-object params (also used by the pure-JAX reference) ---
        self.prev_params = {}
        self.pos_params = {}
        for obj in self.objs:
            key, ko = jax.random.split(key)
            layers = []
            for i in range(self.n_prev):
                ko, kl = jax.random.split(ko)
                W, b = _init_linear(kl, prev_dims[i], prev_dims[i + 1])
                gamma = jnp.ones((1, prev_dims[i + 1]), jnp.float32)
                beta = jnp.zeros((1, prev_dims[i + 1]), jnp.float32)
                layers.append((W, b, gamma, beta))
            self.prev_params[obj] = layers
            layers = []
            for i in range(self.n_pos):
                ko, kl = jax.random.split(ko)
                W, b = _init_linear(kl, pos_dims[i], pos_dims[i + 1])
                layers.append((W, b))
            self.pos_params[obj] = layers

        # --- obj-stacked, packed params for the fused kernel ---
        prev_last = prev_hiddens[-1]
        n_objs = len(self.objs)
        d_max = max(self.prev_out + self.pos_out)
        wdt = matmul_dtype

        pos_W = {o: [] for o in self.objs}
        pos_b = {o: [] for o in self.objs}
        for o in self.objs:
            for i in range(self.n_pos):
                W, b = self.pos_params[o][i]
                if i == self.n_pos - 1 and self.out_pad != out_D:
                    padc = self.out_pad - out_D
                    W = jnp.pad(W, ((0, 0), (0, padc)))
                    b = jnp.pad(b, ((0, 0), (0, padc)))
                pos_W[o].append(W)
                pos_b[o].append(b)

        stacked = []
        for i in range(self.n_prev):
            stacked.append(jnp.stack(
                [self.prev_params[o][i][0] for o in self.objs]).astype(wdt))
        # pos layer 0 split at the concat boundary (kills the in-kernel concat)
        stacked.append(jnp.stack(
            [pos_W[o][0][:prev_last] for o in self.objs]).astype(wdt))   # W_top
        stacked.append(jnp.stack(
            [pos_W[o][0][prev_last:] for o in self.objs]).astype(wdt))   # W_bot
        for i in range(1, self.n_pos):
            stacked.append(jnp.stack([pos_W[o][i] for o in self.objs]).astype(wdt))

        # one per-object vector slab for every bias / gamma / beta
        def pad_row(v):
            v = v.reshape(1, -1)
            return jnp.pad(v, ((0, 0), (0, d_max - v.shape[-1])))

        slabs = []
        for o in self.objs:
            rows = []
            for i in range(self.n_prev):
                _, b, g, be = self.prev_params[o][i]
                rows += [pad_row(b), pad_row(g), pad_row(be)]
            for i in range(self.n_pos):
                rows.append(pad_row(pos_b[o][i]))
            slabs.append(jnp.concatenate(rows, axis=0))
        stacked.append(jnp.stack(slabs).astype(jnp.float32))

        self.stacked_params = stacked
        self.per_obj_param_bytes = sum(
            int(p.size) * p.dtype.itemsize for p in stacked) // n_objs

        # objects per grid step: largest divisor of n_objs whose params fit
        og = n_objs
        while og > 1 and (og * self.per_obj_param_bytes > param_vmem_budget_bytes
                          or n_objs % og != 0):
            og -= 1
        self.og = og
        self._use_buffered = True      # pl.Buffered(1) on params; fallback below

    def forward(self, data, concat):
        concat_stacked = jnp.stack([concat[o] for o in self.objs])
        kwargs = dict(
            n_prev=self.n_prev, n_pos=self.n_pos, og=self.og,
            prev_out=tuple(self.prev_out), pos_out=tuple(self.pos_out),
            out_pad=self.out_pad, matmul_dtype=self.matmul_dtype,
            per_obj_param_bytes=self.per_obj_param_bytes)
        try:
            out = fused_multiobj_forward(
                data, concat_stacked, self.stacked_params,
                single_buffer_weights=self._use_buffered, **kwargs)
        except Exception:
            if not self._use_buffered:
                raise
            # this jax build rejects pl.Buffered(1) -> default double-buffering
            self._use_buffered = False
            out = fused_multiobj_forward(
                data, concat_stacked, self.stacked_params,
                single_buffer_weights=False, **kwargs)
        out = out[:, :, :self.out_D]
        return {obj: out[i] for i, obj in enumerate(self.objs)}

    # pure-JAX reference mirroring the torch module exactly
    def forward_ref(self, data, concat):
        ret = {}
        for obj in self.objs:
            x = data.astype(jnp.float32)
            for (W, b, g, be) in self.prev_params[obj]:
                x = x @ W + b
                m = jnp.mean(x, axis=-1, keepdims=True)
                v = jnp.mean(jnp.square(x - m), axis=-1, keepdims=True)
                x = (x - m) / jnp.sqrt(v + LN_EPS) * g + be
                x = _elu_ref(x)
            x = jnp.concatenate([x, concat[obj]], axis=-1)
            pos = self.pos_params[obj]
            for i, (W, b) in enumerate(pos):
                x = x @ W + b
                if i < len(pos) - 1:
                    x = _elu_ref(x)
            ret[obj] = x
        return ret


if __name__ == "__main__":
    key = jax.random.PRNGKey(0)

    objs = ["agent", "box"]
    B, in_D, concat_n, out_D = 8, 32, 16, 8
    prev_hiddens = [64, 32]
    pos_hiddens = [32]

    key, kmod, kdata, kc0, kc1 = jax.random.split(key, 5)
    model = ConcatMultiObjMLPPallas(objs, in_D, prev_hiddens, concat_n,
                                    pos_hiddens, out_D, kmod)

    data = jax.random.normal(kdata, (B, in_D), jnp.float32)
    concat = {
        "agent": jax.random.normal(kc0, (B, concat_n), jnp.float32),
        "box": jax.random.normal(kc1, (B, concat_n), jnp.float32),
    }

    out = model.forward(data, concat)
    jax.block_until_ready(out)

    ref = model.forward_ref(data, concat)
    for obj in objs:
        assert out[obj].shape == (B, out_D)
        assert jnp.allclose(out[obj], ref[obj], atol=1e-4, rtol=1e-4), \
            f"mismatch for {obj}"

    print("KERNEL_OK")
</pallas_src>

<mosaic_0001>
module attributes {stable_mosaic.version = 11 : i64} {
  func.func @kernel(%arg0: i32, %arg1: i32, %arg2: memref<8x32xf32, #tpu.memory_space<vmem>>, %arg3: memref<2x8x16xf32, #tpu.memory_space<vmem>>, %arg4: memref<2x32x64xf32, #tpu.memory_space<vmem>>, %arg5: memref<2x64x32xf32, #tpu.memory_space<vmem>>, %arg6: memref<2x32x32xf32, #tpu.memory_space<vmem>>, %arg7: memref<2x16x32xf32, #tpu.memory_space<vmem>>, %arg8: memref<2x32x128xf32, #tpu.memory_space<vmem>>, %arg9: memref<2x8x128xf32, #tpu.memory_space<vmem>>, %arg10: memref<2x8x128xf32, #tpu.memory_space<vmem>>) attributes {dimension_semantics = [#tpu.dimension_semantics<parallel>, #tpu.dimension_semantics<parallel>], iteration_bounds = array<i64: 1, 1>, scalar_prefetch = 0 : i64, scratch_operands = 0 : i64, tpu.core_type = #tpu.core_type<tc>, window_params = [{transform_indices = @transform_0, window_bounds = array<i64: 8, 32>}, {transform_indices = @transform_1, window_bounds = array<i64: 2, 8, 16>}, {pipeline_mode = #tpu.pipeline_mode<synchronous>, transform_indices = @transform_2, window_bounds = array<i64: 2, 32, 64>}, {pipeline_mode = #tpu.pipeline_mode<synchronous>, transform_indices = @transform_3, window_bounds = array<i64: 2, 64, 32>}, {pipeline_mode = #tpu.pipeline_mode<synchronous>, transform_indices = @transform_4, window_bounds = array<i64: 2, 32, 32>}, {pipeline_mode = #tpu.pipeline_mode<synchronous>, transform_indices = @transform_5, window_bounds = array<i64: 2, 16, 32>}, {pipeline_mode = #tpu.pipeline_mode<synchronous>, transform_indices = @transform_6, window_bounds = array<i64: 2, 32, 128>}, {pipeline_mode = #tpu.pipeline_mode<synchronous>, transform_indices = @transform_7, window_bounds = array<i64: 2, 8, 128>}, {transform_indices = @transform_8, window_bounds = array<i64: 2, 8, 128>}]} {
    %c0 = arith.constant 0 : index
    %c0_0 = arith.constant 0 : index
    %0 = vector.load %arg2[%c0, %c0_0] : memref<8x32xf32, #tpu.memory_space<vmem>>, vector<8x32xf32>
    %c0_1 = arith.constant 0 : index
    %c0_2 = arith.constant 0 : index
    %c0_3 = arith.constant 0 : index
    %1 = vector.load %arg9[%c0_1, %c0_2, %c0_3] : memref<2x8x128xf32, #tpu.memory_space<vmem>>, vector<1x8x128xf32>
    %2 = vector.shape_cast %1 : vector<1x8x128xf32> to vector<8x128xf32>
    %c0_4 = arith.constant 0 : index
    %c0_5 = arith.constant 0 : index
    %c0_6 = arith.constant 0 : index
    %3 = vector.load %arg4[%c0_4, %c0_5, %c0_6] : memref<2x32x64xf32, #tpu.memory_space<vmem>>, vector<1x32x64xf32>
    %4 = vector.shape_cast %3 : vector<1x32x64xf32> to vector<32x64xf32>
    %5 = vector.extract_strided_slice %2 {offsets = [0, 0], sizes = [1, 64], strides = [1, 1]} : vector<8x128xf32> to vector<1x64xf32>
    %6 = vector.extract_strided_slice %2 {offsets = [1, 0], sizes = [1, 64], strides = [1, 1]} : vector<8x128xf32> to vector<1x64xf32>
    %7 = vector.extract_strided_slice %2 {offsets = [2, 0], sizes = [1, 64], strides = [1, 1]} : vector<8x128xf32> to vector<1x64xf32>
    %cst = arith.constant dense<0.000000e+00> : vector<8x64xf32>
    %8 = tpu.matmul %0, %4, %cst {dimension_numbers = #tpu.dot_dimension_numbers<[1], [0], [0], [1], [0, 0, 1, 1], [], []>} : vector<8x32xf32>, vector<32x64xf32>, vector<8x64xf32> -> vector<8x64xf32>
    %9 = vector.broadcast %5 : vector<1x64xf32> to vector<8x64xf32>
    %10 = arith.addf %8, %9 : vector<8x64xf32>
    %cst_7 = arith.constant dense<0.000000e+00> : vector<8xf32>
    %11 = vector.multi_reduction <add>, %10, %cst_7 [1] : vector<8x64xf32> to vector<8xf32>
    %12 = vector.shape_cast %11 : vector<8xf32> to vector<8x1xf32>
    %cst_8 = arith.constant 6.400000e+01 : f32
    %13 = vector.broadcast %cst_8 : f32 to vector<8x1xf32>
    %14 = arith.divf %12, %13 : vector<8x1xf32>
    %15 = vector.broadcast %14 : vector<8x1xf32> to vector<8x64xf32>
    %16 = arith.subf %10, %15 : vector<8x64xf32>
    %17 = arith.mulf %16, %16 : vector<8x64xf32>
    %cst_9 = arith.constant dense<0.000000e+00> : vector<8xf32>
    %18 = vector.multi_reduction <add>, %17, %cst_9 [1] : vector<8x64xf32> to vector<8xf32>
    %19 = vector.shape_cast %18 : vector<8xf32> to vector<8x1xf32>
    %cst_10 = arith.constant 6.400000e+01 : f32
    %20 = vector.broadcast %cst_10 : f32 to vector<8x1xf32>
    %21 = arith.divf %19, %20 : vector<8x1xf32>
    %cst_11 = arith.constant 9.99999974E-6 : f32
    %22 = vector.broadcast %cst_11 : f32 to vector<8x1xf32>
    %23 = arith.addf %21, %22 : vector<8x1xf32>
    %24 = math.rsqrt %23 : vector<8x1xf32>
    %25 = vector.broadcast %24 : vector<8x1xf32> to vector<8x64xf32>
    %26 = arith.mulf %16, %25 : vector<8x64xf32>
    %27 = vector.broadcast %6 : vector<1x64xf32> to vector<8x64xf32>
    %28 = arith.mulf %26, %27 : vector<8x64xf32>
    %29 = vector.broadcast %7 : vector<1x64xf32> to vector<8x64xf32>
    %30 = arith.addf %28, %29 : vector<8x64xf32>
    %cst_12 = arith.constant 0.000000e+00 : f32
    %31 = vector.broadcast %cst_12 : f32 to vector<8x64xf32>
    %32 = arith.cmpf ogt, %30, %31 : vector<8x64xf32>
    %cst_13 = arith.constant 0.000000e+00 : f32
    %33 = vector.broadcast %cst_13 : f32 to vector<8x64xf32>
    %34 = arith.minimumf %30, %33 : vector<8x64xf32>
    %35 = math.exp %34 : vector<8x64xf32>
    %cst_14 = arith.constant 1.000000e+00 : f32
    %36 = vector.broadcast %cst_14 : f32 to vector<8x64xf32>
    %37 = arith.subf %35, %36 : vector<8x64xf32>
    %38 = arith.select %32, %30, %37 : vector<8x64xi1>, vector<8x64xf32>
    %c0_15 = arith.constant 0 : index
    %c0_16 = arith.constant 0 : index
    %c0_17 = arith.constant 0 : index
    %39 = vector.load %arg5[%c0_15, %c0_16, %c0_17] : memref<2x64x32xf32, #tpu.memory_space<vmem>>, vector<1x64x32xf32>
    %40 = vector.shape_cast %39 : vector<1x64x32xf32> to vector<64x32xf32>
    %41 = vector.extract_strided_slice %2 {offsets = [3, 0], sizes = [1, 32], strides = [1, 1]} : vector<8x128xf32> to vector<1x32xf32>
    %42 = vector.extract_strided_slice %2 {offsets = [4, 0], sizes = [1, 32], strides = [1, 1]} : vector<8x128xf32> to vector<1x32xf32>
    %43 = vector.extract_strided_slice %2 {offsets = [5, 0], sizes = [1, 32], strides = [1, 1]} : vector<8x128xf32> to vector<1x32xf32>
    %cst_18 = arith.constant dense<0.000000e+00> : vector<8x32xf32>
    %44 = tpu.matmul %38, %40, %cst_18 {dimension_numbers = #tpu.dot_dimension_numbers<[1], [0], [0], [1], [0, 0, 1, 1], [], []>} : vector<8x64xf32>, vector<64x32xf32>, vector<8x32xf32> -> vector<8x32xf32>
    %45 = vector.broadcast %41 : vector<1x32xf32> to vector<8x32xf32>
    %46 = arith.addf %44, %45 : vector<8x32xf32>
    %cst_19 = arith.constant dense<0.000000e+00> : vector<8xf32>
    %47 = vector.multi_reduction <add>, %46, %cst_19 [1] : vector<8x32xf32> to vector<8xf32>
    %48 = vector.shape_cast %47 : vector<8xf32> to vector<8x1xf32>
    %cst_20 = arith.constant 3.200000e+01 : f32
    %49 = vector.broadcast %cst_20 : f32 to vector<8x1xf32>
    %50 = arith.divf %48, %49 : vector<8x1xf32>
    %51 = vector.broadcast %50 : vector<8x1xf32> to vector<8x32xf32>
    %52 = arith.subf %46, %51 : vector<8x32xf32>
    %53 = arith.mulf %52, %52 : vector<8x32xf32>
    %cst_21 = arith.constant dense<0.000000e+00> : vector<8xf32>
    %54 = vector.multi_reduction <add>, %53, %cst_21 [1] : vector<8x32xf32> to vector<8xf32>
    %55 = vector.shape_cast %54 : vector<8xf32> to vector<8x1xf32>
    %cst_22 = arith.constant 3.200000e+01 : f32
    %56 = vector.broadcast %cst_22 : f32 to vector<8x1xf32>
    %57 = arith.divf %55, %56 : vector<8x1xf32>
    %cst_23 = arith.constant 9.99999974E-6 : f32
    %58 = vector.broadcast %cst_23 : f32 to vector<8x1xf32>
    %59 = arith.addf %57, %58 : vector<8x1xf32>
    %60 = math.rsqrt %59 : vector<8x1xf32>
    %61 = vector.broadcast %60 : vector<8x1xf32> to vector<8x32xf32>
    %62 = arith.mulf %52, %61 : vector<8x32xf32>
    %63 = vector.broadcast %42 : vector<1x32xf32> to vector<8x32xf32>
    %64 = arith.mulf %62, %63 : vector<8x32xf32>
    %65 = vector.broadcast %43 : vector<1x32xf32> to vector<8x32xf32>
    %66 = arith.addf %64, %65 : vector<8x32xf32>
    %cst_24 = arith.constant 0.000000e+00 : f32
    %67 = vector.broadcast %cst_24 : f32 to vector<8x32xf32>
    %68 = arith.cmpf ogt, %66, %67 : vector<8x32xf32>
    %cst_25 = arith.constant 0.000000e+00 : f32
    %69 = vector.broadcast %cst_25 : f32 to vector<8x32xf32>
    %70 = arith.minimumf %66, %69 : vector<8x32xf32>
    %71 = math.exp %70 : vector<8x32xf32>
    %cst_26 = arith.constant 1.000000e+00 : f32
    %72 = vector.broadcast %cst_26 : f32 to vector<8x32xf32>
    %73 = arith.subf %71, %72 : vector<8x32xf32>
    %74 = arith.select %68, %66, %73 : vector<8x32xi1>, vector<8x32xf32>
    %c0_27 = arith.constant 0 : index
    %c0_28 = arith.constant 0 : index
    %c0_29 = arith.constant 0 : index
    %75 = vector.load %arg6[%c0_27, %c0_28, %c0_29] : memref<2x32x32xf32, #tpu.memory_space<vmem>>, vector<1x32x32xf32>
    %76 = vector.shape_cast %75 : vector<1x32x32xf32> to vector<32x32xf32>
    %c0_30 = arith.constant 0 : index
    %c0_31 = arith.constant 0 : index
    %c0_32 = arith.constant 0 : index
    %77 = vector.load %arg7[%c0_30, %c0_31, %c0_32] : memref<2x16x32xf32, #tpu.memory_space<vmem>>, vector<1x16x32xf32>
    %78 = vector.shape_cast %77 : vector<1x16x32xf32> to vector<16x32xf32>
    %79 = vector.extract_strided_slice %2 {offsets = [6, 0], sizes = [1, 32], strides = [1, 1]} : vector<8x128xf32> to vector<1x32xf32>
    %c0_33 = arith.constant 0 : index
    %c0_34 = arith.constant 0 : index
    %c0_35 = arith.constant 0 : index
    %80 = vector.load %arg3[%c0_33, %c0_34, %c0_35] : memref<2x8x16xf32, #tpu.memory_space<vmem>>, vector<1x8x16xf32>
    %81 = vector.shape_cast %80 : vector<1x8x16xf32> to vector<8x16xf32>
    %cst_36 = arith.constant dense<0.000000e+00> : vector<8x32xf32>
    %82 = tpu.matmul %74, %76, %cst_36 {dimension_numbers = #tpu.dot_dimension_numbers<[1], [0], [0], [1], [0, 0, 1, 1], [], []>} : vector<8x32xf32>, vector<32x32xf32>, vector<8x32xf32> -> vector<8x32xf32>
    %cst_37 = arith.constant dense<0.000000e+00> : vector<8x32xf32>
    %83 = tpu.matmul %81, %78, %cst_37 {dimension_numbers = #tpu.dot_dimension_numbers<[1], [0], [0], [1], [0, 0, 1, 1], [], []>} : vector<8x16xf32>, vector<16x32xf32>, vector<8x32xf32> -> vector<8x32xf32>
    %84 = arith.addf %82, %83 : vector<8x32xf32>
    %85 = vector.broadcast %79 : vector<1x32xf32> to vector<8x32xf32>
    %86 = arith.addf %84, %85 : vector<8x32xf32>
    %cst_38 = arith.constant 0.000000e+00 : f32
    %87 = vector.broadcast %cst_38 : f32 to vector<8x32xf32>
    %88 = arith.cmpf ogt, %86, %87 : vector<8x32xf32>
    %cst_39 = arith.constant 0.000000e+00 : f32
    %89 = vector.broadcast %cst_39 : f32 to vector<8x32xf32>
    %90 = arith.minimumf %86, %89 : vector<8x32xf32>
    %91 = math.exp %90 : vector<8x32xf32>
    %cst_40 = arith.constant 1.000000e+00 : f32
    %92 = vector.broadcast %cst_40 : f32 to vector<8x32xf32>
    %93 = arith.subf %91, %92 : vector<8x32xf32>
    %94 = arith.select %88, %86, %93 : vector<8x32xi1>, vector<8x32xf32>
    %c0_41 = arith.constant 0 : index
    %c0_42 = arith.constant 0 : index
    %c0_43 = arith.constant 0 : index
    %95 = vector.load %arg8[%c0_41, %c0_42, %c0_43] : memref<2x32x128xf32, #tpu.memory_space<vmem>>, vector<1x32x128xf32>
    %96 = vector.shape_cast %95 : vector<1x32x128xf32> to vector<32x128xf32>
    %97 = vector.extract_strided_slice %2 {offsets = [7, 0], sizes = [1, 128], strides = [1, 1]} : vector<8x128xf32> to vector<1x128xf32>
    %cst_44 = arith.constant dense<0.000000e+00> : vector<8x128xf32>
    %98 = tpu.matmul %94, %96, %cst_44 {dimension_numbers = #tpu.dot_dimension_numbers<[1], [0], [0], [1], [0, 0, 1, 1], [], []>} : vector<8x32xf32>, vector<32x128xf32>, vector<8x128xf32> -> vector<8x128xf32>
    %99 = vector.broadcast %97 : vector<1x128xf32> to vector<8x128xf32>
    %100 = arith.addf %98, %99 : vector<8x128xf32>
    %c0_45 = arith.constant 0 : index
    %c0_46 = arith.constant 0 : index
    %c0_47 = arith.constant 0 : index
    %101 = vector.load %arg10[%c0_45, %c0_46, %c0_47] : memref<2x8x128xf32, #tpu.memory_space<vmem>>, vector<1x8x128xf32>
    %102 = vector.shape_cast %101 : vector<1x8x128xf32> to vector<8x128xf32>
    %103 = vector.shape_cast %100 : vector<8x128xf32> to vector<1x8x128xf32>
    tpu.vector_store %arg10[%c0_45, %c0_46, %c0_47], %103 {strides = array<i32>} : memref<2x8x128xf32, #tpu.memory_space<vmem>>, vector<1x8x128xf32>,
    %c1 = arith.constant 1 : index
    %c0_48 = arith.constant 0 : index
    %c0_49 = arith.constant 0 : index
    %104 = vector.load %arg9[%c1, %c0_48, %c0_49] : memref<2x8x128xf32, #tpu.memory_space<vmem>>, vector<1x8x128xf32>
    %105 = vector.shape_cast %104 : vector<1x8x128xf32> to vector<8x128xf32>
    %c1_50 = arith.constant 1 : index
    %c0_51 = arith.constant 0 : index
    %c0_52 = arith.constant 0 : index
    %106 = vector.load %arg4[%c1_50, %c0_51, %c0_52] : memref<2x32x64xf32, #tpu.memory_space<vmem>>, vector<1x32x64xf32>
    %107 = vector.shape_cast %106 : vector<1x32x64xf32> to vector<32x64xf32>
    %108 = vector.extract_strided_slice %105 {offsets = [0, 0], sizes = [1, 64], strides = [1, 1]} : vector<8x128xf32> to vector<1x64xf32>
    %109 = vector.extract_strided_slice %105 {offsets = [1, 0], sizes = [1, 64], strides = [1, 1]} : vector<8x128xf32> to vector<1x64xf32>
    %110 = vector.extract_strided_slice %105 {offsets = [2, 0], sizes = [1, 64], strides = [1, 1]} : vector<8x128xf32> to vector<1x64xf32>
    %cst_53 = arith.constant dense<0.000000e+00> : vector<8x64xf32>
    %111 = tpu.matmul %0, %107, %cst_53 {dimension_numbers = #tpu.dot_dimension_numbers<[1], [0], [0], [1], [0, 0, 1, 1], [], []>} : vector<8x32xf32>, vector<32x64xf32>, vector<8x64xf32> -> vector<8x64xf32>
    %112 = vector.broadcast %108 : vector<1x64xf32> to vector<8x64xf32>
    %113 = arith.addf %111, %112 : vector<8x64xf32>
    %cst_54 = arith.constant dense<0.000000e+00> : vector<8xf32>
    %114 = vector.multi_reduction <add>, %113, %cst_54 [1] : vector<8x64xf32> to vector<8xf32>
    %115 = vector.shape_cast %114 : vector<8xf32> to vector<8x1xf32>
    %cst_55 = arith.constant 6.400000e+01 : f32
    %116 = vector.broadcast %cst_55 : f32 to vector<8x1xf32>
    %117 = arith.divf %115, %116 : vector<8x1xf32>
    %118 = vector.broadcast %117 : vector<8x1xf32> to vector<8x64xf32>
    %119 = arith.subf %113, %118 : vector<8x64xf32>
    %120 = arith.mulf %119, %119 : vector<8x64xf32>
    %cst_56 = arith.constant dense<0.000000e+00> : vector<8xf32>
    %121 = vector.multi_reduction <add>, %120, %cst_56 [1] : vector<8x64xf32> to vector<8xf32>
    %122 = vector.shape_cast %121 : vector<8xf32> to vector<8x1xf32>
    %cst_57 = arith.constant 6.400000e+01 : f32
    %123 = vector.broadcast %cst_57 : f32 to vector<8x1xf32>
    %124 = arith.divf %122, %123 : vector<8x1xf32>
    %cst_58 = arith.constant 9.99999974E-6 : f32
    %125 = vector.broadcast %cst_58 : f32 to vector<8x1xf32>
    %126 = arith.addf %124, %125 : vector<8x1xf32>
    %127 = math.rsqrt %126 : vector<8x1xf32>
    %128 = vector.broadcast %127 : vector<8x1xf32> to vector<8x64xf32>
    %129 = arith.mulf %119, %128 : vector<8x64xf32>
    %130 = vector.broadcast %109 : vector<1x64xf32> to vector<8x64xf32>
    %131 = arith.mulf %129, %130 : vector<8x64xf32>
    %132 = vector.broadcast %110 : vector<1x64xf32> to vector<8x64xf32>
    %133 = arith.addf %131, %132 : vector<8x64xf32>
    %cst_59 = arith.constant 0.000000e+00 : f32
    %134 = vector.broadcast %cst_59 : f32 to vector<8x64xf32>
    %135 = arith.cmpf ogt, %133, %134 : vector<8x64xf32>
    %cst_60 = arith.constant 0.000000e+00 : f32
    %136 = vector.broadcast %cst_60 : f32 to vector<8x64xf32>
    %137 = arith.minimumf %133, %136 : vector<8x64xf32>
    %138 = math.exp %137 : vector<8x64xf32>
    %cst_61 = arith.constant 1.000000e+00 : f32
    %139 = vector.broadcast %cst_61 : f32 to vector<8x64xf32>
    %140 = arith.subf %138, %139 : vector<8x64xf32>
    %141 = arith.select %135, %133, %140 : vector<8x64xi1>, vector<8x64xf32>
    %c1_62 = arith.constant 1 : index
    %c0_63 = arith.constant 0 : index
    %c0_64 = arith.constant 0 : index
    %142 = vector.load %arg5[%c1_62, %c0_63, %c0_64] : memref<2x64x32xf32, #tpu.memory_space<vmem>>, vector<1x64x32xf32>
    %143 = vector.shape_cast %142 : vector<1x64x32xf32> to vector<64x32xf32>
    %144 = vector.extract_strided_slice %105 {offsets = [3, 0], sizes = [1, 32], strides = [1, 1]} : vector<8x128xf32> to vector<1x32xf32>
    %145 = vector.extract_strided_slice %105 {offsets = [4, 0], sizes = [1, 32], strides = [1, 1]} : vector<8x128xf32> to vector<1x32xf32>
    %146 = vector.extract_strided_slice %105 {offsets = [5, 0], sizes = [1, 32], strides = [1, 1]} : vector<8x128xf32> to vector<1x32xf32>
    %cst_65 = arith.constant dense<0.000000e+00> : vector<8x32xf32>
    %147 = tpu.matmul %141, %143, %cst_65 {dimension_numbers = #tpu.dot_dimension_numbers<[1], [0], [0], [1], [0, 0, 1, 1], [], []>} : vector<8x64xf32>, vector<64x32xf32>, vector<8x32xf32> -> vector<8x32xf32>
    %148 = vector.broadcast %144 : vector<1x32xf32> to vector<8x32xf32>
    %149 = arith.addf %147, %148 : vector<8x32xf32>
    %cst_66 = arith.constant dense<0.000000e+00> : vector<8xf32>
    %150 = vector.multi_reduction <add>, %149, %cst_66 [1] : vector<8x32xf32> to vector<8xf32>
    %151 = vector.shape_cast %150 : vector<8xf32> to vector<8x1xf32>
    %cst_67 = arith.constant 3.200000e+01 : f32
    %152 = vector.broadcast %cst_67 : f32 to vector<8x1xf32>
    %153 = arith.divf %151, %152 : vector<8x1xf32>
    %154 = vector.broadcast %153 : vector<8x1xf32> to vector<8x32xf32>
    %155 = arith.subf %149, %154 : vector<8x32xf32>
    %156 = arith.mulf %155, %155 : vector<8x32xf32>
    %cst_68 = arith.constant dense<0.000000e+00> : vector<8xf32>
    %157 = vector.multi_reduction <add>, %156, %cst_68 [1] : vector<8x32xf32> to vector<8xf32>
    %158 = vector.shape_cast %157 : vector<8xf32> to vector<8x1xf32>
    %cst_69 = arith.constant 3.200000e+01 : f32
    %159 = vector.broadcast %cst_69 : f32 to vector<8x1xf32>
    %160 = arith.divf %158, %159 : vector<8x1xf32>
    %cst_70 = arith.constant 9.99999974E-6 : f32
    %161 = vector.broadcast %cst_70 : f32 to vector<8x1xf32>
    %162 = arith.addf %160, %161 : vector<8x1xf32>
    %163 = math.rsqrt %162 : vector<8x1xf32>
    %164 = vector.broadcast %163 : vector<8x1xf32> to vector<8x32xf32>
    %165 = arith.mulf %155, %164 : vector<8x32xf32>
    %166 = vector.broadcast %145 : vector<1x32xf32> to vector<8x32xf32>
    %167 = arith.mulf %165, %166 : vector<8x32xf32>
    %168 = vector.broadcast %146 : vector<1x32xf32> to vector<8x32xf32>
    %169 = arith.addf %167, %168 : vector<8x32xf32>
    %cst_71 = arith.constant 0.000000e+00 : f32
    %170 = vector.broadcast %cst_71 : f32 to vector<8x32xf32>
    %171 = arith.cmpf ogt, %169, %170 : vector<8x32xf32>
    %cst_72 = arith.constant 0.000000e+00 : f32
    %172 = vector.broadcast %cst_72 : f32 to vector<8x32xf32>
    %173 = arith.minimumf %169, %172 : vector<8x32xf32>
    %174 = math.exp %173 : vector<8x32xf32>
    %cst_73 = arith.constant 1.000000e+00 : f32
    %175 = vector.broadcast %cst_73 : f32 to vector<8x32xf32>
    %176 = arith.subf %174, %175 : vector<8x32xf32>
    %177 = arith.select %171, %169, %176 : vector<8x32xi1>, vector<8x32xf32>
    %c1_74 = arith.constant 1 : index
    %c0_75 = arith.constant 0 : index
    %c0_76 = arith.constant 0 : index
    %178 = vector.load %arg6[%c1_74, %c0_75, %c0_76] : memref<2x32x32xf32, #tpu.memory_space<vmem>>, vector<1x32x32xf32>
    %179 = vector.shape_cast %178 : vector<1x32x32xf32> to vector<32x32xf32>
    %c1_77 = arith.constant 1 : index
    %c0_78 = arith.constant 0 : index
    %c0_79 = arith.constant 0 : index
    %180 = vector.load %arg7[%c1_77, %c0_78, %c0_79] : memref<2x16x32xf32, #tpu.memory_space<vmem>>, vector<1x16x32xf32>
    %181 = vector.shape_cast %180 : vector<1x16x32xf32> to vector<16x32xf32>
    %182 = vector.extract_strided_slice %105 {offsets = [6, 0], sizes = [1, 32], strides = [1, 1]} : vector<8x128xf32> to vector<1x32xf32>
    %c1_80 = arith.constant 1 : index
    %c0_81 = arith.constant 0 : index
    %c0_82 = arith.constant 0 : index
    %183 = vector.load %arg3[%c1_80, %c0_81, %c0_82] : memref<2x8x16xf32, #tpu.memory_space<vmem>>, vector<1x8x16xf32>
    %184 = vector.shape_cast %183 : vector<1x8x16xf32> to vector<8x16xf32>
    %cst_83 = arith.constant dense<0.000000e+00> : vector<8x32xf32>
    %185 = tpu.matmul %177, %179, %cst_83 {dimension_numbers = #tpu.dot_dimension_numbers<[1], [0], [0], [1], [0, 0, 1, 1], [], []>} : vector<8x32xf32>, vector<32x32xf32>, vector<8x32xf32> -> vector<8x32xf32>
    %cst_84 = arith.constant dense<0.000000e+00> : vector<8x32xf32>
    %186 = tpu.matmul %184, %181, %cst_84 {dimension_numbers = #tpu.dot_dimension_numbers<[1], [0], [0], [1], [0, 0, 1, 1], [], []>} : vector<8x16xf32>, vector<16x32xf32>, vector<8x32xf32> -> vector<8x32xf32>
    %187 = arith.addf %185, %186 : vector<8x32xf32>
    %188 = vector.broadcast %182 : vector<1x32xf32> to vector<8x32xf32>
    %189 = arith.addf %187, %188 : vector<8x32xf32>
    %cst_85 = arith.constant 0.000000e+00 : f32
    %190 = vector.broadcast %cst_85 : f32 to vector<8x32xf32>
    %191 = arith.cmpf ogt, %189, %190 : vector<8x32xf32>
    %cst_86 = arith.constant 0.000000e+00 : f32
    %192 = vector.broadcast %cst_86 : f32 to vector<8x32xf32>
    %193 = arith.minimumf %189, %192 : vector<8x32xf32>
    %194 = math.exp %193 : vector<8x32xf32>
    %cst_87 = arith.constant 1.000000e+00 : f32
    %195 = vector.broadcast %cst_87 : f32 to vector<8x32xf32>
    %196 = arith.subf %194, %195 : vector<8x32xf32>
    %197 = arith.select %191, %189, %196 : vector<8x32xi1>, vector<8x32xf32>
    %c1_88 = arith.constant 1 : index
    %c0_89 = arith.constant 0 : index
    %c0_90 = arith.constant 0 : index
    %198 = vector.load %arg8[%c1_88, %c0_89, %c0_90] : memref<2x32x128xf32, #tpu.memory_space<vmem>>, vector<1x32x128xf32>
    %199 = vector.shape_cast %198 : vector<1x32x128xf32> to vector<32x128xf32>
    %200 = vector.extract_strided_slice %105 {offsets = [7, 0], sizes = [1, 128], strides = [1, 1]} : vector<8x128xf32> to vector<1x128xf32>
    %cst_91 = arith.constant dense<0.000000e+00> : vector<8x128xf32>
    %201 = tpu.matmul %197, %199, %cst_91 {dimension_numbers = #tpu.dot_dimension_numbers<[1], [0], [0], [1], [0, 0, 1, 1], [], []>} : vector<8x32xf32>, vector<32x128xf32>, vector<8x128xf32> -> vector<8x128xf32>
    %202 = vector.broadcast %200 : vector<1x128xf32> to vector<8x128xf32>
    %203 = arith.addf %201, %202 : vector<8x128xf32>
    %c1_92 = arith.constant 1 : index
    %c0_93 = arith.constant 0 : index
    %c0_94 = arith.constant 0 : index
    %204 = vector.load %arg10[%c1_92, %c0_93, %c0_94] : memref<2x8x128xf32, #tpu.memory_space<vmem>>, vector<1x8x128xf32>
    %205 = vector.shape_cast %204 : vector<1x8x128xf32> to vector<8x128xf32>
    %206 = vector.shape_cast %203 : vector<8x128xf32> to vector<1x8x128xf32>
    tpu.vector_store %arg10[%c1_92, %c0_93, %c0_94], %206 {strides = array<i32>} : memref<2x8x128xf32, #tpu.memory_space<vmem>>, vector<1x8x128xf32>,
    return
  }
  func.func @transform_0(%arg0: i32, %arg1: i32) -> (i32, i32) {
    %c0_i32 = arith.constant 0 : i32
    %c0_i32_0 = arith.constant 0 : i32
    return %arg1, %c0_i32 : i32, i32
  }
  func.func @transform_1(%arg0: i32, %arg1: i32) -> (i32, i32, i32) {
    %c0_i32 = arith.constant 0 : i32
    %c0_i32_0 = arith.constant 0 : i32
    return %arg0, %arg1, %c0_i32 : i32, i32, i32
  }
  func.func @transform_2(%arg0: i32, %arg1: i32) -> (i32, i32, i32) {
    %c0_i32 = arith.constant 0 : i32
    %c0_i32_0 = arith.constant 0 : i32
    %c0_i32_1 = arith.constant 0 : i32
    return %arg0, %c0_i32, %c0_i32_0 : i32, i32, i32
  }
  func.func @transform_3(%arg0: i32, %arg1: i32) -> (i32, i32, i32) {
    %c0_i32 = arith.constant 0 : i32
    %c0_i32_0 = arith.constant 0 : i32
    %c0_i32_1 = arith.constant 0 : i32
    return %arg0, %c0_i32, %c0_i32_0 : i32, i32, i32
  }
  func.func @transform_4(%arg0: i32, %arg1: i32) -> (i32, i32, i32) {
    %c0_i32 = arith.constant 0 : i32
    %c0_i32_0 = arith.constant 0 : i32
    %c0_i32_1 = arith.constant 0 : i32
    return %arg0, %c0_i32, %c0_i32_0 : i32, i32, i32
  }
  func.func @transform_5(%arg0: i32, %arg1: i32) -> (i32, i32, i32) {
    %c0_i32 = arith.constant 0 : i32
    %c0_i32_0 = arith.constant 0 : i32
    %c0_i32_1 = arith.constant 0 : i32
    return %arg0, %c0_i32, %c0_i32_0 : i32, i32, i32
  }
  func.func @transform_6(%arg0: i32, %arg1: i32) -> (i32, i32, i32) {
    %c0_i32 = arith.constant 0 : i32
    %c0_i32_0 = arith.constant 0 : i32
    %c0_i32_1 = arith.constant 0 : i32
    return %arg0, %c0_i32, %c0_i32_0 : i32, i32, i32
  }
  func.func @transform_7(%arg0: i32, %arg1: i32) -> (i32, i32, i32) {
    %c0_i32 = arith.constant 0 : i32
    %c0_i32_0 = arith.constant 0 : i32
    %c0_i32_1 = arith.constant 0 : i32
    return %arg0, %c0_i32, %c0_i32_0 : i32, i32, i32
  }
  func.func @transform_8(%arg0: i32, %arg1: i32) -> (i32, i32, i32) {
    %c0_i32 = arith.constant 0 : i32
    %c0_i32_0 = arith.constant 0 : i32
    return %arg0, %arg1, %c0_i32 : i32, i32, i32
  }
}

module attributes {stable_mosaic.version = 11 : i64} {
  func.func @kernel(%arg0: i32, %arg1: i32, %arg2: memref<8x32xf32, #tpu.memory_space<vmem>>, %arg3: memref<2x8x16xf32, #tpu.memory_space<vmem>>, %arg4: memref<2x32x64xf32, #tpu.memory_space<vmem>>, %arg5: memref<2x64x32xf32, #tpu.memory_space<vmem>>, %arg6: memref<2x32x32xf32, #tpu.memory_space<vmem>>, %arg7: memref<2x16x32xf32, #tpu.memory_space<vmem>>, %arg8: memref<2x32x128xf32, #tpu.memory_space<vmem>>, %arg9: memref<2x8x128xf32, #tpu.memory_space<vmem>>, %arg10: memref<2x8x128xf32, #tpu.memory_space<vmem>>) attributes {dimension_semantics = [#tpu.dimension_semantics<parallel>, #tpu.dimension_semantics<parallel>], iteration_bounds = array<i64: 1, 1>, scalar_prefetch = 0 : i64, scratch_operands = 0 : i64, tpu.core_type = #tpu.core_type<tc>, window_params = [{transform_indices = @transform_0, window_bounds = array<i64: 8, 32>}, {transform_indices = @transform_1, window_bounds = array<i64: 2, 8, 16>}, {transform_indices = @transform_2, window_bounds = array<i64: 2, 32, 64>}, {transform_indices = @transform_3, window_bounds = array<i64: 2, 64, 32>}, {transform_indices = @transform_4, window_bounds = array<i64: 2, 32, 32>}, {transform_indices = @transform_5, window_bounds = array<i64: 2, 16, 32>}, {transform_indices = @transform_6, window_bounds = array<i64: 2, 32, 128>}, {transform_indices = @transform_7, window_bounds = array<i64: 2, 8, 128>}, {transform_indices = @transform_8, window_bounds = array<i64: 2, 8, 128>}]} {
    %c0 = arith.constant 0 : index
    %c0_0 = arith.constant 0 : index
    %0 = vector.load %arg2[%c0, %c0_0] : memref<8x32xf32, #tpu.memory_space<vmem>>, vector<8x32xf32>
    %c0_1 = arith.constant 0 : index
    %c0_2 = arith.constant 0 : index
    %c0_3 = arith.constant 0 : index
    %1 = vector.load %arg9[%c0_1, %c0_2, %c0_3] : memref<2x8x128xf32, #tpu.memory_space<vmem>>, vector<1x8x128xf32>
    %2 = vector.shape_cast %1 : vector<1x8x128xf32> to vector<8x128xf32>
    %c0_4 = arith.constant 0 : index
    %c0_5 = arith.constant 0 : index
    %c0_6 = arith.constant 0 : index
    %3 = vector.load %arg4[%c0_4, %c0_5, %c0_6] : memref<2x32x64xf32, #tpu.memory_space<vmem>>, vector<1x32x64xf32>
    %4 = vector.shape_cast %3 : vector<1x32x64xf32> to vector<32x64xf32>
    %5 = vector.extract_strided_slice %2 {offsets = [0, 0], sizes = [1, 64], strides = [1, 1]} : vector<8x128xf32> to vector<1x64xf32>
    %6 = vector.extract_strided_slice %2 {offsets = [1, 0], sizes = [1, 64], strides = [1, 1]} : vector<8x128xf32> to vector<1x64xf32>
    %7 = vector.extract_strided_slice %2 {offsets = [2, 0], sizes = [1, 64], strides = [1, 1]} : vector<8x128xf32> to vector<1x64xf32>
    %cst = arith.constant dense<0.000000e+00> : vector<8x64xf32>
    %8 = tpu.matmul %0, %4, %cst {dimension_numbers = #tpu.dot_dimension_numbers<[1], [0], [0], [1], [0, 0, 1, 1], [], []>} : vector<8x32xf32>, vector<32x64xf32>, vector<8x64xf32> -> vector<8x64xf32>
    %9 = vector.broadcast %5 : vector<1x64xf32> to vector<8x64xf32>
    %10 = arith.addf %8, %9 : vector<8x64xf32>
    %cst_7 = arith.constant dense<0.000000e+00> : vector<8xf32>
    %11 = vector.multi_reduction <add>, %10, %cst_7 [1] : vector<8x64xf32> to vector<8xf32>
    %12 = vector.shape_cast %11 : vector<8xf32> to vector<8x1xf32>
    %cst_8 = arith.constant 6.400000e+01 : f32
    %13 = vector.broadcast %cst_8 : f32 to vector<8x1xf32>
    %14 = arith.divf %12, %13 : vector<8x1xf32>
    %15 = vector.broadcast %14 : vector<8x1xf32> to vector<8x64xf32>
    %16 = arith.subf %10, %15 : vector<8x64xf32>
    %17 = arith.mulf %16, %16 : vector<8x64xf32>
    %cst_9 = arith.constant dense<0.000000e+00> : vector<8xf32>
    %18 = vector.multi_reduction <add>, %17, %cst_9 [1] : vector<8x64xf32> to vector<8xf32>
    %19 = vector.shape_cast %18 : vector<8xf32> to vector<8x1xf32>
    %cst_10 = arith.constant 6.400000e+01 : f32
    %20 = vector.broadcast %cst_10 : f32 to vector<8x1xf32>
    %21 = arith.divf %19, %20 : vector<8x1xf32>
    %cst_11 = arith.constant 9.99999974E-6 : f32
    %22 = vector.broadcast %cst_11 : f32 to vector<8x1xf32>
    %23 = arith.addf %21, %22 : vector<8x1xf32>
    %24 = math.rsqrt %23 : vector<8x1xf32>
    %25 = vector.broadcast %24 : vector<8x1xf32> to vector<8x64xf32>
    %26 = arith.mulf %16, %25 : vector<8x64xf32>
    %27 = vector.broadcast %6 : vector<1x64xf32> to vector<8x64xf32>
    %28 = arith.mulf %26, %27 : vector<8x64xf32>
    %29 = vector.broadcast %7 : vector<1x64xf32> to vector<8x64xf32>
    %30 = arith.addf %28, %29 : vector<8x64xf32>
    %cst_12 = arith.constant 0.000000e+00 : f32
    %31 = vector.broadcast %cst_12 : f32 to vector<8x64xf32>
    %32 = arith.cmpf ogt, %30, %31 : vector<8x64xf32>
    %cst_13 = arith.constant 0.000000e+00 : f32
    %33 = vector.broadcast %cst_13 : f32 to vector<8x64xf32>
    %34 = arith.minimumf %30, %33 : vector<8x64xf32>
    %35 = math.exp %34 : vector<8x64xf32>
    %cst_14 = arith.constant 1.000000e+00 : f32
    %36 = vector.broadcast %cst_14 : f32 to vector<8x64xf32>
    %37 = arith.subf %35, %36 : vector<8x64xf32>
    %38 = arith.select %32, %30, %37 : vector<8x64xi1>, vector<8x64xf32>
    %c0_15 = arith.constant 0 : index
    %c0_16 = arith.constant 0 : index
    %c0_17 = arith.constant 0 : index
    %39 = vector.load %arg5[%c0_15, %c0_16, %c0_17] : memref<2x64x32xf32, #tpu.memory_space<vmem>>, vector<1x64x32xf32>
    %40 = vector.shape_cast %39 : vector<1x64x32xf32> to vector<64x32xf32>
    %41 = vector.extract_strided_slice %2 {offsets = [3, 0], sizes = [1, 32], strides = [1, 1]} : vector<8x128xf32> to vector<1x32xf32>
    %42 = vector.extract_strided_slice %2 {offsets = [4, 0], sizes = [1, 32], strides = [1, 1]} : vector<8x128xf32> to vector<1x32xf32>
    %43 = vector.extract_strided_slice %2 {offsets = [5, 0], sizes = [1, 32], strides = [1, 1]} : vector<8x128xf32> to vector<1x32xf32>
    %cst_18 = arith.constant dense<0.000000e+00> : vector<8x32xf32>
    %44 = tpu.matmul %38, %40, %cst_18 {dimension_numbers = #tpu.dot_dimension_numbers<[1], [0], [0], [1], [0, 0, 1, 1], [], []>} : vector<8x64xf32>, vector<64x32xf32>, vector<8x32xf32> -> vector<8x32xf32>
    %45 = vector.broadcast %41 : vector<1x32xf32> to vector<8x32xf32>
    %46 = arith.addf %44, %45 : vector<8x32xf32>
    %cst_19 = arith.constant dense<0.000000e+00> : vector<8xf32>
    %47 = vector.multi_reduction <add>, %46, %cst_19 [1] : vector<8x32xf32> to vector<8xf32>
    %48 = vector.shape_cast %47 : vector<8xf32> to vector<8x1xf32>
    %cst_20 = arith.constant 3.200000e+01 : f32
    %49 = vector.broadcast %cst_20 : f32 to vector<8x1xf32>
    %50 = arith.divf %48, %49 : vector<8x1xf32>
    %51 = vector.broadcast %50 : vector<8x1xf32> to vector<8x32xf32>
    %52 = arith.subf %46, %51 : vector<8x32xf32>
    %53 = arith.mulf %52, %52 : vector<8x32xf32>
    %cst_21 = arith.constant dense<0.000000e+00> : vector<8xf32>
    %54 = vector.multi_reduction <add>, %53, %cst_21 [1] : vector<8x32xf32> to vector<8xf32>
    %55 = vector.shape_cast %54 : vector<8xf32> to vector<8x1xf32>
    %cst_22 = arith.constant 3.200000e+01 : f32
    %56 = vector.broadcast %cst_22 : f32 to vector<8x1xf32>
    %57 = arith.divf %55, %56 : vector<8x1xf32>
    %cst_23 = arith.constant 9.99999974E-6 : f32
    %58 = vector.broadcast %cst_23 : f32 to vector<8x1xf32>
    %59 = arith.addf %57, %58 : vector<8x1xf32>
    %60 = math.rsqrt %59 : vector<8x1xf32>
    %61 = vector.broadcast %60 : vector<8x1xf32> to vector<8x32xf32>
    %62 = arith.mulf %52, %61 : vector<8x32xf32>
    %63 = vector.broadcast %42 : vector<1x32xf32> to vector<8x32xf32>
    %64 = arith.mulf %62, %63 : vector<8x32xf32>
    %65 = vector.broadcast %43 : vector<1x32xf32> to vector<8x32xf32>
    %66 = arith.addf %64, %65 : vector<8x32xf32>
    %cst_24 = arith.constant 0.000000e+00 : f32
    %67 = vector.broadcast %cst_24 : f32 to vector<8x32xf32>
    %68 = arith.cmpf ogt, %66, %67 : vector<8x32xf32>
    %cst_25 = arith.constant 0.000000e+00 : f32
    %69 = vector.broadcast %cst_25 : f32 to vector<8x32xf32>
    %70 = arith.minimumf %66, %69 : vector<8x32xf32>
    %71 = math.exp %70 : vector<8x32xf32>
    %cst_26 = arith.constant 1.000000e+00 : f32
    %72 = vector.broadcast %cst_26 : f32 to vector<8x32xf32>
    %73 = arith.subf %71, %72 : vector<8x32xf32>
    %74 = arith.select %68, %66, %73 : vector<8x32xi1>, vector<8x32xf32>
    %c0_27 = arith.constant 0 : index
    %c0_28 = arith.constant 0 : index
    %c0_29 = arith.constant 0 : index
    %75 = vector.load %arg6[%c0_27, %c0_28, %c0_29] : memref<2x32x32xf32, #tpu.memory_space<vmem>>, vector<1x32x32xf32>
    %76 = vector.shape_cast %75 : vector<1x32x32xf32> to vector<32x32xf32>
    %c0_30 = arith.constant 0 : index
    %c0_31 = arith.constant 0 : index
    %c0_32 = arith.constant 0 : index
    %77 = vector.load %arg7[%c0_30, %c0_31, %c0_32] : memref<2x16x32xf32, #tpu.memory_space<vmem>>, vector<1x16x32xf32>
    %78 = vector.shape_cast %77 : vector<1x16x32xf32> to vector<16x32xf32>
    %79 = vector.extract_strided_slice %2 {offsets = [6, 0], sizes = [1, 32], strides = [1, 1]} : vector<8x128xf32> to vector<1x32xf32>
    %c0_33 = arith.constant 0 : index
    %c0_34 = arith.constant 0 : index
    %c0_35 = arith.constant 0 : index
    %80 = vector.load %arg3[%c0_33, %c0_34, %c0_35] : memref<2x8x16xf32, #tpu.memory_space<vmem>>, vector<1x8x16xf32>
    %81 = vector.shape_cast %80 : vector<1x8x16xf32> to vector<8x16xf32>
    %cst_36 = arith.constant dense<0.000000e+00> : vector<8x32xf32>
    %82 = tpu.matmul %74, %76, %cst_36 {dimension_numbers = #tpu.dot_dimension_numbers<[1], [0], [0], [1], [0, 0, 1, 1], [], []>} : vector<8x32xf32>, vector<32x32xf32>, vector<8x32xf32> -> vector<8x32xf32>
    %cst_37 = arith.constant dense<0.000000e+00> : vector<8x32xf32>
    %83 = tpu.matmul %81, %78, %cst_37 {dimension_numbers = #tpu.dot_dimension_numbers<[1], [0], [0], [1], [0, 0, 1, 1], [], []>} : vector<8x16xf32>, vector<16x32xf32>, vector<8x32xf32> -> vector<8x32xf32>
    %84 = arith.addf %82, %83 : vector<8x32xf32>
    %85 = vector.broadcast %79 : vector<1x32xf32> to vector<8x32xf32>
    %86 = arith.addf %84, %85 : vector<8x32xf32>
    %cst_38 = arith.constant 0.000000e+00 : f32
    %87 = vector.broadcast %cst_38 : f32 to vector<8x32xf32>
    %88 = arith.cmpf ogt, %86, %87 : vector<8x32xf32>
    %cst_39 = arith.constant 0.000000e+00 : f32
    %89 = vector.broadcast %cst_39 : f32 to vector<8x32xf32>
    %90 = arith.minimumf %86, %89 : vector<8x32xf32>
    %91 = math.exp %90 : vector<8x32xf32>
    %cst_40 = arith.constant 1.000000e+00 : f32
    %92 = vector.broadcast %cst_40 : f32 to vector<8x32xf32>
    %93 = arith.subf %91, %92 : vector<8x32xf32>
    %94 = arith.select %88, %86, %93 : vector<8x32xi1>, vector<8x32xf32>
    %c0_41 = arith.constant 0 : index
    %c0_42 = arith.constant 0 : index
    %c0_43 = arith.constant 0 : index
    %95 = vector.load %arg8[%c0_41, %c0_42, %c0_43] : memref<2x32x128xf32, #tpu.memory_space<vmem>>, vector<1x32x128xf32>
    %96 = vector.shape_cast %95 : vector<1x32x128xf32> to vector<32x128xf32>
    %97 = vector.extract_strided_slice %2 {offsets = [7, 0], sizes = [1, 128], strides = [1, 1]} : vector<8x128xf32> to vector<1x128xf32>
    %cst_44 = arith.constant dense<0.000000e+00> : vector<8x128xf32>
    %98 = tpu.matmul %94, %96, %cst_44 {dimension_numbers = #tpu.dot_dimension_numbers<[1], [0], [0], [1], [0, 0, 1, 1], [], []>} : vector<8x32xf32>, vector<32x128xf32>, vector<8x128xf32> -> vector<8x128xf32>
    %99 = vector.broadcast %97 : vector<1x128xf32> to vector<8x128xf32>
    %100 = arith.addf %98, %99 : vector<8x128xf32>
    %c0_45 = arith.constant 0 : index
    %c0_46 = arith.constant 0 : index
    %c0_47 = arith.constant 0 : index
    %101 = vector.load %arg10[%c0_45, %c0_46, %c0_47] : memref<2x8x128xf32, #tpu.memory_space<vmem>>, vector<1x8x128xf32>
    %102 = vector.shape_cast %101 : vector<1x8x128xf32> to vector<8x128xf32>
    %103 = vector.shape_cast %100 : vector<8x128xf32> to vector<1x8x128xf32>
    tpu.vector_store %arg10[%c0_45, %c0_46, %c0_47], %103 {strides = array<i32>} : memref<2x8x128xf32, #tpu.memory_space<vmem>>, vector<1x8x128xf32>,
    %c1 = arith.constant 1 : index
    %c0_48 = arith.constant 0 : index
    %c0_49 = arith.constant 0 : index
    %104 = vector.load %arg9[%c1, %c0_48, %c0_49] : memref<2x8x128xf32, #tpu.memory_space<vmem>>, vector<1x8x128xf32>
    %105 = vector.shape_cast %104 : vector<1x8x128xf32> to vector<8x128xf32>
    %c1_50 = arith.constant 1 : index
    %c0_51 = arith.constant 0 : index
    %c0_52 = arith.constant 0 : index
    %106 = vector.load %arg4[%c1_50, %c0_51, %c0_52] : memref<2x32x64xf32, #tpu.memory_space<vmem>>, vector<1x32x64xf32>
    %107 = vector.shape_cast %106 : vector<1x32x64xf32> to vector<32x64xf32>
    %108 = vector.extract_strided_slice %105 {offsets = [0, 0], sizes = [1, 64], strides = [1, 1]} : vector<8x128xf32> to vector<1x64xf32>
    %109 = vector.extract_strided_slice %105 {offsets = [1, 0], sizes = [1, 64], strides = [1, 1]} : vector<8x128xf32> to vector<1x64xf32>
    %110 = vector.extract_strided_slice %105 {offsets = [2, 0], sizes = [1, 64], strides = [1, 1]} : vector<8x128xf32> to vector<1x64xf32>
    %cst_53 = arith.constant dense<0.000000e+00> : vector<8x64xf32>
    %111 = tpu.matmul %0, %107, %cst_53 {dimension_numbers = #tpu.dot_dimension_numbers<[1], [0], [0], [1], [0, 0, 1, 1], [], []>} : vector<8x32xf32>, vector<32x64xf32>, vector<8x64xf32> -> vector<8x64xf32>
    %112 = vector.broadcast %108 : vector<1x64xf32> to vector<8x64xf32>
    %113 = arith.addf %111, %112 : vector<8x64xf32>
    %cst_54 = arith.constant dense<0.000000e+00> : vector<8xf32>
    %114 = vector.multi_reduction <add>, %113, %cst_54 [1] : vector<8x64xf32> to vector<8xf32>
    %115 = vector.shape_cast %114 : vector<8xf32> to vector<8x1xf32>
    %cst_55 = arith.constant 6.400000e+01 : f32
    %116 = vector.broadcast %cst_55 : f32 to vector<8x1xf32>
    %117 = arith.divf %115, %116 : vector<8x1xf32>
    %118 = vector.broadcast %117 : vector<8x1xf32> to vector<8x64xf32>
    %119 = arith.subf %113, %118 : vector<8x64xf32>
    %120 = arith.mulf %119, %119 : vector<8x64xf32>
    %cst_56 = arith.constant dense<0.000000e+00> : vector<8xf32>
    %121 = vector.multi_reduction <add>, %120, %cst_56 [1] : vector<8x64xf32> to vector<8xf32>
    %122 = vector.shape_cast %121 : vector<8xf32> to vector<8x1xf32>
    %cst_57 = arith.constant 6.400000e+01 : f32
    %123 = vector.broadcast %cst_57 : f32 to vector<8x1xf32>
    %124 = arith.divf %122, %123 : vector<8x1xf32>
    %cst_58 = arith.constant 9.99999974E-6 : f32
    %125 = vector.broadcast %cst_58 : f32 to vector<8x1xf32>
    %126 = arith.addf %124, %125 : vector<8x1xf32>
    %127 = math.rsqrt %126 : vector<8x1xf32>
    %128 = vector.broadcast %127 : vector<8x1xf32> to vector<8x64xf32>
    %129 = arith.mulf %119, %128 : vector<8x64xf32>
    %130 = vector.broadcast %109 : vector<1x64xf32> to vector<8x64xf32>
    %131 = arith.mulf %129, %130 : vector<8x64xf32>
    %132 = vector.broadcast %110 : vector<1x64xf32> to vector<8x64xf32>
    %133 = arith.addf %131, %132 : vector<8x64xf32>
    %cst_59 = arith.constant 0.000000e+00 : f32
    %134 = vector.broadcast %cst_59 : f32 to vector<8x64xf32>
    %135 = arith.cmpf ogt, %133, %134 : vector<8x64xf32>
    %cst_60 = arith.constant 0.000000e+00 : f32
    %136 = vector.broadcast %cst_60 : f32 to vector<8x64xf32>
    %137 = arith.minimumf %133, %136 : vector<8x64xf32>
    %138 = math.exp %137 : vector<8x64xf32>
    %cst_61 = arith.constant 1.000000e+00 : f32
    %139 = vector.broadcast %cst_61 : f32 to vector<8x64xf32>
    %140 = arith.subf %138, %139 : vector<8x64xf32>
    %141 = arith.select %135, %133, %140 : vector<8x64xi1>, vector<8x64xf32>
    %c1_62 = arith.constant 1 : index
    %c0_63 = arith.constant 0 : index
    %c0_64 = arith.constant 0 : index
    %142 = vector.load %arg5[%c1_62, %c0_63, %c0_64] : memref<2x64x32xf32, #tpu.memory_space<vmem>>, vector<1x64x32xf32>
    %143 = vector.shape_cast %142 : vector<1x64x32xf32> to vector<64x32xf32>
    %144 = vector.extract_strided_slice %105 {offsets = [3, 0], sizes = [1, 32], strides = [1, 1]} : vector<8x128xf32> to vector<1x32xf32>
    %145 = vector.extract_strided_slice %105 {offsets = [4, 0], sizes = [1, 32], strides = [1, 1]} : vector<8x128xf32> to vector<1x32xf32>
    %146 = vector.extract_strided_slice %105 {offsets = [5, 0], sizes = [1, 32], strides = [1, 1]} : vector<8x128xf32> to vector<1x32xf32>
    %cst_65 = arith.constant dense<0.000000e+00> : vector<8x32xf32>
    %147 = tpu.matmul %141, %143, %cst_65 {dimension_numbers = #tpu.dot_dimension_numbers<[1], [0], [0], [1], [0, 0, 1, 1], [], []>} : vector<8x64xf32>, vector<64x32xf32>, vector<8x32xf32> -> vector<8x32xf32>
    %148 = vector.broadcast %144 : vector<1x32xf32> to vector<8x32xf32>
    %149 = arith.addf %147, %148 : vector<8x32xf32>
    %cst_66 = arith.constant dense<0.000000e+00> : vector<8xf32>
    %150 = vector.multi_reduction <add>, %149, %cst_66 [1] : vector<8x32xf32> to vector<8xf32>
    %151 = vector.shape_cast %150 : vector<8xf32> to vector<8x1xf32>
    %cst_67 = arith.constant 3.200000e+01 : f32
    %152 = vector.broadcast %cst_67 : f32 to vector<8x1xf32>
    %153 = arith.divf %151, %152 : vector<8x1xf32>
    %154 = vector.broadcast %153 : vector<8x1xf32> to vector<8x32xf32>
    %155 = arith.subf %149, %154 : vector<8x32xf32>
    %156 = arith.mulf %155, %155 : vector<8x32xf32>
    %cst_68 = arith.constant dense<0.000000e+00> : vector<8xf32>
    %157 = vector.multi_reduction <add>, %156, %cst_68 [1] : vector<8x32xf32> to vector<8xf32>
    %158 = vector.shape_cast %157 : vector<8xf32> to vector<8x1xf32>
    %cst_69 = arith.constant 3.200000e+01 : f32
    %159 = vector.broadcast %cst_69 : f32 to vector<8x1xf32>
    %160 = arith.divf %158, %159 : vector<8x1xf32>
    %cst_70 = arith.constant 9.99999974E-6 : f32
    %161 = vector.broadcast %cst_70 : f32 to vector<8x1xf32>
    %162 = arith.addf %160, %161 : vector<8x1xf32>
    %163 = math.rsqrt %162 : vector<8x1xf32>
    %164 = vector.broadcast %163 : vector<8x1xf32> to vector<8x32xf32>
    %165 = arith.mulf %155, %164 : vector<8x32xf32>
    %166 = vector.broadcast %145 : vector<1x32xf32> to vector<8x32xf32>
    %167 = arith.mulf %165, %166 : vector<8x32xf32>
    %168 = vector.broadcast %146 : vector<1x32xf32> to vector<8x32xf32>
    %169 = arith.addf %167, %168 : vector<8x32xf32>
    %cst_71 = arith.constant 0.000000e+00 : f32
    %170 = vector.broadcast %cst_71 : f32 to vector<8x32xf32>
    %171 = arith.cmpf ogt, %169, %170 : vector<8x32xf32>
    %cst_72 = arith.constant 0.000000e+00 : f32
    %172 = vector.broadcast %cst_72 : f32 to vector<8x32xf32>
    %173 = arith.minimumf %169, %172 : vector<8x32xf32>
    %174 = math.exp %173 : vector<8x32xf32>
    %cst_73 = arith.constant 1.000000e+00 : f32
    %175 = vector.broadcast %cst_73 : f32 to vector<8x32xf32>
    %176 = arith.subf %174, %175 : vector<8x32xf32>
    %177 = arith.select %171, %169, %176 : vector<8x32xi1>, vector<8x32xf32>
    %c1_74 = arith.constant 1 : index
    %c0_75 = arith.constant 0 : index
    %c0_76 = arith.constant 0 : index
    %178 = vector.load %arg6[%c1_74, %c0_75, %c0_76] : memref<2x32x32xf32, #tpu.memory_space<vmem>>, vector<1x32x32xf32>
    %179 = vector.shape_cast %178 : vector<1x32x32xf32> to vector<32x32xf32>
    %c1_77 = arith.constant 1 : index
    %c0_78 = arith.constant 0 : index
    %c0_79 = arith.constant 0 : index
    %180 = vector.load %arg7[%c1_77, %c0_78, %c0_79] : memref<2x16x32xf32, #tpu.memory_space<vmem>>, vector<1x16x32xf32>
    %181 = vector.shape_cast %180 : vector<1x16x32xf32> to vector<16x32xf32>
    %182 = vector.extract_strided_slice %105 {offsets = [6, 0], sizes = [1, 32], strides = [1, 1]} : vector<8x128xf32> to vector<1x32xf32>
    %c1_80 = arith.constant 1 : index
    %c0_81 = arith.constant 0 : index
    %c0_82 = arith.constant 0 : index
    %183 = vector.load %arg3[%c1_80, %c0_81, %c0_82] : memref<2x8x16xf32, #tpu.memory_space<vmem>>, vector<1x8x16xf32>
    %184 = vector.shape_cast %183 : vector<1x8x16xf32> to vector<8x16xf32>
    %cst_83 = arith.constant dense<0.000000e+00> : vector<8x32xf32>
    %185 = tpu.matmul %177, %179, %cst_83 {dimension_numbers = #tpu.dot_dimension_numbers<[1], [0], [0], [1], [0, 0, 1, 1], [], []>} : vector<8x32xf32>, vector<32x32xf32>, vector<8x32xf32> -> vector<8x32xf32>
    %cst_84 = arith.constant dense<0.000000e+00> : vector<8x32xf32>
    %186 = tpu.matmul %184, %181, %cst_84 {dimension_numbers = #tpu.dot_dimension_numbers<[1], [0], [0], [1], [0, 0, 1, 1], [], []>} : vector<8x16xf32>, vector<16x32xf32>, vector<8x32xf32> -> vector<8x32xf32>
    %187 = arith.addf %185, %186 : vector<8x32xf32>
    %188 = vector.broadcast %182 : vector<1x32xf32> to vector<8x32xf32>
    %189 = arith.addf %187, %188 : vector<8x32xf32>
    %cst_85 = arith.constant 0.000000e+00 : f32
    %190 = vector.broadcast %cst_85 : f32 to vector<8x32xf32>
    %191 = arith.cmpf ogt, %189, %190 : vector<8x32xf32>
    %cst_86 = arith.constant 0.000000e+00 : f32
    %192 = vector.broadcast %cst_86 : f32 to vector<8x32xf32>
    %193 = arith.minimumf %189, %192 : vector<8x32xf32>
    %194 = math.exp %193 : vector<8x32xf32>
    %cst_87 = arith.constant 1.000000e+00 : f32
    %195 = vector.broadcast %cst_87 : f32 to vector<8x32xf32>
    %196 = arith.subf %194, %195 : vector<8x32xf32>
    %197 = arith.select %191, %189, %196 : vector<8x32xi1>, vector<8x32xf32>
    %c1_88 = arith.constant 1 : index
    %c0_89 = arith.constant 0 : index
    %c0_90 = arith.constant 0 : index
    %198 = vector.load %arg8[%c1_88, %c0_89, %c0_90] : memref<2x32x128xf32, #tpu.memory_space<vmem>>, vector<1x32x128xf32>
    %199 = vector.shape_cast %198 : vector<1x32x128xf32> to vector<32x128xf32>
    %200 = vector.extract_strided_slice %105 {offsets = [7, 0], sizes = [1, 128], strides = [1, 1]} : vector<8x128xf32> to vector<1x128xf32>
    %cst_91 = arith.constant dense<0.000000e+00> : vector<8x128xf32>
    %201 = tpu.matmul %197, %199, %cst_91 {dimension_numbers = #tpu.dot_dimension_numbers<[1], [0], [0], [1], [0, 0, 1, 1], [], []>} : vector<8x32xf32>, vector<32x128xf32>, vector<8x128xf32> -> vector<8x128xf32>
    %202 = vector.broadcast %200 : vector<1x128xf32> to vector<8x128xf32>
    %203 = arith.addf %201, %202 : vector<8x128xf32>
    %c1_92 = arith.constant 1 : index
    %c0_93 = arith.constant 0 : index
    %c0_94 = arith.constant 0 : index
    %204 = vector.load %arg10[%c1_92, %c0_93, %c0_94] : memref<2x8x128xf32, #tpu.memory_space<vmem>>, vector<1x8x128xf32>
    %205 = vector.shape_cast %204 : vector<1x8x128xf32> to vector<8x128xf32>
    %206 = vector.shape_cast %203 : vector<8x128xf32> to vector<1x8x128xf32>
    tpu.vector_store %arg10[%c1_92, %c0_93, %c0_94], %206 {strides = array<i32>} : memref<2x8x128xf32, #tpu.memory_space<vmem>>, vector<1x8x128xf32>,
    return
  }
  func.func @transform_0(%arg0: i32, %arg1: i32) -> (i32, i32) {
    %c0_i32 = arith.constant 0 : i32
    %c0_i32_0 = arith.constant 0 : i32
    return %arg1, %c0_i32 : i32, i32
  }
  func.func @transform_1(%arg0: i32, %arg1: i32) -> (i32, i32, i32) {
    %c0_i32 = arith.constant 0 : i32
    %c0_i32_0 = arith.constant 0 : i32
    return %arg0, %arg1, %c0_i32 : i32, i32, i32
  }
  func.func @transform_2(%arg0: i32, %arg1: i32) -> (i32, i32, i32) {
    %c0_i32 = arith.constant 0 : i32
    %c0_i32_0 = arith.constant 0 : i32
    %c0_i32_1 = arith.constant 0 : i32
    return %arg0, %c0_i32, %c0_i32_0 : i32, i32, i32
  }
  func.func @transform_3(%arg0: i32, %arg1: i32) -> (i32, i32, i32) {
    %c0_i32 = arith.constant 0 : i32
    %c0_i32_0 = arith.constant 0 : i32
    %c0_i32_1 = arith.constant 0 : i32
    return %arg0, %c0_i32, %c0_i32_0 : i32, i32, i32
  }
  func.func @transform_4(%arg0: i32, %arg1: i32) -> (i32, i32, i32) {
    %c0_i32 = arith.constant 0 : i32
    %c0_i32_0 = arith.constant 0 : i32
    %c0_i32_1 = arith.constant 0 : i32
    return %arg0, %c0_i32, %c0_i32_0 : i32, i32, i32
  }
  func.func @transform_5(%arg0: i32, %arg1: i32) -> (i32, i32, i32) {
    %c0_i32 = arith.constant 0 : i32
    %c0_i32_0 = arith.constant 0 : i32
    %c0_i32_1 = arith.constant 0 : i32
    return %arg0, %c0_i32, %c0_i32_0 : i32, i32, i32
  }
  func.func @transform_6(%arg0: i32, %arg1: i32) -> (i32, i32, i32) {
    %c0_i32 = arith.constant 0 : i32
    %c0_i32_0 = arith.constant 0 : i32
    %c0_i32_1 = arith.constant 0 : i32
    return %arg0, %c0_i32, %c0_i32_0 : i32, i32, i32
  }
  func.func @transform_7(%arg0: i32, %arg1: i32) -> (i32, i32, i32) {
    %c0_i32 = arith.constant 0 : i32
    %c0_i32_0 = arith.constant 0 : i32
    %c0_i32_1 = arith.constant 0 : i32
    return %arg0, %c0_i32, %c0_i32_0 : i32, i32, i32
  }
  func.func @transform_8(%arg0: i32, %arg1: i32) -> (i32, i32, i32) {
    %c0_i32 = arith.constant 0 : i32
    %c0_i32_0 = arith.constant 0 : i32
    return %arg0, %arg1, %c0_i32 : i32, i32, i32
  }
}

</mosaic_0001>

<llo_original>
// kernel: tpu_custom_call.1
$region0: #{tpu_custom_call.1}
  #allocation0 [shape = 'u32[]', space=smem, size = 0x4, offset = 0x4, fixed_abs, tag = 'smem constant byte address 0x4 - core index']
  #allocation1 [shape = 'u32[144,128]{1,0:T(1,128)}', space=vmem, size = 0x12000, scoped, tag = 'internal scratch']
  %s0 = inlined_call_operand.hbm [shape: f32[8,32], index: 0, kind: input, shape index: {}]
  %s1 = inlined_call_operand.hbm [shape: f32[2,8,16], index: 1, kind: input, shape index: {}]
  %s2 = inlined_call_operand.vmem [shape: f32[2,32,64], index: 2, kind: input, shape index: {}]
  %s3 = inlined_call_operand.vmem [shape: f32[2,64,32], index: 3, kind: input, shape index: {}]
  %s4 = inlined_call_operand.vmem [shape: f32[2,32,32], index: 4, kind: input, shape index: {}]
  %s5 = inlined_call_operand.hbm [shape: f32[2,16,32], index: 5, kind: input, shape index: {}]
  %s6 = inlined_call_operand.vmem [shape: f32[2,32,128], index: 6, kind: input, shape index: {}]
  %s7 = inlined_call_operand.hbm [shape: f32[2,8,128], index: 7, kind: input, shape index: {}]
  %s8 = inlined_call_operand.hbm [shape: f32[2,8,128], index: 8, kind: output, shape index: {}]
  %s9 = sld [smem:[#allocation0]]
  $region58: #{tpu_custom_call.1} parent=0
    _
  %s11 = ssub.s32 1, %s9
  %s12 = scalar_select 0, %s11, %s9
  $region1: #{tpu_custom_call.1} parent=0
    #allocation2 [shape = 'u8[4096]{0}', space=vmem, size = 0x1000, scoped, tag = 'input window, operand 0, single buffered']
    #allocation3 [shape = 's32[1]{0}', space=sflag, size = 0x4, scoped, tag = 'scoped memory for tpu_custom_call.1']
    #allocation4 [shape = 's32[1]{0}', space=sflag, size = 0x4, scoped, tag = 'scoped memory for tpu_custom_call.1']
    #allocation5 [shape = 'u8[8192]{0}', space=vmem, size = 0x2000, scoped, tag = 'input window, operand 1, single buffered']
    #allocation6 [shape = 's32[1]{0}', space=sflag, size = 0x4, scoped, tag = 'scoped memory for tpu_custom_call.1']
    #allocation7 [shape = 'u8[16384]{0}', space=vmem, size = 0x4000, scoped, tag = 'input window, operand 5, single buffered']
    #allocation8 [shape = 'u8[8192]{0}', space=vmem, size = 0x2000, scoped, tag = 'input window, operand 7, single buffered']
    #allocation9 [shape = 's32[1]{0}', space=sflag, size = 0x4, scoped, tag = 'scoped memory for tpu_custom_call.1']
    #allocation10 [shape = 'u8[8192]{0}', space=vmem, size = 0x2000, scoped, tag = 'output window, operand 0, single buffered']
    %13 = vsyncpa [#allocation3], 0
    %14 = vsyncpa [#allocation6], 0
    %15 = vsyncpa [#allocation9], 0
    %16 = vsyncpa [#allocation4], 0
    // Predicated region
    $region2: #{tpu_custom_call.1} parent=1 // pred_check
      _
    $region3: #{tpu_custom_call.1} parent=1 // pred_check_branch
      %18 = sbr.rel (0) target = $region5
    $region4: #{tpu_custom_call.1} parent=1 // pred_region
      %s20 = ssub.s32 128, 128
      %21 = vsyncadd [#allocation3], %s20
      %s23 = sshll.u32 [#allocation2], 4
      %s24 = int_to_ptr.vmem [resolvable:$true] %s23
      %26 = dma.hbm_to_vmem [thread:$0]  %s0, 128, %s24, [#allocation3]
    $region5: #{tpu_custom_call.1} parent=1 // pred_fallthru
      _
    // Predicated region
    $region6: #{tpu_custom_call.1} parent=1 // pred_check
      _
    $region7: #{tpu_custom_call.1} parent=1 // pred_check_branch
      %28 = sbr.rel (0) target = $region9
    $region8: #{tpu_custom_call.1} parent=1 // pred_region
      %s30 = ssub.s32 256, 256
      %31 = vsyncadd [#allocation6], %s30
      %s32 = sshll.u32 [#allocation5], 4
      %s33 = int_to_ptr.vmem [resolvable:$true] %s32
      %38 = dma.hbm_to_vmem [thread:$0]  %s1, 256, %s33, [#allocation6], 128, 128, 8
    $region9: #{tpu_custom_call.1} parent=1 // pred_fallthru
      _
    // Predicated region
    $region10: #{tpu_custom_call.1} parent=1 // pred_check
      _
    $region11: #{tpu_custom_call.1} parent=1 // pred_check_branch
      %40 = sbr.rel (0) target = $region13
    $region12: #{tpu_custom_call.1} parent=1 // pred_region
      _
    $region13: #{tpu_custom_call.1} parent=1 // pred_fallthru
      _
    // Predicated region
    $region14: #{tpu_custom_call.1} parent=1 // pred_check
      _
    $region15: #{tpu_custom_call.1} parent=1 // pred_check_branch
      %42 = sbr.rel (0) target = $region17
    $region16: #{tpu_custom_call.1} parent=1 // pred_region
      _
    $region17: #{tpu_custom_call.1} parent=1 // pred_fallthru
      _
    // Predicated region
    $region18: #{tpu_custom_call.1} parent=1 // pred_check
      _
    $region19: #{tpu_custom_call.1} parent=1 // pred_check_branch
      %44 = sbr.rel (0) target = $region21
    $region20: #{tpu_custom_call.1} parent=1 // pred_region
      _
    $region21: #{tpu_custom_call.1} parent=1 // pred_fallthru
      _
    // Predicated region
    $region22: #{tpu_custom_call.1} parent=1 // pred_check
      _
    $region23: #{tpu_custom_call.1} parent=1 // pred_check_branch
      %46 = sbr.rel (0) target = $region25
    $region24: #{tpu_custom_call.1} parent=1 // pred_region
      %s48 = ssub.s32 512, 512
      %49 = vsyncadd [#allocation6], %s48
      %s50 = sshll.u32 [#allocation7], 4
      %s51 = int_to_ptr.vmem [resolvable:$true] %s50
      %56 = dma.hbm_to_vmem [thread:$0]  %s5, 512, %s51, [#allocation6], 128, 128, 8
    $region25: #{tpu_custom_call.1} parent=1 // pred_fallthru
      _
    // Predicated region
    $region26: #{tpu_custom_call.1} parent=1 // pred_check
      _
    $region27: #{tpu_custom_call.1} parent=1 // pred_check_branch
      %58 = sbr.rel (0) target = $region29
    $region28: #{tpu_custom_call.1} parent=1 // pred_region
      _
    $region29: #{tpu_custom_call.1} parent=1 // pred_fallthru
      _
    // Predicated region
    $region30: #{tpu_custom_call.1} parent=1 // pred_check
      _
    $region31: #{tpu_custom_call.1} parent=1 // pred_check_branch
      %60 = sbr.rel (0) target = $region33
    $region32: #{tpu_custom_call.1} parent=1 // pred_region
      %s62 = ssub.s32 256, 256
      %63 = vsyncadd [#allocation9], %s62
      %s64 = sshll.u32 [#allocation8], 4
      %s65 = int_to_ptr.vmem [resolvable:$true] %s64
      %70 = dma.hbm_to_vmem [thread:$0]  %s7, 256, %s65, [#allocation9], 128, 128, 8
    $region33: #{tpu_custom_call.1} parent=1 // pred_fallthru
      _
    // Predicated region
    $region34: #{tpu_custom_call.1} parent=1 // pred_check
      _
    $region35: #{tpu_custom_call.1} parent=1 // pred_check_branch
      %72 = sbr.rel (0) target = $region37
    $region36: #{tpu_custom_call.1} parent=1 // pred_region
      %73 = dma.done [#allocation3], 128
    $region37: #{tpu_custom_call.1} parent=1 // pred_fallthru
      _
    // Predicated region
    $region38: #{tpu_custom_call.1} parent=1 // pred_check
      _
    $region39: #{tpu_custom_call.1} parent=1 // pred_check_branch
      %75 = sbr.rel (0) target = $region41
    $region40: #{tpu_custom_call.1} parent=1 // pred_region
      %76 = dma.done [#allocation6], 256
    $region41: #{tpu_custom_call.1} parent=1 // pred_fallthru
      _
    // Predicated region
    $region42: #{tpu_custom_call.1} parent=1 // pred_check
      _
    $region43: #{tpu_custom_call.1} parent=1 // pred_check_branch
      %78 = sbr.rel (0) target = $region45
    $region44: #{tpu_custom_call.1} parent=1 // pred_region
      %79 = dma.done [#allocation6], 512
    $region45: #{tpu_custom_call.1} parent=1 // pred_fallthru
      _
    // Predicated region
    $region46: #{tpu_custom_call.1} parent=1 // pred_check
      _
    $region47: #{tpu_custom_call.1} parent=1 // pred_check_branch
      %81 = sbr.rel (0) target = $region49
    $region48: #{tpu_custom_call.1} parent=1 // pred_region
      %82 = dma.done [#allocation9], 256
    $region49: #{tpu_custom_call.1} parent=1 // pred_fallthru
      _
    %v83 = vld [vmem:[#allocation2] sm:$0xff]
    %v84 = vld [vmem:[#allocation8] sm:$0xff]
    %v85 = vld [vmem:[%s2] sm:$0xff]
    %v86 = vld [vmem:[%s2 + $0x8] sm:$0xff]
    %v87 = vld [vmem:[%s2 + $0x10] sm:$0xff]
    %v88 = vld [vmem:[%s2 + $0x18] sm:$0xff]
    %v89 = vlaneseq
    %v90 = vshrl.u32 %v89, 7
    %v91 = vsub.s32 0, %v90
    %v92 = vrot.slane %v84, %v91
    %vm93 = vcmask 261120
    %v95 = vsel %vm93, %v83, 0
    %97 = vmatprep.subr.mxu0 0.0
    %98 = vmatpush1.msra.mxu0 0.0
    %99 = vmatprep.subr.mxu0 0.0
    %100 = vmatpush1.msra.mxu0 0.0
    %101 = vmatprep.subr.mxu0 0.0
    %102 = vmatpush1.msra.mxu0 0.0
    %103 = vmatprep.subr.mxu0 0.0
    %104 = vmatpush1.msra.mxu0 0.0
    %105 = vmatprep.subr.mxu0 0.0
    %106 = vmatpush1.msra.mxu0 0.0
    %107 = vmatprep.subr.mxu0 0.0
    %108 = vmatpush1.msra.mxu0 0.0
    %109 = vmatprep.subr.mxu0 0.0
    %110 = vmatpush1.msra.mxu0 0.0
    %111 = vmatprep.subr.mxu0 0.0
    %112 = vmatpush1.msra.mxu0 0.0
    %113 = vmatprep.subr.mxu0 0.0
    %114 = vmatpush1.msra.mxu0 0.0
    %115 = vmatprep.subr.mxu0 0.0
    %116 = vmatpush1.msra.mxu0 0.0
    %117 = vmatprep.subr.mxu0 0.0
    %118 = vmatpush1.msra.mxu0 0.0
    %119 = vmatprep.subr.mxu0 0.0
    %120 = vmatpush1.msra.mxu0 0.0
    %121 = vmatprep.subr.mxu0 0.0
    %122 = vmatpush1.msra.mxu0 %v88
    %123 = vmatprep.subr.mxu0 0.0
    %124 = vmatpush1.msra.mxu0 %v87
    %125 = vmatprep.subr.mxu0 0.0
    %126 = vmatpush1.msra.mxu0 %v86
    %127 = vmatprep.subr.mxu0 0.0
    %128 = vmatpush1.msra.mxu0 %v85
    %129 = vmatprep.subr.mxu0 0.0
    %130 = vmatpush2.msra.mxu0 0.0
    %131 = vmatprep.subr.mxu0 0.0
    %132 = vmatpush2.msra.mxu0 0.0
    %133 = vmatprep.subr.mxu0 0.0
    %134 = vmatpush2.msra.mxu0 0.0
    %135 = vmatprep.subr.mxu0 0.0
    %136 = vmatpush2.msra.mxu0 0.0
    %137 = vmatprep.subr.mxu0 0.0
    %138 = vmatpush2.msra.mxu0 0.0
    %139 = vmatprep.subr.mxu0 0.0
    %140 = vmatpush2.msra.mxu0 0.0
    %141 = vmatprep.subr.mxu0 0.0
    %142 = vmatpush2.msra.mxu0 0.0
    %143 = vmatprep.subr.mxu0 0.0
    %144 = vmatpush2.msra.mxu0 0.0
    %145 = vmatprep.subr.mxu0 0.0
    %146 = vmatpush2.msra.mxu0 0.0
    %147 = vmatprep.subr.mxu0 0.0
    %148 = vmatpush2.msra.mxu0 0.0
    %149 = vmatprep.subr.mxu0 0.0
    %150 = vmatpush2.msra.mxu0 0.0
    %151 = vmatprep.subr.mxu0 0.0
    %152 = vmatpush2.msra.mxu0 0.0
    %153 = vmatprep.subr.mxu0 0.0
    %154 = vmatpush2.msra.mxu0 0.0
    %155 = vmatprep.subr.mxu0 0.0
    %156 = vmatpush2.msra.mxu0 0.0
    %157 = vmatprep.subr.mxu0 0.0
    %158 = vmatpush2.msra.mxu0 0.0
    %159 = vmatprep.subr.mxu0 0.0
    %160 = vmatpush2.msra.mxu0 0.0
    %161 = vmatprep.mubr.f32.mxu0 0.0
    %162 = vmatmul.mubr.f32.gmra.mxu0 %v95
    %v163 = vpop.f32.mrf.mxu0
    %v164 = vadd.f32 %v92, %v163
    %v165 = vpop.f32.mrf.mxu0
    %166 = vdwg.mxu0
    %vm167 = vcmask 523264
    %v168 = vsel %vm167, %v164, 0.0
    %169 = vadd.xlane.f32.xlu0 %v168
    %v170 = vpop.xlane.xlu0 %169
    %v171 = vrcp.pop 64.0
    %v172 = vmul.f32 %v170, %v171
    %v173 = vsub.f32 %v164, %v172
    %v174 = vmul.f32 %v173, %v173
    %v175 = vsel %vm167, %v174, 0.0
    %176 = vadd.xlane.f32.xlu0 %v175
    %v177 = vpop.xlane.xlu0 %176
    %v178 = vmul.f32 %v177, %v171
    %v179 = vadd.f32 %v178, 1e-05
    %v180 = vrsqrt.pop %v179
    %v181 = vmul.f32 %v173, %v180
    %v182 = vlaneseq
    %v183 = vshrl.u32 %v182, 7
    %v184 = vsub.s32 1, %v183
    %v185 = vrot.slane %v84, %v184
    %v186 = vmul.f32 %v181, %v185
    %v187 = vlaneseq
    %v188 = vshrl.u32 %v187, 7
    %v189 = vsub.s32 2, %v188
    %v190 = vrot.slane %v84, %v189
    %v191 = vadd.f32 %v186, %v190
    %vm192 = vcmp.gt.f32.partialorder %v191, 0.0
    %v193 = vmin.f32 %v191, 0.0
    %v194 = vmul.f32 %v193, 1.442695
    %v195 = vpow.pop %v194
    %v196 = vsub.f32 %v195, 1.0
    %v197 = vsel %vm192, %v191, %v196
    %v198 = vld [vmem:[%s3] sm:$0xff]
    %v199 = vld [vmem:[%s3 + $0x8] sm:$0xff]
    %v200 = vld [vmem:[%s3 + $0x10] sm:$0xff]
    %v201 = vld [vmem:[%s3 + $0x18] sm:$0xff]
    %v202 = vld [vmem:[%s3 + $0x20] sm:$0xff]
    %v203 = vld [vmem:[%s3 + $0x28] sm:$0xff]
    %v204 = vld [vmem:[%s3 + $0x30] sm:$0xff]
    %v205 = vld [vmem:[%s3 + $0x38] sm:$0xff]
    %v206 = vlaneseq
    %v207 = vshrl.u32 %v206, 7
    %v208 = vsub.s32 3, %v207
    %v209 = vrot.slane %v84, %v208
    %v211 = vsel %vm167, %v197, 0
    %213 = vmatprep.subr.mxu0 0.0
    %214 = vmatpush1.msra.mxu0 0.0
    %215 = vmatprep.subr.mxu0 0.0
    %216 = vmatpush1.msra.mxu0 0.0
    %217 = vmatprep.subr.mxu0 0.0
    %218 = vmatpush1.msra.mxu0 0.0
    %219 = vmatprep.subr.mxu0 0.0
    %220 = vmatpush1.msra.mxu0 0.0
    %221 = vmatprep.subr.mxu0 0.0
    %222 = vmatpush1.msra.mxu0 0.0
    %223 = vmatprep.subr.mxu0 0.0
    %224 = vmatpush1.msra.mxu0 0.0
    %225 = vmatprep.subr.mxu0 0.0
    %226 = vmatpush1.msra.mxu0 0.0
    %227 = vmatprep.subr.mxu0 0.0
    %228 = vmatpush1.msra.mxu0 0.0
    %229 = vmatprep.subr.mxu0 0.0
    %230 = vmatpush1.msra.mxu0 %v205
    %231 = vmatprep.subr.mxu0 0.0
    %232 = vmatpush1.msra.mxu0 %v204
    %233 = vmatprep.subr.mxu0 0.0
    %234 = vmatpush1.msra.mxu0 %v203
    %235 = vmatprep.subr.mxu0 0.0
    %236 = vmatpush1.msra.mxu0 %v202
    %237 = vmatprep.subr.mxu0 0.0
    %238 = vmatpush1.msra.mxu0 %v201
    %239 = vmatprep.subr.mxu0 0.0
    %240 = vmatpush1.msra.mxu0 %v200
    %241 = vmatprep.subr.mxu0 0.0
    %242 = vmatpush1.msra.mxu0 %v199
    %243 = vmatprep.subr.mxu0 0.0
    %244 = vmatpush1.msra.mxu0 %v198
    %245 = vmatprep.subr.mxu0 0.0
    %246 = vmatpush2.msra.mxu0 0.0
    %247 = vmatprep.subr.mxu0 0.0
    %248 = vmatpush2.msra.mxu0 0.0
    %249 = vmatprep.subr.mxu0 0.0
    %250 = vmatpush2.msra.mxu0 0.0
    %251 = vmatprep.subr.mxu0 0.0
    %252 = vmatpush2.msra.mxu0 0.0
    %253 = vmatprep.subr.mxu0 0.0
    %254 = vmatpush2.msra.mxu0 0.0
    %255 = vmatprep.subr.mxu0 0.0
    %256 = vmatpush2.msra.mxu0 0.0
    %257 = vmatprep.subr.mxu0 0.0
    %258 = vmatpush2.msra.mxu0 0.0
    %259 = vmatprep.subr.mxu0 0.0
    %260 = vmatpush2.msra.mxu0 0.0
    %261 = vmatprep.subr.mxu0 0.0
    %262 = vmatpush2.msra.mxu0 0.0
    %263 = vmatprep.subr.mxu0 0.0
    %264 = vmatpush2.msra.mxu0 0.0
    %265 = vmatprep.subr.mxu0 0.0
    %266 = vmatpush2.msra.mxu0 0.0
    %267 = vmatprep.subr.mxu0 0.0
    %268 = vmatpush2.msra.mxu0 0.0
    %269 = vmatprep.subr.mxu0 0.0
    %270 = vmatpush2.msra.mxu0 0.0
    %271 = vmatprep.subr.mxu0 0.0
    %272 = vmatpush2.msra.mxu0 0.0
    %273 = vmatprep.subr.mxu0 0.0
    %274 = vmatpush2.msra.mxu0 0.0
    %275 = vmatprep.subr.mxu0 0.0
    %276 = vmatpush2.msra.mxu0 0.0
    %277 = vmatprep.mubr.f32.mxu0 0.0
    %278 = vmatmul.mubr.f32.gmra.mxu0 %v211
    %v279 = vpop.f32.mrf.mxu0
    %v280 = vadd.f32 %v209, %v279
    %v281 = vpop.f32.mrf.mxu0
    %282 = vdwg.mxu0
    %v283 = vsel %vm93, %v280, 0.0
    %284 = vadd.xlane.f32.xlu0 %v283
    %v285 = vpop.xlane.xlu0 %284
    %v286 = vrcp.pop 32.0
    %v287 = vmul.f32 %v285, %v286
    %v288 = vsub.f32 %v280, %v287
    %v289 = vmul.f32 %v288, %v288
    %v290 = vsel %vm93, %v289, 0.0
    %291 = vadd.xlane.f32.xlu0 %v290
    %v292 = vpop.xlane.xlu0 %291
    %v293 = vmul.f32 %v292, %v286
    %v294 = vadd.f32 %v293, 1e-05
    %v295 = vrsqrt.pop %v294
    %v296 = vmul.f32 %v288, %v295
    %v297 = vlaneseq
    %v298 = vshrl.u32 %v297, 7
    %v299 = vsub.s32 4, %v298
    %v300 = vrot.slane %v84, %v299
    %v301 = vmul.f32 %v296, %v300
    %v302 = vlaneseq
    %v303 = vshrl.u32 %v302, 7
    %v304 = vsub.s32 5, %v303
    %v305 = vrot.slane %v84, %v304
    %v306 = vadd.f32 %v301, %v305
    %vm307 = vcmp.gt.f32.partialorder %v306, 0.0
    %v308 = vmin.f32 %v306, 0.0
    %v309 = vmul.f32 %v308, 1.442695
    %v310 = vpow.pop %v309
    %v311 = vsub.f32 %v310, 1.0
    %v312 = vsel %vm307, %v306, %v311
    %v313 = vld [vmem:[%s4] sm:$0xff]
    %v314 = vld [vmem:[%s4 + $0x8] sm:$0xff]
    %v315 = vld [vmem:[%s4 + $0x10] sm:$0xff]
    %v316 = vld [vmem:[%s4 + $0x18] sm:$0xff]
    %v317 = vld [vmem:[#allocation7] sm:$0xff]
    %v318 = vld [vmem:[#allocation7 + $0x8] sm:$0xff]
    %v319 = vld [vmem:[#allocation5] sm:$0xff]
    %vm320 = vcmask 130048
    %v322 = vsel %vm320, %v319, 0
    %324 = vmatprep.subr.mxu0 0.0
    %325 = vmatpush1.msra.mxu0 0.0
    %326 = vmatprep.subr.mxu0 0.0
    %327 = vmatpush1.msra.mxu0 0.0
    %328 = vmatprep.subr.mxu0 0.0
    %329 = vmatpush1.msra.mxu0 0.0
    %330 = vmatprep.subr.mxu0 0.0
    %331 = vmatpush1.msra.mxu0 0.0
    %332 = vmatprep.subr.mxu0 0.0
    %333 = vmatpush1.msra.mxu0 0.0
    %334 = vmatprep.subr.mxu0 0.0
    %335 = vmatpush1.msra.mxu0 0.0
    %336 = vmatprep.subr.mxu0 0.0
    %337 = vmatpush1.msra.mxu0 0.0
    %338 = vmatprep.subr.mxu0 0.0
    %339 = vmatpush1.msra.mxu0 0.0
    %340 = vmatprep.subr.mxu0 0.0
    %341 = vmatpush1.msra.mxu0 0.0
    %342 = vmatprep.subr.mxu0 0.0
    %343 = vmatpush1.msra.mxu0 0.0
    %344 = vmatprep.subr.mxu0 0.0
    %345 = vmatpush1.msra.mxu0 0.0
    %346 = vmatprep.subr.mxu0 0.0
    %347 = vmatpush1.msra.mxu0 0.0
    %348 = vmatprep.subr.mxu0 0.0
    %349 = vmatpush1.msra.mxu0 0.0
    %350 = vmatprep.subr.mxu0 0.0
    %351 = vmatpush1.msra.mxu0 0.0
    %352 = vmatprep.subr.mxu0 0.0
    %353 = vmatpush1.msra.mxu0 %v318
    %354 = vmatprep.subr.mxu0 0.0
    %355 = vmatpush1.msra.mxu0 %v317
    %356 = vmatprep.subr.mxu0 0.0
    %357 = vmatpush2.msra.mxu0 0.0
    %358 = vmatprep.subr.mxu0 0.0
    %359 = vmatpush2.msra.mxu0 0.0
    %360 = vmatprep.subr.mxu0 0.0
    %361 = vmatpush2.msra.mxu0 0.0
    %362 = vmatprep.subr.mxu0 0.0
    %363 = vmatpush2.msra.mxu0 0.0
    %364 = vmatprep.subr.mxu0 0.0
    %365 = vmatpush2.msra.mxu0 0.0
    %366 = vmatprep.subr.mxu0 0.0
    %367 = vmatpush2.msra.mxu0 0.0
    %368 = vmatprep.subr.mxu0 0.0
    %369 = vmatpush2.msra.mxu0 0.0
    %370 = vmatprep.subr.mxu0 0.0
    %371 = vmatpush2.msra.mxu0 0.0
    %372 = vmatprep.subr.mxu0 0.0
    %373 = vmatpush2.msra.mxu0 0.0
    %374 = vmatprep.subr.mxu0 0.0
    %375 = vmatpush2.msra.mxu0 0.0
    %376 = vmatprep.subr.mxu0 0.0
    %377 = vmatpush2.msra.mxu0 0.0
    %378 = vmatprep.subr.mxu0 0.0
    %379 = vmatpush2.msra.mxu0 0.0
    %380 = vmatprep.subr.mxu0 0.0
    %381 = vmatpush2.msra.mxu0 0.0
    %382 = vmatprep.subr.mxu0 0.0
    %383 = vmatpush2.msra.mxu0 0.0
    %384 = vmatprep.subr.mxu0 0.0
    %385 = vmatpush2.msra.mxu0 0.0
    %386 = vmatprep.subr.mxu0 0.0
    %387 = vmatpush2.msra.mxu0 0.0
    %388 = vmatprep.mubr.f32.mxu0 0.0
    %389 = vmatmul.mubr.f32.gmra.mxu0 %v322
    %v390 = vpop.f32.mrf.mxu0
    %v391 = vadd.f32 0.0, %v390
    %v392 = vpop.f32.mrf.mxu0
    %393 = vdwg.mxu0
    %v395 = vsel %vm93, %v312, 0
    %397 = vmatprep.subr.mxu0 0.0
    %398 = vmatpush1.msra.mxu0 0.0
    %399 = vmatprep.subr.mxu0 0.0
    %400 = vmatpush1.msra.mxu0 0.0
    %401 = vmatprep.subr.mxu0 0.0
    %402 = vmatpush1.msra.mxu0 0.0
    %403 = vmatprep.subr.mxu0 0.0
    %404 = vmatpush1.msra.mxu0 0.0
    %405 = vmatprep.subr.mxu0 0.0
    %406 = vmatpush1.msra.mxu0 0.0
    %407 = vmatprep.subr.mxu0 0.0
    %408 = vmatpush1.msra.mxu0 0.0
    %409 = vmatprep.subr.mxu0 0.0
    %410 = vmatpush1.msra.mxu0 0.0
    %411 = vmatprep.subr.mxu0 0.0
    %412 = vmatpush1.msra.mxu0 0.0
    %413 = vmatprep.subr.mxu0 0.0
    %414 = vmatpush1.msra.mxu0 0.0
    %415 = vmatprep.subr.mxu0 0.0
    %416 = vmatpush1.msra.mxu0 0.0
    %417 = vmatprep.subr.mxu0 0.0
    %418 = vmatpush1.msra.mxu0 0.0
    %419 = vmatprep.subr.mxu0 0.0
    %420 = vmatpush1.msra.mxu0 0.0
    %421 = vmatprep.subr.mxu0 0.0
    %422 = vmatpush1.msra.mxu0 %v316
    %423 = vmatprep.subr.mxu0 0.0
    %424 = vmatpush1.msra.mxu0 %v315
    %425 = vmatprep.subr.mxu0 0.0
    %426 = vmatpush1.msra.mxu0 %v314
    %427 = vmatprep.subr.mxu0 0.0
    %428 = vmatpush1.msra.mxu0 %v313
    %429 = vmatprep.subr.mxu0 0.0
    %430 = vmatpush2.msra.mxu0 0.0
    %431 = vmatprep.subr.mxu0 0.0
    %432 = vmatpush2.msra.mxu0 0.0
    %433 = vmatprep.subr.mxu0 0.0
    %434 = vmatpush2.msra.mxu0 0.0
    %435 = vmatprep.subr.mxu0 0.0
    %436 = vmatpush2.msra.mxu0 0.0
    %437 = vmatprep.subr.mxu0 0.0
    %438 = vmatpush2.msra.mxu0 0.0
    %439 = vmatprep.subr.mxu0 0.0
    %440 = vmatpush2.msra.mxu0 0.0
    %441 = vmatprep.subr.mxu0 0.0
    %442 = vmatpush2.msra.mxu0 0.0
    %443 = vmatprep.subr.mxu0 0.0
    %444 = vmatpush2.msra.mxu0 0.0
    %445 = vmatprep.subr.mxu0 0.0
    %446 = vmatpush2.msra.mxu0 0.0
    %447 = vmatprep.subr.mxu0 0.0
    %448 = vmatpush2.msra.mxu0 0.0
    %449 = vmatprep.subr.mxu0 0.0
    %450 = vmatpush2.msra.mxu0 0.0
    %451 = vmatprep.subr.mxu0 0.0
    %452 = vmatpush2.msra.mxu0 0.0
    %453 = vmatprep.subr.mxu0 0.0
    %454 = vmatpush2.msra.mxu0 0.0
    %455 = vmatprep.subr.mxu0 0.0
    %456 = vmatpush2.msra.mxu0 0.0
    %457 = vmatprep.subr.mxu0 0.0
    %458 = vmatpush2.msra.mxu0 0.0
    %459 = vmatprep.subr.mxu0 0.0
    %460 = vmatpush2.msra.mxu0 0.0
    %461 = vmatprep.mubr.f32.mxu0 0.0
    %462 = vmatmul.mubr.f32.gmra.mxu0 %v395
    %v463 = vpop.f32.mrf.mxu0
    %v464 = vadd.f32 %v391, %v463
    %v465 = vpop.f32.mrf.mxu0
    %466 = vdwg.mxu0
    %v467 = vlaneseq
    %v468 = vshrl.u32 %v467, 7
    %v469 = vsub.s32 6, %v468
    %v470 = vrot.slane %v84, %v469
    %v471 = vadd.f32 %v464, %v470
    %vm472 = vcmp.gt.f32.partialorder %v471, 0.0
    %v473 = vmin.f32 %v471, 0.0
    %v474 = vmul.f32 %v473, 1.442695
    %v475 = vpow.pop %v474
    %v476 = vsub.f32 %v475, 1.0
    %v477 = vsel %vm472, %v471, %v476
    %v478 = vld [vmem:[%s6] sm:$0xff]
    %v479 = vld [vmem:[%s6 + $0x8] sm:$0xff]
    %v480 = vld [vmem:[%s6 + $0x10] sm:$0xff]
    %v481 = vld [vmem:[%s6 + $0x18] sm:$0xff]
    %v482 = vlaneseq
    %v483 = vshrl.u32 %v482, 7
    %v484 = vsub.s32 7, %v483
    %v485 = vrot.slane %v84, %v484
    %v487 = vsel %vm93, %v477, 0
    %489 = vmatprep.subr.mxu0 0.0
    %490 = vmatpush1.msra.mxu0 0.0
    %491 = vmatprep.subr.mxu0 0.0
    %492 = vmatpush1.msra.mxu0 0.0
    %493 = vmatprep.subr.mxu0 0.0
    %494 = vmatpush1.msra.mxu0 0.0
    %495 = vmatprep.subr.mxu0 0.0
    %496 = vmatpush1.msra.mxu0 0.0
    %497 = vmatprep.subr.mxu0 0.0
    %498 = vmatpush1.msra.mxu0 0.0
    %499 = vmatprep.subr.mxu0 0.0
    %500 = vmatpush1.msra.mxu0 0.0
    %501 = vmatprep.subr.mxu0 0.0
    %502 = vmatpush1.msra.mxu0 0.0
    %503 = vmatprep.subr.mxu0 0.0
    %504 = vmatpush1.msra.mxu0 0.0
    %505 = vmatprep.subr.mxu0 0.0
    %506 = vmatpush1.msra.mxu0 0.0
    %507 = vmatprep.subr.mxu0 0.0
    %508 = vmatpush1.msra.mxu0 0.0
    %509 = vmatprep.subr.mxu0 0.0
    %510 = vmatpush1.msra.mxu0 0.0
    %511 = vmatprep.subr.mxu0 0.0
    %512 = vmatpush1.msra.mxu0 0.0
    %513 = vmatprep.subr.mxu0 0.0
    %514 = vmatpush1.msra.mxu0 %v481
    %515 = vmatprep.subr.mxu0 0.0
    %516 = vmatpush1.msra.mxu0 %v480
    %517 = vmatprep.subr.mxu0 0.0
    %518 = vmatpush1.msra.mxu0 %v479
    %519 = vmatprep.subr.mxu0 0.0
    %520 = vmatpush1.msra.mxu0 %v478
    %521 = vmatprep.subr.mxu0 0.0
    %522 = vmatpush2.msra.mxu0 0.0
    %523 = vmatprep.subr.mxu0 0.0
    %524 = vmatpush2.msra.mxu0 0.0
    %525 = vmatprep.subr.mxu0 0.0
    %526 = vmatpush2.msra.mxu0 0.0
    %527 = vmatprep.subr.mxu0 0.0
    %528 = vmatpush2.msra.mxu0 0.0
    %529 = vmatprep.subr.mxu0 0.0
    %530 = vmatpush2.msra.mxu0 0.0
    %531 = vmatprep.subr.mxu0 0.0
    %532 = vmatpush2.msra.mxu0 0.0
    %533 = vmatprep.subr.mxu0 0.0
    %534 = vmatpush2.msra.mxu0 0.0
    %535 = vmatprep.subr.mxu0 0.0
    %536 = vmatpush2.msra.mxu0 0.0
    %537 = vmatprep.subr.mxu0 0.0
    %538 = vmatpush2.msra.mxu0 0.0
    %539 = vmatprep.subr.mxu0 0.0
    %540 = vmatpush2.msra.mxu0 0.0
    %541 = vmatprep.subr.mxu0 0.0
    %542 = vmatpush2.msra.mxu0 0.0
    %543 = vmatprep.subr.mxu0 0.0
    %544 = vmatpush2.msra.mxu0 0.0
    %545 = vmatprep.subr.mxu0 0.0
    %546 = vmatpush2.msra.mxu0 0.0
    %547 = vmatprep.subr.mxu0 0.0
    %548 = vmatpush2.msra.mxu0 0.0
    %549 = vmatprep.subr.mxu0 0.0
    %550 = vmatpush2.msra.mxu0 0.0
    %551 = vmatprep.subr.mxu0 0.0
    %552 = vmatpush2.msra.mxu0 0.0
    %553 = vmatprep.mubr.f32.mxu0 0.0
    %554 = vmatmul.mubr.f32.gmra.mxu0 %v487
    %v555 = vpop.f32.mrf.mxu0
    %v556 = vadd.f32 %v485, %v555
    %v557 = vpop.f32.mrf.mxu0
    %558 = vdwg.mxu0
    %559 = vst [vmem:[#allocation10] sm:$0xff] %v556
    %s560 = scalar_lea.vmem [#allocation8], 8
    %v561 = vld [vmem:[%s560] sm:$0xff]
    %s562 = scalar_lea.vmem %s2, 32
    %v563 = vld [vmem:[%s562] sm:$0xff]
    %v564 = vld [vmem:[%s562 + $0x8] sm:$0xff]
    %v565 = vld [vmem:[%s562 + $0x10] sm:$0xff]
    %v566 = vld [vmem:[%s562 + $0x18] sm:$0xff]
    %v567 = vlaneseq
    %v568 = vshrl.u32 %v567, 7
    %v569 = vsub.s32 0, %v568
    %v570 = vrot.slane %v561, %v569
    %571 = vmatprep.subr.mxu0 0.0
    %572 = vmatpush1.msra.mxu0 0.0
    %573 = vmatprep.subr.mxu0 0.0
    %574 = vmatpush1.msra.mxu0 0.0
    %575 = vmatprep.subr.mxu0 0.0
    %576 = vmatpush1.msra.mxu0 0.0
    %577 = vmatprep.subr.mxu0 0.0
    %578 = vmatpush1.msra.mxu0 0.0
    %579 = vmatprep.subr.mxu0 0.0
    %580 = vmatpush1.msra.mxu0 0.0
    %581 = vmatprep.subr.mxu0 0.0
    %582 = vmatpush1.msra.mxu0 0.0
    %583 = vmatprep.subr.mxu0 0.0
    %584 = vmatpush1.msra.mxu0 0.0
    %585 = vmatprep.subr.mxu0 0.0
    %586 = vmatpush1.msra.mxu0 0.0
    %587 = vmatprep.subr.mxu0 0.0
    %588 = vmatpush1.msra.mxu0 0.0
    %589 = vmatprep.subr.mxu0 0.0
    %590 = vmatpush1.msra.mxu0 0.0
    %591 = vmatprep.subr.mxu0 0.0
    %592 = vmatpush1.msra.mxu0 0.0
    %593 = vmatprep.subr.mxu0 0.0
    %594 = vmatpush1.msra.mxu0 0.0
    %595 = vmatprep.subr.mxu0 0.0
    %596 = vmatpush1.msra.mxu0 %v566
    %597 = vmatprep.subr.mxu0 0.0
    %598 = vmatpush1.msra.mxu0 %v565
    %599 = vmatprep.subr.mxu0 0.0
    %600 = vmatpush1.msra.mxu0 %v564
    %601 = vmatprep.subr.mxu0 0.0
    %602 = vmatpush1.msra.mxu0 %v563
    %603 = vmatprep.subr.mxu0 0.0
    %604 = vmatpush2.msra.mxu0 0.0
    %605 = vmatprep.subr.mxu0 0.0
    %606 = vmatpush2.msra.mxu0 0.0
    %607 = vmatprep.subr.mxu0 0.0
    %608 = vmatpush2.msra.mxu0 0.0
    %609 = vmatprep.subr.mxu0 0.0
    %610 = vmatpush2.msra.mxu0 0.0
    %611 = vmatprep.subr.mxu0 0.0
    %612 = vmatpush2.msra.mxu0 0.0
    %613 = vmatprep.subr.mxu0 0.0
    %614 = vmatpush2.msra.mxu0 0.0
    %615 = vmatprep.subr.mxu0 0.0
    %616 = vmatpush2.msra.mxu0 0.0
    %617 = vmatprep.subr.mxu0 0.0
    %618 = vmatpush2.msra.mxu0 0.0
    %619 = vmatprep.subr.mxu0 0.0
    %620 = vmatpush2.msra.mxu0 0.0
    %621 = vmatprep.subr.mxu0 0.0
    %622 = vmatpush2.msra.mxu0 0.0
    %623 = vmatprep.subr.mxu0 0.0
    %624 = vmatpush2.msra.mxu0 0.0
    %625 = vmatprep.subr.mxu0 0.0
    %626 = vmatpush2.msra.mxu0 0.0
    %627 = vmatprep.subr.mxu0 0.0
    %628 = vmatpush2.msra.mxu0 0.0
    %629 = vmatprep.subr.mxu0 0.0
    %630 = vmatpush2.msra.mxu0 0.0
    %631 = vmatprep.subr.mxu0 0.0
    %632 = vmatpush2.msra.mxu0 0.0
    %633 = vmatprep.subr.mxu0 0.0
    %634 = vmatpush2.msra.mxu0 0.0
    %635 = vmatprep.mubr.f32.mxu0 0.0
    %636 = vmatmul.mubr.f32.gmra.mxu0 %v95
    %v637 = vpop.f32.mrf.mxu0
    %v638 = vadd.f32 %v570, %v637
    %v639 = vpop.f32.mrf.mxu0
    %640 = vdwg.mxu0
    %v641 = vsel %vm167, %v638, 0.0
    %642 = vadd.xlane.f32.xlu0 %v641
    %v643 = vpop.xlane.xlu0 %642
    %v644 = vmul.f32 %v643, %v171
    %v645 = vsub.f32 %v638, %v644
    %v646 = vmul.f32 %v645, %v645
    %v647 = vsel %vm167, %v646, 0.0
    %648 = vadd.xlane.f32.xlu0 %v647
    %v649 = vpop.xlane.xlu0 %648
    %v650 = vmul.f32 %v649, %v171
    %v651 = vadd.f32 %v650, 1e-05
    %v652 = vrsqrt.pop %v651
    %v653 = vmul.f32 %v645, %v652
    %v654 = vlaneseq
    %v655 = vshrl.u32 %v654, 7
    %v656 = vsub.s32 1, %v655
    %v657 = vrot.slane %v561, %v656
    %v658 = vmul.f32 %v653, %v657
    %v659 = vlaneseq
    %v660 = vshrl.u32 %v659, 7
    %v661 = vsub.s32 2, %v660
    %v662 = vrot.slane %v561, %v661
    %v663 = vadd.f32 %v658, %v662
    %vm664 = vcmp.gt.f32.partialorder %v663, 0.0
    %v665 = vmin.f32 %v663, 0.0
    %v666 = vmul.f32 %v665, 1.442695
    %v667 = vpow.pop %v666
    %v668 = vsub.f32 %v667, 1.0
    %v669 = vsel %vm664, %v663, %v668
    %s670 = scalar_lea.vmem %s3, 64
    %v671 = vld [vmem:[%s670] sm:$0xff]
    %v672 = vld [vmem:[%s670 + $0x8] sm:$0xff]
    %v673 = vld [vmem:[%s670 + $0x10] sm:$0xff]
    %v674 = vld [vmem:[%s670 + $0x18] sm:$0xff]
    %v675 = vld [vmem:[%s670 + $0x20] sm:$0xff]
    %v676 = vld [vmem:[%s670 + $0x28] sm:$0xff]
    %v677 = vld [vmem:[%s670 + $0x30] sm:$0xff]
    %v678 = vld [vmem:[%s670 + $0x38] sm:$0xff]
    %v679 = vlaneseq
    %v680 = vshrl.u32 %v679, 7
    %v681 = vsub.s32 3, %v680
    %v682 = vrot.slane %v561, %v681
    %v684 = vsel %vm167, %v669, 0
    %686 = vmatprep.subr.mxu0 0.0
    %687 = vmatpush1.msra.mxu0 0.0
    %688 = vmatprep.subr.mxu0 0.0
    %689 = vmatpush1.msra.mxu0 0.0
    %690 = vmatprep.subr.mxu0 0.0
    %691 = vmatpush1.msra.mxu0 0.0
    %692 = vmatprep.subr.mxu0 0.0
    %693 = vmatpush1.msra.mxu0 0.0
    %694 = vmatprep.subr.mxu0 0.0
    %695 = vmatpush1.msra.mxu0 0.0
    %696 = vmatprep.subr.mxu0 0.0
    %697 = vmatpush1.msra.mxu0 0.0
    %698 = vmatprep.subr.mxu0 0.0
    %699 = vmatpush1.msra.mxu0 0.0
    %700 = vmatprep.subr.mxu0 0.0
    %701 = vmatpush1.msra.mxu0 0.0
    %702 = vmatprep.subr.mxu0 0.0
    %703 = vmatpush1.msra.mxu0 %v678
    %704 = vmatprep.subr.mxu0 0.0
    %705 = vmatpush1.msra.mxu0 %v677
    %706 = vmatprep.subr.mxu0 0.0
    %707 = vmatpush1.msra.mxu0 %v676
    %708 = vmatprep.subr.mxu0 0.0
    %709 = vmatpush1.msra.mxu0 %v675
    %710 = vmatprep.subr.mxu0 0.0
    %711 = vmatpush1.msra.mxu0 %v674
    %712 = vmatprep.subr.mxu0 0.0
    %713 = vmatpush1.msra.mxu0 %v673
    %714 = vmatprep.subr.mxu0 0.0
    %715 = vmatpush1.msra.mxu0 %v672
    %716 = vmatprep.subr.mxu0 0.0
    %717 = vmatpush1.msra.mxu0 %v671
    %718 = vmatprep.subr.mxu0 0.0
    %719 = vmatpush2.msra.mxu0 0.0
    %720 = vmatprep.subr.mxu0 0.0
    %721 = vmatpush2.msra.mxu0 0.0
    %722 = vmatprep.subr.mxu0 0.0
    %723 = vmatpush2.msra.mxu0 0.0
    %724 = vmatprep.subr.mxu0 0.0
    %725 = vmatpush2.msra.mxu0 0.0
    %726 = vmatprep.subr.mxu0 0.0
    %727 = vmatpush2.msra.mxu0 0.0
    %728 = vmatprep.subr.mxu0 0.0
    %729 = vmatpush2.msra.mxu0 0.0
    %730 = vmatprep.subr.mxu0 0.0
    %731 = vmatpush2.msra.mxu0 0.0
    %732 = vmatprep.subr.mxu0 0.0
    %733 = vmatpush2.msra.mxu0 0.0
    %734 = vmatprep.subr.mxu0 0.0
    %735 = vmatpush2.msra.mxu0 0.0
    %736 = vmatprep.subr.mxu0 0.0
    %737 = vmatpush2.msra.mxu0 0.0
    %738 = vmatprep.subr.mxu0 0.0
    %739 = vmatpush2.msra.mxu0 0.0
    %740 = vmatprep.subr.mxu0 0.0
    %741 = vmatpush2.msra.mxu0 0.0
    %742 = vmatprep.subr.mxu0 0.0
    %743 = vmatpush2.msra.mxu0 0.0
    %744 = vmatprep.subr.mxu0 0.0
    %745 = vmatpush2.msra.mxu0 0.0
    %746 = vmatprep.subr.mxu0 0.0
    %747 = vmatpush2.msra.mxu0 0.0
    %748 = vmatprep.subr.mxu0 0.0
    %749 = vmatpush2.msra.mxu0 0.0
    %750 = vmatprep.mubr.f32.mxu0 0.0
    %751 = vmatmul.mubr.f32.gmra.mxu0 %v684
    %v752 = vpop.f32.mrf.mxu0
    %v753 = vadd.f32 %v682, %v752
    %v754 = vpop.f32.mrf.mxu0
    %755 = vdwg.mxu0
    %v756 = vsel %vm93, %v753, 0.0
    %757 = vadd.xlane.f32.xlu0 %v756
    %v758 = vpop.xlane.xlu0 %757
    %v759 = vmul.f32 %v758, %v286
    %v760 = vsub.f32 %v753, %v759
    %v761 = vmul.f32 %v760, %v760
    %v762 = vsel %vm93, %v761, 0.0
    %763 = vadd.xlane.f32.xlu0 %v762
    %v764 = vpop.xlane.xlu0 %763
    %v765 = vmul.f32 %v764, %v286
    %v766 = vadd.f32 %v765, 1e-05
    %v767 = vrsqrt.pop %v766
    %v768 = vmul.f32 %v760, %v767
    %v769 = vlaneseq
    %v770 = vshrl.u32 %v769, 7
    %v771 = vsub.s32 4, %v770
    %v772 = vrot.slane %v561, %v771
    %v773 = vmul.f32 %v768, %v772
    %v774 = vlaneseq
    %v775 = vshrl.u32 %v774, 7
    %v776 = vsub.s32 5, %v775
    %v777 = vrot.slane %v561, %v776
    %v778 = vadd.f32 %v773, %v777
    %vm779 = vcmp.gt.f32.partialorder %v778, 0.0
    %v780 = vmin.f32 %v778, 0.0
    %v781 = vmul.f32 %v780, 1.442695
    %v782 = vpow.pop %v781
    %v783 = vsub.f32 %v782, 1.0
    %v784 = vsel %vm779, %v778, %v783
    %s785 = scalar_lea.vmem %s4, 32
    %v786 = vld [vmem:[%s785] sm:$0xff]
    %v787 = vld [vmem:[%s785 + $0x8] sm:$0xff]
    %v788 = vld [vmem:[%s785 + $0x10] sm:$0xff]
    %v789 = vld [vmem:[%s785 + $0x18] sm:$0xff]
    %s790 = scalar_lea.vmem [#allocation7], 16
    %v791 = vld [vmem:[%s790] sm:$0xff]
    %v792 = vld [vmem:[%s790 + $0x8] sm:$0xff]
    %s793 = scalar_lea.vmem [#allocation5], 8
    %v794 = vld [vmem:[%s793] sm:$0xff]
    %v796 = vsel %vm320, %v794, 0
    %798 = vmatprep.subr.mxu0 0.0
    %799 = vmatpush1.msra.mxu0 0.0
    %800 = vmatprep.subr.mxu0 0.0
    %801 = vmatpush1.msra.mxu0 0.0
    %802 = vmatprep.subr.mxu0 0.0
    %803 = vmatpush1.msra.mxu0 0.0
    %804 = vmatprep.subr.mxu0 0.0
    %805 = vmatpush1.msra.mxu0 0.0
    %806 = vmatprep.subr.mxu0 0.0
    %807 = vmatpush1.msra.mxu0 0.0
    %808 = vmatprep.subr.mxu0 0.0
    %809 = vmatpush1.msra.mxu0 0.0
    %810 = vmatprep.subr.mxu0 0.0
    %811 = vmatpush1.msra.mxu0 0.0
    %812 = vmatprep.subr.mxu0 0.0
    %813 = vmatpush1.msra.mxu0 0.0
    %814 = vmatprep.subr.mxu0 0.0
    %815 = vmatpush1.msra.mxu0 0.0
    %816 = vmatprep.subr.mxu0 0.0
    %817 = vmatpush1.msra.mxu0 0.0
    %818 = vmatprep.subr.mxu0 0.0
    %819 = vmatpush1.msra.mxu0 0.0
    %820 = vmatprep.subr.mxu0 0.0
    %821 = vmatpush1.msra.mxu0 0.0
    %822 = vmatprep.subr.mxu0 0.0
    %823 = vmatpush1.msra.mxu0 0.0
    %824 = vmatprep.subr.mxu0 0.0
    %825 = vmatpush1.msra.mxu0 0.0
    %826 = vmatprep.subr.mxu0 0.0
    %827 = vmatpush1.msra.mxu0 %v792
    %828 = vmatprep.subr.mxu0 0.0
    %829 = vmatpush1.msra.mxu0 %v791
    %830 = vmatprep.subr.mxu0 0.0
    %831 = vmatpush2.msra.mxu0 0.0
    %832 = vmatprep.subr.mxu0 0.0
    %833 = vmatpush2.msra.mxu0 0.0
    %834 = vmatprep.subr.mxu0 0.0
    %835 = vmatpush2.msra.mxu0 0.0
    %836 = vmatprep.subr.mxu0 0.0
    %837 = vmatpush2.msra.mxu0 0.0
    %838 = vmatprep.subr.mxu0 0.0
    %839 = vmatpush2.msra.mxu0 0.0
    %840 = vmatprep.subr.mxu0 0.0
    %841 = vmatpush2.msra.mxu0 0.0
    %842 = vmatprep.subr.mxu0 0.0
    %843 = vmatpush2.msra.mxu0 0.0
    %844 = vmatprep.subr.mxu0 0.0
    %845 = vmatpush2.msra.mxu0 0.0
    %846 = vmatprep.subr.mxu0 0.0
    %847 = vmatpush2.msra.mxu0 0.0
    %848 = vmatprep.subr.mxu0 0.0
    %849 = vmatpush2.msra.mxu0 0.0
    %850 = vmatprep.subr.mxu0 0.0
    %851 = vmatpush2.msra.mxu0 0.0
    %852 = vmatprep.subr.mxu0 0.0
    %853 = vmatpush2.msra.mxu0 0.0
    %854 = vmatprep.subr.mxu0 0.0
    %855 = vmatpush2.msra.mxu0 0.0
    %856 = vmatprep.subr.mxu0 0.0
    %857 = vmatpush2.msra.mxu0 0.0
    %858 = vmatprep.subr.mxu0 0.0
    %859 = vmatpush2.msra.mxu0 0.0
    %860 = vmatprep.subr.mxu0 0.0
    %861 = vmatpush2.msra.mxu0 0.0
    %862 = vmatprep.mubr.f32.mxu0 0.0
    %863 = vmatmul.mubr.f32.gmra.mxu0 %v796
    %v864 = vpop.f32.mrf.mxu0
    %v865 = vadd.f32 0.0, %v864
    %v866 = vpop.f32.mrf.mxu0
    %867 = vdwg.mxu0
    %v869 = vsel %vm93, %v784, 0
    %871 = vmatprep.subr.mxu0 0.0
    %872 = vmatpush1.msra.mxu0 0.0
    %873 = vmatprep.subr.mxu0 0.0
    %874 = vmatpush1.msra.mxu0 0.0
    %875 = vmatprep.subr.mxu0 0.0
    %876 = vmatpush1.msra.mxu0 0.0
    %877 = vmatprep.subr.mxu0 0.0
    %878 = vmatpush1.msra.mxu0 0.0
    %879 = vmatprep.subr.mxu0 0.0
    %880 = vmatpush1.msra.mxu0 0.0
    %881 = vmatprep.subr.mxu0 0.0
    %882 = vmatpush1.msra.mxu0 0.0
    %883 = vmatprep.subr.mxu0 0.0
    %884 = vmatpush1.msra.mxu0 0.0
    %885 = vmatprep.subr.mxu0 0.0
    %886 = vmatpush1.msra.mxu0 0.0
    %887 = vmatprep.subr.mxu0 0.0
    %888 = vmatpush1.msra.mxu0 0.0
    %889 = vmatprep.subr.mxu0 0.0
    %890 = vmatpush1.msra.mxu0 0.0
    %891 = vmatprep.subr.mxu0 0.0
    %892 = vmatpush1.msra.mxu0 0.0
    %893 = vmatprep.subr.mxu0 0.0
    %894 = vmatpush1.msra.mxu0 0.0
    %895 = vmatprep.subr.mxu0 0.0
    %896 = vmatpush1.msra.mxu0 %v789
    %897 = vmatprep.subr.mxu0 0.0
    %898 = vmatpush1.msra.mxu0 %v788
    %899 = vmatprep.subr.mxu0 0.0
    %900 = vmatpush1.msra.mxu0 %v787
    %901 = vmatprep.subr.mxu0 0.0
    %902 = vmatpush1.msra.mxu0 %v786
    %903 = vmatprep.subr.mxu0 0.0
    %904 = vmatpush2.msra.mxu0 0.0
    %905 = vmatprep.subr.mxu0 0.0
    %906 = vmatpush2.msra.mxu0 0.0
    %907 = vmatprep.subr.mxu0 0.0
    %908 = vmatpush2.msra.mxu0 0.0
    %909 = vmatprep.subr.mxu0 0.0
    %910 = vmatpush2.msra.mxu0 0.0
    %911 = vmatprep.subr.mxu0 0.0
    %912 = vmatpush2.msra.mxu0 0.0
    %913 = vmatprep.subr.mxu0 0.0
    %914 = vmatpush2.msra.mxu0 0.0
    %915 = vmatprep.subr.mxu0 0.0
    %916 = vmatpush2.msra.mxu0 0.0
    %917 = vmatprep.subr.mxu0 0.0
    %918 = vmatpush2.msra.mxu0 0.0
    %919 = vmatprep.subr.mxu0 0.0
    %920 = vmatpush2.msra.mxu0 0.0
    %921 = vmatprep.subr.mxu0 0.0
    %922 = vmatpush2.msra.mxu0 0.0
    %923 = vmatprep.subr.mxu0 0.0
    %924 = vmatpush2.msra.mxu0 0.0
    %925 = vmatprep.subr.mxu0 0.0
    %926 = vmatpush2.msra.mxu0 0.0
    %927 = vmatprep.subr.mxu0 0.0
    %928 = vmatpush2.msra.mxu0 0.0
    %929 = vmatprep.subr.mxu0 0.0
    %930 = vmatpush2.msra.mxu0 0.0
    %931 = vmatprep.subr.mxu0 0.0
    %932 = vmatpush2.msra.mxu0 0.0
    %933 = vmatprep.subr.mxu0 0.0
    %934 = vmatpush2.msra.mxu0 0.0
    %935 = vmatprep.mubr.f32.mxu0 0.0
    %936 = vmatmul.mubr.f32.gmra.mxu0 %v869
    %v937 = vpop.f32.mrf.mxu0
    %v938 = vadd.f32 %v865, %v937
    %v939 = vpop.f32.mrf.mxu0
    %940 = vdwg.mxu0
    %v941 = vlaneseq
    %v942 = vshrl.u32 %v941, 7
    %v943 = vsub.s32 6, %v942
    %v944 = vrot.slane %v561, %v943
    %v945 = vadd.f32 %v938, %v944
    %vm946 = vcmp.gt.f32.partialorder %v945, 0.0
    %v947 = vmin.f32 %v945, 0.0
    %v948 = vmul.f32 %v947, 1.442695
    %v949 = vpow.pop %v948
    %v950 = vsub.f32 %v949, 1.0
    %v951 = vsel %vm946, %v945, %v950
    %s952 = scalar_lea.vmem %s6, 32
    %v953 = vld [vmem:[%s952] sm:$0xff]
    %v954 = vld [vmem:[%s952 + $0x8] sm:$0xff]
    %v955 = vld [vmem:[%s952 + $0x10] sm:$0xff]
    %v956 = vld [vmem:[%s952 + $0x18] sm:$0xff]
    %v957 = vlaneseq
    %v958 = vshrl.u32 %v957, 7
    %v959 = vsub.s32 7, %v958
    %v960 = vrot.slane %v561, %v959
    %v962 = vsel %vm93, %v951, 0
    %964 = vmatprep.subr.mxu0 0.0
    %965 = vmatpush1.msra.mxu0 0.0
    %966 = vmatprep.subr.mxu0 0.0
    %967 = vmatpush1.msra.mxu0 0.0
    %968 = vmatprep.subr.mxu0 0.0
    %969 = vmatpush1.msra.mxu0 0.0
    %970 = vmatprep.subr.mxu0 0.0
    %971 = vmatpush1.msra.mxu0 0.0
    %972 = vmatprep.subr.mxu0 0.0
    %973 = vmatpush1.msra.mxu0 0.0
    %974 = vmatprep.subr.mxu0 0.0
    %975 = vmatpush1.msra.mxu0 0.0
    %976 = vmatprep.subr.mxu0 0.0
    %977 = vmatpush1.msra.mxu0 0.0
    %978 = vmatprep.subr.mxu0 0.0
    %979 = vmatpush1.msra.mxu0 0.0
    %980 = vmatprep.subr.mxu0 0.0
    %981 = vmatpush1.msra.mxu0 0.0
    %982 = vmatprep.subr.mxu0 0.0
    %983 = vmatpush1.msra.mxu0 0.0
    %984 = vmatprep.subr.mxu0 0.0
    %985 = vmatpush1.msra.mxu0 0.0
    %986 = vmatprep.subr.mxu0 0.0
    %987 = vmatpush1.msra.mxu0 0.0
    %988 = vmatprep.subr.mxu0 0.0
    %989 = vmatpush1.msra.mxu0 %v956
    %990 = vmatprep.subr.mxu0 0.0
    %991 = vmatpush1.msra.mxu0 %v955
    %992 = vmatprep.subr.mxu0 0.0
    %993 = vmatpush1.msra.mxu0 %v954
    %994 = vmatprep.subr.mxu0 0.0
    %995 = vmatpush1.msra.mxu0 %v953
    %996 = vmatprep.subr.mxu0 0.0
    %997 = vmatpush2.msra.mxu0 0.0
    %998 = vmatprep.subr.mxu0 0.0
    %999 = vmatpush2.msra.mxu0 0.0
    %1000 = vmatprep.subr.mxu0 0.0
    %1001 = vmatpush2.msra.mxu0 0.0
    %1002 = vmatprep.subr.mxu0 0.0
    %1003 = vmatpush2.msra.mxu0 0.0
    %1004 = vmatprep.subr.mxu0 0.0
    %1005 = vmatpush2.msra.mxu0 0.0
    %1006 = vmatprep.subr.mxu0 0.0
    %1007 = vmatpush2.msra.mxu0 0.0
    %1008 = vmatprep.subr.mxu0 0.0
    %1009 = vmatpush2.msra.mxu0 0.0
    %1010 = vmatprep.subr.mxu0 0.0
    %1011 = vmatpush2.msra.mxu0 0.0
    %1012 = vmatprep.subr.mxu0 0.0
    %1013 = vmatpush2.msra.mxu0 0.0
    %1014 = vmatprep.subr.mxu0 0.0
    %1015 = vmatpush2.msra.mxu0 0.0
    %1016 = vmatprep.subr.mxu0 0.0
    %1017 = vmatpush2.msra.mxu0 0.0
    %1018 = vmatprep.subr.mxu0 0.0
    %1019 = vmatpush2.msra.mxu0 0.0
    %1020 = vmatprep.subr.mxu0 0.0
    %1021 = vmatpush2.msra.mxu0 0.0
    %1022 = vmatprep.subr.mxu0 0.0
    %1023 = vmatpush2.msra.mxu0 0.0
    %1024 = vmatprep.subr.mxu0 0.0
    %1025 = vmatpush2.msra.mxu0 0.0
    %1026 = vmatprep.subr.mxu0 0.0
    %1027 = vmatpush2.msra.mxu0 0.0
    %1028 = vmatprep.mubr.f32.mxu0 0.0
    %1029 = vmatmul.mubr.f32.gmra.mxu0 %v962
    %v1030 = vpop.f32.mrf.mxu0
    %v1031 = vadd.f32 %v960, %v1030
    %v1032 = vpop.f32.mrf.mxu0
    %1033 = vdwg.mxu0
    %s1034 = scalar_lea.vmem [#allocation10], 8
    %1035 = vst [vmem:[%s1034] sm:$0xff] %v1031
    // Predicated region
    $region50: #{tpu_custom_call.1} parent=1 // pred_check
      _
    $region51: #{tpu_custom_call.1} parent=1 // pred_check_branch
      %1037 = sbr.rel (0) target = $region53
    $region52: #{tpu_custom_call.1} parent=1 // pred_region
      %s1039 = ssub.s32 256, 256
      %1040 = vsyncadd [#allocation4], %s1039
      %s1041 = sshll.u32 [#allocation10], 4
      %s1042 = int_to_ptr.vmem [resolvable:$true] %s1041
      %1047 = dma.vmem_to_hbm [thread:$0]  %s1042, 256, %s8, [#allocation4], 128, 128, 8
    $region53: #{tpu_custom_call.1} parent=1 // pred_fallthru
      _
    // Predicated region
    $region54: #{tpu_custom_call.1} parent=1 // pred_check
      _
    $region55: #{tpu_custom_call.1} parent=1 // pred_check_branch
      %1049 = sbr.rel (0) target = $region57
    $region56: #{tpu_custom_call.1} parent=1 // pred_region
      %1050 = dma.done [#allocation4], 256
    $region57: #{tpu_custom_call.1} parent=1 // pred_fallthru
      _
    %1051 = vsyncpa [#allocation3], 1
    %1052 = vsyncpa [#allocation6], 1
    %1053 = vsyncpa [#allocation9], 1
    %1054 = vsyncpa [#allocation4], 1

// kernel: tpu_custom_call.1
$region0: #{tpu_custom_call.1}
  #allocation0 [shape = 'u32[]', space=smem, size = 0x4, offset = 0x4, fixed_abs, tag = 'smem constant byte address 0x4 - core index']
  #allocation1 [shape = 'u32[144,128]{1,0:T(1,128)}', space=vmem, size = 0x12000, scoped, tag = 'internal scratch']
  %s0 = inlined_call_operand.hbm [shape: f32[8,32], index: 0, kind: input, shape index: {}]
  %s1 = inlined_call_operand.hbm [shape: f32[2,8,16], index: 1, kind: input, shape index: {}]
  %s2 = inlined_call_operand.vmem [shape: f32[2,32,64], index: 2, kind: input, shape index: {}]
  %s3 = inlined_call_operand.vmem [shape: f32[2,64,32], index: 3, kind: input, shape index: {}]
  %s4 = inlined_call_operand.vmem [shape: f32[2,32,32], index: 4, kind: input, shape index: {}]
  %s5 = inlined_call_operand.hbm [shape: f32[2,16,32], index: 5, kind: input, shape index: {}]
  %s6 = inlined_call_operand.vmem [shape: f32[2,32,128], index: 6, kind: input, shape index: {}]
  %s7 = inlined_call_operand.hbm [shape: f32[2,8,128], index: 7, kind: input, shape index: {}]
  %s8 = inlined_call_operand.hbm [shape: f32[2,8,128], index: 8, kind: output, shape index: {}]
  %s9 = sld [smem:[#allocation0]]
  $region58: #{tpu_custom_call.1} parent=0
    _
  %s11 = ssub.s32 1, %s9
  %s12 = scalar_select 0, %s11, %s9
  $region1: #{tpu_custom_call.1} parent=0
    #allocation2 [shape = 'u8[4096]{0}', space=vmem, size = 0x1000, scoped, tag = 'input window, operand 0, single buffered']
    #allocation3 [shape = 's32[1]{0}', space=sflag, size = 0x4, scoped, tag = 'scoped memory for tpu_custom_call.1']
    #allocation4 [shape = 's32[1]{0}', space=sflag, size = 0x4, scoped, tag = 'scoped memory for tpu_custom_call.1']
    #allocation5 [shape = 'u8[8192]{0}', space=vmem, size = 0x2000, scoped, tag = 'input window, operand 1, single buffered']
    #allocation6 [shape = 's32[1]{0}', space=sflag, size = 0x4, scoped, tag = 'scoped memory for tpu_custom_call.1']
    #allocation7 [shape = 'u8[16384]{0}', space=vmem, size = 0x4000, scoped, tag = 'input window, operand 5, single buffered']
    #allocation8 [shape = 'u8[8192]{0}', space=vmem, size = 0x2000, scoped, tag = 'input window, operand 7, single buffered']
    #allocation9 [shape = 's32[1]{0}', space=sflag, size = 0x4, scoped, tag = 'scoped memory for tpu_custom_call.1']
    #allocation10 [shape = 'u8[8192]{0}', space=vmem, size = 0x2000, scoped, tag = 'output window, operand 0, single buffered']
    %13 = vsyncpa [#allocation3], 0
    %14 = vsyncpa [#allocation6], 0
    %15 = vsyncpa [#allocation9], 0
    %16 = vsyncpa [#allocation4], 0
    // Predicated region
    $region2: #{tpu_custom_call.1} parent=1 // pred_check
      _
    $region3: #{tpu_custom_call.1} parent=1 // pred_check_branch
      %18 = sbr.rel (0) target = $region5
    $region4: #{tpu_custom_call.1} parent=1 // pred_region
      %s20 = ssub.s32 128, 128
      %21 = vsyncadd [#allocation3], %s20
      %s23 = sshll.u32 [#allocation2], 4
      %s24 = int_to_ptr.vmem [resolvable:$true] %s23
      %26 = dma.hbm_to_vmem [thread:$0]  %s0, 128, %s24, [#allocation3]
    $region5: #{tpu_custom_call.1} parent=1 // pred_fallthru
      _
    // Predicated region
    $region6: #{tpu_custom_call.1} parent=1 // pred_check
      _
    $region7: #{tpu_custom_call.1} parent=1 // pred_check_branch
      %28 = sbr.rel (0) target = $region9
    $region8: #{tpu_custom_call.1} parent=1 // pred_region
      %s30 = ssub.s32 256, 256
      %31 = vsyncadd [#allocation6], %s30
      %s32 = sshll.u32 [#allocation5], 4
      %s33 = int_to_ptr.vmem [resolvable:$true] %s32
      %38 = dma.hbm_to_vmem [thread:$0]  %s1, 256, %s33, [#allocation6], 128, 128, 8
    $region9: #{tpu_custom_call.1} parent=1 // pred_fallthru
      _
    // Predicated region
    $region10: #{tpu_custom_call.1} parent=1 // pred_check
      _
    $region11: #{tpu_custom_call.1} parent=1 // pred_check_branch
      %40 = sbr.rel (0) target = $region13
    $region12: #{tpu_custom_call.1} parent=1 // pred_region
      _
    $region13: #{tpu_custom_call.1} parent=1 // pred_fallthru
      _
    // Predicated region
    $region14: #{tpu_custom_call.1} parent=1 // pred_check
      _
    $region15: #{tpu_custom_call.1} parent=1 // pred_check_branch
      %42 = sbr.rel (0) target = $region17
    $region16: #{tpu_custom_call.1} parent=1 // pred_region
      _
    $region17: #{tpu_custom_call.1} parent=1 // pred_fallthru
      _
    // Predicated region
    $region18: #{tpu_custom_call.1} parent=1 // pred_check
      _
    $region19: #{tpu_custom_call.1} parent=1 // pred_check_branch
      %44 = sbr.rel (0) target = $region21
    $region20: #{tpu_custom_call.1} parent=1 // pred_region
      _
    $region21: #{tpu_custom_call.1} parent=1 // pred_fallthru
      _
    // Predicated region
    $region22: #{tpu_custom_call.1} parent=1 // pred_check
      _
    $region23: #{tpu_custom_call.1} parent=1 // pred_check_branch
      %46 = sbr.rel (0) target = $region25
    $region24: #{tpu_custom_call.1} parent=1 // pred_region
      %s48 = ssub.s32 512, 512
      %49 = vsyncadd [#allocation6], %s48
      %s50 = sshll.u32 [#allocation7], 4
      %s51 = int_to_ptr.vmem [resolvable:$true] %s50
      %56 = dma.hbm_to_vmem [thread:$0]  %s5, 512, %s51, [#allocation6], 128, 128, 8
    $region25: #{tpu_custom_call.1} parent=1 // pred_fallthru
      _
    // Predicated region
    $region26: #{tpu_custom_call.1} parent=1 // pred_check
      _
    $region27: #{tpu_custom_call.1} parent=1 // pred_check_branch
      %58 = sbr.rel (0) target = $region29
    $region28: #{tpu_custom_call.1} parent=1 // pred_region
      _
    $region29: #{tpu_custom_call.1} parent=1 // pred_fallthru
      _
    // Predicated region
    $region30: #{tpu_custom_call.1} parent=1 // pred_check
      _
    $region31: #{tpu_custom_call.1} parent=1 // pred_check_branch
      %60 = sbr.rel (0) target = $region33
    $region32: #{tpu_custom_call.1} parent=1 // pred_region
      %s62 = ssub.s32 256, 256
      %63 = vsyncadd [#allocation9], %s62
      %s64 = sshll.u32 [#allocation8], 4
      %s65 = int_to_ptr.vmem [resolvable:$true] %s64
      %70 = dma.hbm_to_vmem [thread:$0]  %s7, 256, %s65, [#allocation9], 128, 128, 8
    $region33: #{tpu_custom_call.1} parent=1 // pred_fallthru
      _
    // Predicated region
    $region34: #{tpu_custom_call.1} parent=1 // pred_check
      _
    $region35: #{tpu_custom_call.1} parent=1 // pred_check_branch
      %72 = sbr.rel (0) target = $region37
    $region36: #{tpu_custom_call.1} parent=1 // pred_region
      %73 = dma.done [#allocation3], 128
    $region37: #{tpu_custom_call.1} parent=1 // pred_fallthru
      _
    // Predicated region
    $region38: #{tpu_custom_call.1} parent=1 // pred_check
      _
    $region39: #{tpu_custom_call.1} parent=1 // pred_check_branch
      %75 = sbr.rel (0) target = $region41
    $region40: #{tpu_custom_call.1} parent=1 // pred_region
      %76 = dma.done [#allocation6], 256
    $region41: #{tpu_custom_call.1} parent=1 // pred_fallthru
      _
    // Predicated region
    $region42: #{tpu_custom_call.1} parent=1 // pred_check
      _
    $region43: #{tpu_custom_call.1} parent=1 // pred_check_branch
      %78 = sbr.rel (0) target = $region45
    $region44: #{tpu_custom_call.1} parent=1 // pred_region
      %79 = dma.done [#allocation6], 512
    $region45: #{tpu_custom_call.1} parent=1 // pred_fallthru
      _
    // Predicated region
    $region46: #{tpu_custom_call.1} parent=1 // pred_check
      _
    $region47: #{tpu_custom_call.1} parent=1 // pred_check_branch
      %81 = sbr.rel (0) target = $region49
    $region48: #{tpu_custom_call.1} parent=1 // pred_region
      %82 = dma.done [#allocation9], 256
    $region49: #{tpu_custom_call.1} parent=1 // pred_fallthru
      _
    %v83 = vld [vmem:[#allocation2] sm:$0xff]
    %v84 = vld [vmem:[#allocation8] sm:$0xff]
    %v85 = vld [vmem:[%s2] sm:$0xff]
    %v86 = vld [vmem:[%s2 + $0x8] sm:$0xff]
    %v87 = vld [vmem:[%s2 + $0x10] sm:$0xff]
    %v88 = vld [vmem:[%s2 + $0x18] sm:$0xff]
    %v89 = vlaneseq
    %v90 = vshrl.u32 %v89, 7
    %v91 = vsub.s32 0, %v90
    %v92 = vrot.slane %v84, %v91
    %vm93 = vcmask 261120
    %v95 = vsel %vm93, %v83, 0
    %97 = vmatprep.subr.mxu0 0.0
    %98 = vmatpush1.msra.mxu0 0.0
    %99 = vmatprep.subr.mxu0 0.0
    %100 = vmatpush1.msra.mxu0 0.0
    %101 = vmatprep.subr.mxu0 0.0
    %102 = vmatpush1.msra.mxu0 0.0
    %103 = vmatprep.subr.mxu0 0.0
    %104 = vmatpush1.msra.mxu0 0.0
    %105 = vmatprep.subr.mxu0 0.0
    %106 = vmatpush1.msra.mxu0 0.0
    %107 = vmatprep.subr.mxu0 0.0
    %108 = vmatpush1.msra.mxu0 0.0
    %109 = vmatprep.subr.mxu0 0.0
    %110 = vmatpush1.msra.mxu0 0.0
    %111 = vmatprep.subr.mxu0 0.0
    %112 = vmatpush1.msra.mxu0 0.0
    %113 = vmatprep.subr.mxu0 0.0
    %114 = vmatpush1.msra.mxu0 0.0
    %115 = vmatprep.subr.mxu0 0.0
    %116 = vmatpush1.msra.mxu0 0.0
    %117 = vmatprep.subr.mxu0 0.0
    %118 = vmatpush1.msra.mxu0 0.0
    %119 = vmatprep.subr.mxu0 0.0
    %120 = vmatpush1.msra.mxu0 0.0
    %121 = vmatprep.subr.mxu0 0.0
    %122 = vmatpush1.msra.mxu0 %v88
    %123 = vmatprep.subr.mxu0 0.0
    %124 = vmatpush1.msra.mxu0 %v87
    %125 = vmatprep.subr.mxu0 0.0
    %126 = vmatpush1.msra.mxu0 %v86
    %127 = vmatprep.subr.mxu0 0.0
    %128 = vmatpush1.msra.mxu0 %v85
    %129 = vmatprep.subr.mxu0 0.0
    %130 = vmatpush2.msra.mxu0 0.0
    %131 = vmatprep.subr.mxu0 0.0
    %132 = vmatpush2.msra.mxu0 0.0
    %133 = vmatprep.subr.mxu0 0.0
    %134 = vmatpush2.msra.mxu0 0.0
    %135 = vmatprep.subr.mxu0 0.0
    %136 = vmatpush2.msra.mxu0 0.0
    %137 = vmatprep.subr.mxu0 0.0
    %138 = vmatpush2.msra.mxu0 0.0
    %139 = vmatprep.subr.mxu0 0.0
    %140 = vmatpush2.msra.mxu0 0.0
    %141 = vmatprep.subr.mxu0 0.0
    %142 = vmatpush2.msra.mxu0 0.0
    %143 = vmatprep.subr.mxu0 0.0
    %144 = vmatpush2.msra.mxu0 0.0
    %145 = vmatprep.subr.mxu0 0.0
    %146 = vmatpush2.msra.mxu0 0.0
    %147 = vmatprep.subr.mxu0 0.0
    %148 = vmatpush2.msra.mxu0 0.0
    %149 = vmatprep.subr.mxu0 0.0
    %150 = vmatpush2.msra.mxu0 0.0
    %151 = vmatprep.subr.mxu0 0.0
    %152 = vmatpush2.msra.mxu0 0.0
    %153 = vmatprep.subr.mxu0 0.0
    %154 = vmatpush2.msra.mxu0 0.0
    %155 = vmatprep.subr.mxu0 0.0
    %156 = vmatpush2.msra.mxu0 0.0
    %157 = vmatprep.subr.mxu0 0.0
    %158 = vmatpush2.msra.mxu0 0.0
    %159 = vmatprep.subr.mxu0 0.0
    %160 = vmatpush2.msra.mxu0 0.0
    %161 = vmatprep.mubr.f32.mxu0 0.0
    %162 = vmatmul.mubr.f32.gmra.mxu0 %v95
    %v163 = vpop.f32.mrf.mxu0
    %v164 = vadd.f32 %v92, %v163
    %v165 = vpop.f32.mrf.mxu0
    %166 = vdwg.mxu0
    %vm167 = vcmask 523264
    %v168 = vsel %vm167, %v164, 0.0
    %169 = vadd.xlane.f32.xlu0 %v168
    %v170 = vpop.xlane.xlu0 %169
    %v171 = vrcp.pop 64.0
    %v172 = vmul.f32 %v170, %v171
    %v173 = vsub.f32 %v164, %v172
    %v174 = vmul.f32 %v173, %v173
    %v175 = vsel %vm167, %v174, 0.0
    %176 = vadd.xlane.f32.xlu0 %v175
    %v177 = vpop.xlane.xlu0 %176
    %v178 = vmul.f32 %v177, %v171
    %v179 = vadd.f32 %v178, 1e-05
    %v180 = vrsqrt.pop %v179
    %v181 = vmul.f32 %v173, %v180
    %v182 = vlaneseq
    %v183 = vshrl.u32 %v182, 7
    %v184 = vsub.s32 1, %v183
    %v185 = vrot.slane %v84, %v184
    %v186 = vmul.f32 %v181, %v185
    %v187 = vlaneseq
    %v188 = vshrl.u32 %v187, 7
    %v189 = vsub.s32 2, %v188
    %v190 = vrot.slane %v84, %v189
    %v191 = vadd.f32 %v186, %v190
    %vm192 = vcmp.gt.f32.partialorder %v191, 0.0
    %v193 = vmin.f32 %v191, 0.0
    %v194 = vmul.f32 %v193, 1.442695
    %v195 = vpow.pop %v194
    %v196 = vsub.f32 %v195, 1.0
    %v197 = vsel %vm192, %v191, %v196
    %v198 = vld [vmem:[%s3] sm:$0xff]
    %v199 = vld [vmem:[%s3 + $0x8] sm:$0xff]
    %v200 = vld [vmem:[%s3 + $0x10] sm:$0xff]
    %v201 = vld [vmem:[%s3 + $0x18] sm:$0xff]
    %v202 = vld [vmem:[%s3 + $0x20] sm:$0xff]
    %v203 = vld [vmem:[%s3 + $0x28] sm:$0xff]
    %v204 = vld [vmem:[%s3 + $0x30] sm:$0xff]
    %v205 = vld [vmem:[%s3 + $0x38] sm:$0xff]
    %v206 = vlaneseq
    %v207 = vshrl.u32 %v206, 7
    %v208 = vsub.s32 3, %v207
    %v209 = vrot.slane %v84, %v208
    %v211 = vsel %vm167, %v197, 0
    %213 = vmatprep.subr.mxu0 0.0
    %214 = vmatpush1.msra.mxu0 0.0
    %215 = vmatprep.subr.mxu0 0.0
    %216 = vmatpush1.msra.mxu0 0.0
    %217 = vmatprep.subr.mxu0 0.0
    %218 = vmatpush1.msra.mxu0 0.0
    %219 = vmatprep.subr.mxu0 0.0
    %220 = vmatpush1.msra.mxu0 0.0
    %221 = vmatprep.subr.mxu0 0.0
    %222 = vmatpush1.msra.mxu0 0.0
    %223 = vmatprep.subr.mxu0 0.0
    %224 = vmatpush1.msra.mxu0 0.0
    %225 = vmatprep.subr.mxu0 0.0
    %226 = vmatpush1.msra.mxu0 0.0
    %227 = vmatprep.subr.mxu0 0.0
    %228 = vmatpush1.msra.mxu0 0.0
    %229 = vmatprep.subr.mxu0 0.0
    %230 = vmatpush1.msra.mxu0 %v205
    %231 = vmatprep.subr.mxu0 0.0
    %232 = vmatpush1.msra.mxu0 %v204
    %233 = vmatprep.subr.mxu0 0.0
    %234 = vmatpush1.msra.mxu0 %v203
    %235 = vmatprep.subr.mxu0 0.0
    %236 = vmatpush1.msra.mxu0 %v202
    %237 = vmatprep.subr.mxu0 0.0
    %238 = vmatpush1.msra.mxu0 %v201
    %239 = vmatprep.subr.mxu0 0.0
    %240 = vmatpush1.msra.mxu0 %v200
    %241 = vmatprep.subr.mxu0 0.0
    %242 = vmatpush1.msra.mxu0 %v199
    %243 = vmatprep.subr.mxu0 0.0
    %244 = vmatpush1.msra.mxu0 %v198
    %245 = vmatprep.subr.mxu0 0.0
    %246 = vmatpush2.msra.mxu0 0.0
    %247 = vmatprep.subr.mxu0 0.0
    %248 = vmatpush2.msra.mxu0 0.0
    %249 = vmatprep.subr.mxu0 0.0
    %250 = vmatpush2.msra.mxu0 0.0
    %251 = vmatprep.subr.mxu0 0.0
    %252 = vmatpush2.msra.mxu0 0.0
    %253 = vmatprep.subr.mxu0 0.0
    %254 = vmatpush2.msra.mxu0 0.0
    %255 = vmatprep.subr.mxu0 0.0
    %256 = vmatpush2.msra.mxu0 0.0
    %257 = vmatprep.subr.mxu0 0.0
    %258 = vmatpush2.msra.mxu0 0.0
    %259 = vmatprep.subr.mxu0 0.0
    %260 = vmatpush2.msra.mxu0 0.0
    %261 = vmatprep.subr.mxu0 0.0
    %262 = vmatpush2.msra.mxu0 0.0
    %263 = vmatprep.subr.mxu0 0.0
    %264 = vmatpush2.msra.mxu0 0.0
    %265 = vmatprep.subr.mxu0 0.0
    %266 = vmatpush2.msra.mxu0 0.0
    %267 = vmatprep.subr.mxu0 0.0
    %268 = vmatpush2.msra.mxu0 0.0
    %269 = vmatprep.subr.mxu0 0.0
    %270 = vmatpush2.msra.mxu0 0.0
    %271 = vmatprep.subr.mxu0 0.0
    %272 = vmatpush2.msra.mxu0 0.0
    %273 = vmatprep.subr.mxu0 0.0
    %274 = vmatpush2.msra.mxu0 0.0
    %275 = vmatprep.subr.mxu0 0.0
    %276 = vmatpush2.msra.mxu0 0.0
    %277 = vmatprep.mubr.f32.mxu0 0.0
    %278 = vmatmul.mubr.f32.gmra.mxu0 %v211
    %v279 = vpop.f32.mrf.mxu0
    %v280 = vadd.f32 %v209, %v279
    %v281 = vpop.f32.mrf.mxu0
    %282 = vdwg.mxu0
    %v283 = vsel %vm93, %v280, 0.0
    %284 = vadd.xlane.f32.xlu0 %v283
    %v285 = vpop.xlane.xlu0 %284
    %v286 = vrcp.pop 32.0
    %v287 = vmul.f32 %v285, %v286
    %v288 = vsub.f32 %v280, %v287
    %v289 = vmul.f32 %v288, %v288
    %v290 = vsel %vm93, %v289, 0.0
    %291 = vadd.xlane.f32.xlu0 %v290
    %v292 = vpop.xlane.xlu0 %291
    %v293 = vmul.f32 %v292, %v286
    %v294 = vadd.f32 %v293, 1e-05
    %v295 = vrsqrt.pop %v294
    %v296 = vmul.f32 %v288, %v295
    %v297 = vlaneseq
    %v298 = vshrl.u32 %v297, 7
    %v299 = vsub.s32 4, %v298
    %v300 = vrot.slane %v84, %v299
    %v301 = vmul.f32 %v296, %v300
    %v302 = vlaneseq
    %v303 = vshrl.u32 %v302, 7
    %v304 = vsub.s32 5, %v303
    %v305 = vrot.slane %v84, %v304
    %v306 = vadd.f32 %v301, %v305
    %vm307 = vcmp.gt.f32.partialorder %v306, 0.0
    %v308 = vmin.f32 %v306, 0.0
    %v309 = vmul.f32 %v308, 1.442695
    %v310 = vpow.pop %v309
    %v311 = vsub.f32 %v310, 1.0
    %v312 = vsel %vm307, %v306, %v311
    %v313 = vld [vmem:[%s4] sm:$0xff]
    %v314 = vld [vmem:[%s4 + $0x8] sm:$0xff]
    %v315 = vld [vmem:[%s4 + $0x10] sm:$0xff]
    %v316 = vld [vmem:[%s4 + $0x18] sm:$0xff]
    %v317 = vld [vmem:[#allocation7] sm:$0xff]
    %v318 = vld [vmem:[#allocation7 + $0x8] sm:$0xff]
    %v319 = vld [vmem:[#allocation5] sm:$0xff]
    %vm320 = vcmask 130048
    %v322 = vsel %vm320, %v319, 0
    %324 = vmatprep.subr.mxu0 0.0
    %325 = vmatpush1.msra.mxu0 0.0
    %326 = vmatprep.subr.mxu0 0.0
    %327 = vmatpush1.msra.mxu0 0.0
    %328 = vmatprep.subr.mxu0 0.0
    %329 = vmatpush1.msra.mxu0 0.0
    %330 = vmatprep.subr.mxu0 0.0
    %331 = vmatpush1.msra.mxu0 0.0
    %332 = vmatprep.subr.mxu0 0.0
    %333 = vmatpush1.msra.mxu0 0.0
    %334 = vmatprep.subr.mxu0 0.0
    %335 = vmatpush1.msra.mxu0 0.0
    %336 = vmatprep.subr.mxu0 0.0
    %337 = vmatpush1.msra.mxu0 0.0
    %338 = vmatprep.subr.mxu0 0.0
    %339 = vmatpush1.msra.mxu0 0.0
    %340 = vmatprep.subr.mxu0 0.0
    %341 = vmatpush1.msra.mxu0 0.0
    %342 = vmatprep.subr.mxu0 0.0
    %343 = vmatpush1.msra.mxu0 0.0
    %344 = vmatprep.subr.mxu0 0.0
    %345 = vmatpush1.msra.mxu0 0.0
    %346 = vmatprep.subr.mxu0 0.0
    %347 = vmatpush1.msra.mxu0 0.0
    %348 = vmatprep.subr.mxu0 0.0
    %349 = vmatpush1.msra.mxu0 0.0
    %350 = vmatprep.subr.mxu0 0.0
    %351 = vmatpush1.msra.mxu0 0.0
    %352 = vmatprep.subr.mxu0 0.0
    %353 = vmatpush1.msra.mxu0 %v318
    %354 = vmatprep.subr.mxu0 0.0
    %355 = vmatpush1.msra.mxu0 %v317
    %356 = vmatprep.subr.mxu0 0.0
    %357 = vmatpush2.msra.mxu0 0.0
    %358 = vmatprep.subr.mxu0 0.0
    %359 = vmatpush2.msra.mxu0 0.0
    %360 = vmatprep.subr.mxu0 0.0
    %361 = vmatpush2.msra.mxu0 0.0
    %362 = vmatprep.subr.mxu0 0.0
    %363 = vmatpush2.msra.mxu0 0.0
    %364 = vmatprep.subr.mxu0 0.0
    %365 = vmatpush2.msra.mxu0 0.0
    %366 = vmatprep.subr.mxu0 0.0
    %367 = vmatpush2.msra.mxu0 0.0
    %368 = vmatprep.subr.mxu0 0.0
    %369 = vmatpush2.msra.mxu0 0.0
    %370 = vmatprep.subr.mxu0 0.0
    %371 = vmatpush2.msra.mxu0 0.0
    %372 = vmatprep.subr.mxu0 0.0
    %373 = vmatpush2.msra.mxu0 0.0
    %374 = vmatprep.subr.mxu0 0.0
    %375 = vmatpush2.msra.mxu0 0.0
    %376 = vmatprep.subr.mxu0 0.0
    %377 = vmatpush2.msra.mxu0 0.0
    %378 = vmatprep.subr.mxu0 0.0
    %379 = vmatpush2.msra.mxu0 0.0
    %380 = vmatprep.subr.mxu0 0.0
    %381 = vmatpush2.msra.mxu0 0.0
    %382 = vmatprep.subr.mxu0 0.0
    %383 = vmatpush2.msra.mxu0 0.0
    %384 = vmatprep.subr.mxu0 0.0
    %385 = vmatpush2.msra.mxu0 0.0
    %386 = vmatprep.subr.mxu0 0.0
    %387 = vmatpush2.msra.mxu0 0.0
    %388 = vmatprep.mubr.f32.mxu0 0.0
    %389 = vmatmul.mubr.f32.gmra.mxu0 %v322
    %v390 = vpop.f32.mrf.mxu0
    %v391 = vadd.f32 0.0, %v390
    %v392 = vpop.f32.mrf.mxu0
    %393 = vdwg.mxu0
    %v395 = vsel %vm93, %v312, 0
    %397 = vmatprep.subr.mxu0 0.0
    %398 = vmatpush1.msra.mxu0 0.0
    %399 = vmatprep.subr.mxu0 0.0
    %400 = vmatpush1.msra.mxu0 0.0
    %401 = vmatprep.subr.mxu0 0.0
    %402 = vmatpush1.msra.mxu0 0.0
    %403 = vmatprep.subr.mxu0 0.0
    %404 = vmatpush1.msra.mxu0 0.0
    %405 = vmatprep.subr.mxu0 0.0
    %406 = vmatpush1.msra.mxu0 0.0
    %407 = vmatprep.subr.mxu0 0.0
    %408 = vmatpush1.msra.mxu0 0.0
    %409 = vmatprep.subr.mxu0 0.0
    %410 = vmatpush1.msra.mxu0 0.0
    %411 = vmatprep.subr.mxu0 0.0
    %412 = vmatpush1.msra.mxu0 0.0
    %413 = vmatprep.subr.mxu0 0.0
    %414 = vmatpush1.msra.mxu0 0.0
    %415 = vmatprep.subr.mxu0 0.0
    %416 = vmatpush1.msra.mxu0 0.0
    %417 = vmatprep.subr.mxu0 0.0
    %418 = vmatpush1.msra.mxu0 0.0
    %419 = vmatprep.subr.mxu0 0.0
    %420 = vmatpush1.msra.mxu0 0.0
    %421 = vmatprep.subr.mxu0 0.0
    %422 = vmatpush1.msra.mxu0 %v316
    %423 = vmatprep.subr.mxu0 0.0
    %424 = vmatpush1.msra.mxu0 %v315
    %425 = vmatprep.subr.mxu0 0.0
    %426 = vmatpush1.msra.mxu0 %v314
    %427 = vmatprep.subr.mxu0 0.0
    %428 = vmatpush1.msra.mxu0 %v313
    %429 = vmatprep.subr.mxu0 0.0
    %430 = vmatpush2.msra.mxu0 0.0
    %431 = vmatprep.subr.mxu0 0.0
    %432 = vmatpush2.msra.mxu0 0.0
    %433 = vmatprep.subr.mxu0 0.0
    %434 = vmatpush2.msra.mxu0 0.0
    %435 = vmatprep.subr.mxu0 0.0
    %436 = vmatpush2.msra.mxu0 0.0
    %437 = vmatprep.subr.mxu0 0.0
    %438 = vmatpush2.msra.mxu0 0.0
    %439 = vmatprep.subr.mxu0 0.0
    %440 = vmatpush2.msra.mxu0 0.0
    %441 = vmatprep.subr.mxu0 0.0
    %442 = vmatpush2.msra.mxu0 0.0
    %443 = vmatprep.subr.mxu0 0.0
    %444 = vmatpush2.msra.mxu0 0.0
    %445 = vmatprep.subr.mxu0 0.0
    %446 = vmatpush2.msra.mxu0 0.0
    %447 = vmatprep.subr.mxu0 0.0
    %448 = vmatpush2.msra.mxu0 0.0
    %449 = vmatprep.subr.mxu0 0.0
    %450 = vmatpush2.msra.mxu0 0.0
    %451 = vmatprep.subr.mxu0 0.0
    %452 = vmatpush2.msra.mxu0 0.0
    %453 = vmatprep.subr.mxu0 0.0
    %454 = vmatpush2.msra.mxu0 0.0
    %455 = vmatprep.subr.mxu0 0.0
    %456 = vmatpush2.msra.mxu0 0.0
    %457 = vmatprep.subr.mxu0 0.0
    %458 = vmatpush2.msra.mxu0 0.0
    %459 = vmatprep.subr.mxu0 0.0
    %460 = vmatpush2.msra.mxu0 0.0
    %461 = vmatprep.mubr.f32.mxu0 0.0
    %462 = vmatmul.mubr.f32.gmra.mxu0 %v395
    %v463 = vpop.f32.mrf.mxu0
    %v464 = vadd.f32 %v391, %v463
    %v465 = vpop.f32.mrf.mxu0
    %466 = vdwg.mxu0
    %v467 = vlaneseq
    %v468 = vshrl.u32 %v467, 7
    %v469 = vsub.s32 6, %v468
    %v470 = vrot.slane %v84, %v469
    %v471 = vadd.f32 %v464, %v470
    %vm472 = vcmp.gt.f32.partialorder %v471, 0.0
    %v473 = vmin.f32 %v471, 0.0
    %v474 = vmul.f32 %v473, 1.442695
    %v475 = vpow.pop %v474
    %v476 = vsub.f32 %v475, 1.0
    %v477 = vsel %vm472, %v471, %v476
    %v478 = vld [vmem:[%s6] sm:$0xff]
    %v479 = vld [vmem:[%s6 + $0x8] sm:$0xff]
    %v480 = vld [vmem:[%s6 + $0x10] sm:$0xff]
    %v481 = vld [vmem:[%s6 + $0x18] sm:$0xff]
    %v482 = vlaneseq
    %v483 = vshrl.u32 %v482, 7
    %v484 = vsub.s32 7, %v483
    %v485 = vrot.slane %v84, %v484
    %v487 = vsel %vm93, %v477, 0
    %489 = vmatprep.subr.mxu0 0.0
    %490 = vmatpush1.msra.mxu0 0.0
    %491 = vmatprep.subr.mxu0 0.0
    %492 = vmatpush1.msra.mxu0 0.0
    %493 = vmatprep.subr.mxu0 0.0
    %494 = vmatpush1.msra.mxu0 0.0
    %495 = vmatprep.subr.mxu0 0.0
    %496 = vmatpush1.msra.mxu0 0.0
    %497 = vmatprep.subr.mxu0 0.0
    %498 = vmatpush1.msra.mxu0 0.0
    %499 = vmatprep.subr.mxu0 0.0
    %500 = vmatpush1.msra.mxu0 0.0
    %501 = vmatprep.subr.mxu0 0.0
    %502 = vmatpush1.msra.mxu0 0.0
    %503 = vmatprep.subr.mxu0 0.0
    %504 = vmatpush1.msra.mxu0 0.0
    %505 = vmatprep.subr.mxu0 0.0
    %506 = vmatpush1.msra.mxu0 0.0
    %507 = vmatprep.subr.mxu0 0.0
    %508 = vmatpush1.msra.mxu0 0.0
    %509 = vmatprep.subr.mxu0 0.0
    %510 = vmatpush1.msra.mxu0 0.0
    %511 = vmatprep.subr.mxu0 0.0
    %512 = vmatpush1.msra.mxu0 0.0
    %513 = vmatprep.subr.mxu0 0.0
    %514 = vmatpush1.msra.mxu0 %v481
    %515 = vmatprep.subr.mxu0 0.0
    %516 = vmatpush1.msra.mxu0 %v480
    %517 = vmatprep.subr.mxu0 0.0
    %518 = vmatpush1.msra.mxu0 %v479
    %519 = vmatprep.subr.mxu0 0.0
    %520 = vmatpush1.msra.mxu0 %v478
    %521 = vmatprep.subr.mxu0 0.0
    %522 = vmatpush2.msra.mxu0 0.0
    %523 = vmatprep.subr.mxu0 0.0
    %524 = vmatpush2.msra.mxu0 0.0
    %525 = vmatprep.subr.mxu0 0.0
    %526 = vmatpush2.msra.mxu0 0.0
    %527 = vmatprep.subr.mxu0 0.0
    %528 = vmatpush2.msra.mxu0 0.0
    %529 = vmatprep.subr.mxu0 0.0
    %530 = vmatpush2.msra.mxu0 0.0
    %531 = vmatprep.subr.mxu0 0.0
    %532 = vmatpush2.msra.mxu0 0.0
    %533 = vmatprep.subr.mxu0 0.0
    %534 = vmatpush2.msra.mxu0 0.0
    %535 = vmatprep.subr.mxu0 0.0
    %536 = vmatpush2.msra.mxu0 0.0
    %537 = vmatprep.subr.mxu0 0.0
    %538 = vmatpush2.msra.mxu0 0.0
    %539 = vmatprep.subr.mxu0 0.0
    %540 = vmatpush2.msra.mxu0 0.0
    %541 = vmatprep.subr.mxu0 0.0
    %542 = vmatpush2.msra.mxu0 0.0
    %543 = vmatprep.subr.mxu0 0.0
    %544 = vmatpush2.msra.mxu0 0.0
    %545 = vmatprep.subr.mxu0 0.0
    %546 = vmatpush2.msra.mxu0 0.0
    %547 = vmatprep.subr.mxu0 0.0
    %548 = vmatpush2.msra.mxu0 0.0
    %549 = vmatprep.subr.mxu0 0.0
    %550 = vmatpush2.msra.mxu0 0.0
    %551 = vmatprep.subr.mxu0 0.0
    %552 = vmatpush2.msra.mxu0 0.0
    %553 = vmatprep.mubr.f32.mxu0 0.0
    %554 = vmatmul.mubr.f32.gmra.mxu0 %v487
    %v555 = vpop.f32.mrf.mxu0
    %v556 = vadd.f32 %v485, %v555
    %v557 = vpop.f32.mrf.mxu0
    %558 = vdwg.mxu0
    %559 = vst [vmem:[#allocation10] sm:$0xff] %v556
    %s560 = scalar_lea.vmem [#allocation8], 8
    %v561 = vld [vmem:[%s560] sm:$0xff]
    %s562 = scalar_lea.vmem %s2, 32
    %v563 = vld [vmem:[%s562] sm:$0xff]
    %v564 = vld [vmem:[%s562 + $0x8] sm:$0xff]
    %v565 = vld [vmem:[%s562 + $0x10] sm:$0xff]
    %v566 = vld [vmem:[%s562 + $0x18] sm:$0xff]
    %v567 = vlaneseq
    %v568 = vshrl.u32 %v567, 7
    %v569 = vsub.s32 0, %v568
    %v570 = vrot.slane %v561, %v569
    %571 = vmatprep.subr.mxu0 0.0
    %572 = vmatpush1.msra.mxu0 0.0
    %573 = vmatprep.subr.mxu0 0.0
    %574 = vmatpush1.msra.mxu0 0.0
    %575 = vmatprep.subr.mxu0 0.0
    %576 = vmatpush1.msra.mxu0 0.0
    %577 = vmatprep.subr.mxu0 0.0
    %578 = vmatpush1.msra.mxu0 0.0
    %579 = vmatprep.subr.mxu0 0.0
    %580 = vmatpush1.msra.mxu0 0.0
    %581 = vmatprep.subr.mxu0 0.0
    %582 = vmatpush1.msra.mxu0 0.0
    %583 = vmatprep.subr.mxu0 0.0
    %584 = vmatpush1.msra.mxu0 0.0
    %585 = vmatprep.subr.mxu0 0.0
    %586 = vmatpush1.msra.mxu0 0.0
    %587 = vmatprep.subr.mxu0 0.0
    %588 = vmatpush1.msra.mxu0 0.0
    %589 = vmatprep.subr.mxu0 0.0
    %590 = vmatpush1.msra.mxu0 0.0
    %591 = vmatprep.subr.mxu0 0.0
    %592 = vmatpush1.msra.mxu0 0.0
    %593 = vmatprep.subr.mxu0 0.0
    %594 = vmatpush1.msra.mxu0 0.0
    %595 = vmatprep.subr.mxu0 0.0
    %596 = vmatpush1.msra.mxu0 %v566
    %597 = vmatprep.subr.mxu0 0.0
    %598 = vmatpush1.msra.mxu0 %v565
    %599 = vmatprep.subr.mxu0 0.0
    %600 = vmatpush1.msra.mxu0 %v564
    %601 = vmatprep.subr.mxu0 0.0
    %602 = vmatpush1.msra.mxu0 %v563
    %603 = vmatprep.subr.mxu0 0.0
    %604 = vmatpush2.msra.mxu0 0.0
    %605 = vmatprep.subr.mxu0 0.0
    %606 = vmatpush2.msra.mxu0 0.0
    %607 = vmatprep.subr.mxu0 0.0
    %608 = vmatpush2.msra.mxu0 0.0
    %609 = vmatprep.subr.mxu0 0.0
    %610 = vmatpush2.msra.mxu0 0.0
    %611 = vmatprep.subr.mxu0 0.0
    %612 = vmatpush2.msra.mxu0 0.0
    %613 = vmatprep.subr.mxu0 0.0
    %614 = vmatpush2.msra.mxu0 0.0
    %615 = vmatprep.subr.mxu0 0.0
    %616 = vmatpush2.msra.mxu0 0.0
    %617 = vmatprep.subr.mxu0 0.0
    %618 = vmatpush2.msra.mxu0 0.0
    %619 = vmatprep.subr.mxu0 0.0
    %620 = vmatpush2.msra.mxu0 0.0
    %621 = vmatprep.subr.mxu0 0.0
    %622 = vmatpush2.msra.mxu0 0.0
    %623 = vmatprep.subr.mxu0 0.0
    %624 = vmatpush2.msra.mxu0 0.0
    %625 = vmatprep.subr.mxu0 0.0
    %626 = vmatpush2.msra.mxu0 0.0
    %627 = vmatprep.subr.mxu0 0.0
    %628 = vmatpush2.msra.mxu0 0.0
    %629 = vmatprep.subr.mxu0 0.0
    %630 = vmatpush2.msra.mxu0 0.0
    %631 = vmatprep.subr.mxu0 0.0
    %632 = vmatpush2.msra.mxu0 0.0
    %633 = vmatprep.subr.mxu0 0.0
    %634 = vmatpush2.msra.mxu0 0.0
    %635 = vmatprep.mubr.f32.mxu0 0.0
    %636 = vmatmul.mubr.f32.gmra.mxu0 %v95
    %v637 = vpop.f32.mrf.mxu0
    %v638 = vadd.f32 %v570, %v637
    %v639 = vpop.f32.mrf.mxu0
    %640 = vdwg.mxu0
    %v641 = vsel %vm167, %v638, 0.0
    %642 = vadd.xlane.f32.xlu0 %v641
    %v643 = vpop.xlane.xlu0 %642
    %v644 = vmul.f32 %v643, %v171
    %v645 = vsub.f32 %v638, %v644
    %v646 = vmul.f32 %v645, %v645
    %v647 = vsel %vm167, %v646, 0.0
    %648 = vadd.xlane.f32.xlu0 %v647
    %v649 = vpop.xlane.xlu0 %648
    %v650 = vmul.f32 %v649, %v171
    %v651 = vadd.f32 %v650, 1e-05
    %v652 = vrsqrt.pop %v651
    %v653 = vmul.f32 %v645, %v652
    %v654 = vlaneseq
    %v655 = vshrl.u32 %v654, 7
    %v656 = vsub.s32 1, %v655
    %v657 = vrot.slane %v561, %v656
    %v658 = vmul.f32 %v653, %v657
    %v659 = vlaneseq
    %v660 = vshrl.u32 %v659, 7
    %v661 = vsub.s32 2, %v660
    %v662 = vrot.slane %v561, %v661
    %v663 = vadd.f32 %v658, %v662
    %vm664 = vcmp.gt.f32.partialorder %v663, 0.0
    %v665 = vmin.f32 %v663, 0.0
    %v666 = vmul.f32 %v665, 1.442695
    %v667 = vpow.pop %v666
    %v668 = vsub.f32 %v667, 1.0
    %v669 = vsel %vm664, %v663, %v668
    %s670 = scalar_lea.vmem %s3, 64
    %v671 = vld [vmem:[%s670] sm:$0xff]
    %v672 = vld [vmem:[%s670 + $0x8] sm:$0xff]
    %v673 = vld [vmem:[%s670 + $0x10] sm:$0xff]
    %v674 = vld [vmem:[%s670 + $0x18] sm:$0xff]
    %v675 = vld [vmem:[%s670 + $0x20] sm:$0xff]
    %v676 = vld [vmem:[%s670 + $0x28] sm:$0xff]
    %v677 = vld [vmem:[%s670 + $0x30] sm:$0xff]
    %v678 = vld [vmem:[%s670 + $0x38] sm:$0xff]
    %v679 = vlaneseq
    %v680 = vshrl.u32 %v679, 7
    %v681 = vsub.s32 3, %v680
    %v682 = vrot.slane %v561, %v681
    %v684 = vsel %vm167, %v669, 0
    %686 = vmatprep.subr.mxu0 0.0
    %687 = vmatpush1.msra.mxu0 0.0
    %688 = vmatprep.subr.mxu0 0.0
    %689 = vmatpush1.msra.mxu0 0.0
    %690 = vmatprep.subr.mxu0 0.0
    %691 = vmatpush1.msra.mxu0 0.0
    %692 = vmatprep.subr.mxu0 0.0
    %693 = vmatpush1.msra.mxu0 0.0
    %694 = vmatprep.subr.mxu0 0.0
    %695 = vmatpush1.msra.mxu0 0.0
    %696 = vmatprep.subr.mxu0 0.0
    %697 = vmatpush1.msra.mxu0 0.0
    %698 = vmatprep.subr.mxu0 0.0
    %699 = vmatpush1.msra.mxu0 0.0
    %700 = vmatprep.subr.mxu0 0.0
    %701 = vmatpush1.msra.mxu0 0.0
    %702 = vmatprep.subr.mxu0 0.0
    %703 = vmatpush1.msra.mxu0 %v678
    %704 = vmatprep.subr.mxu0 0.0
    %705 = vmatpush1.msra.mxu0 %v677
    %706 = vmatprep.subr.mxu0 0.0
    %707 = vmatpush1.msra.mxu0 %v676
    %708 = vmatprep.subr.mxu0 0.0
    %709 = vmatpush1.msra.mxu0 %v675
    %710 = vmatprep.subr.mxu0 0.0
    %711 = vmatpush1.msra.mxu0 %v674
    %712 = vmatprep.subr.mxu0 0.0
    %713 = vmatpush1.msra.mxu0 %v673
    %714 = vmatprep.subr.mxu0 0.0
    %715 = vmatpush1.msra.mxu0 %v672
    %716 = vmatprep.subr.mxu0 0.0
    %717 = vmatpush1.msra.mxu0 %v671
    %718 = vmatprep.subr.mxu0 0.0
    %719 = vmatpush2.msra.mxu0 0.0
    %720 = vmatprep.subr.mxu0 0.0
    %721 = vmatpush2.msra.mxu0 0.0
    %722 = vmatprep.subr.mxu0 0.0
    %723 = vmatpush2.msra.mxu0 0.0
    %724 = vmatprep.subr.mxu0 0.0
    %725 = vmatpush2.msra.mxu0 0.0
    %726 = vmatprep.subr.mxu0 0.0
    %727 = vmatpush2.msra.mxu0 0.0
    %728 = vmatprep.subr.mxu0 0.0
    %729 = vmatpush2.msra.mxu0 0.0
    %730 = vmatprep.subr.mxu0 0.0
    %731 = vmatpush2.msra.mxu0 0.0
    %732 = vmatprep.subr.mxu0 0.0
    %733 = vmatpush2.msra.mxu0 0.0
    %734 = vmatprep.subr.mxu0 0.0
    %735 = vmatpush2.msra.mxu0 0.0
    %736 = vmatprep.subr.mxu0 0.0
    %737 = vmatpush2.msra.mxu0 0.0
    %738 = vmatprep.subr.mxu0 0.0
    %739 = vmatpush2.msra.mxu0 0.0
    %740 = vmatprep.subr.mxu0 0.0
    %741 = vmatpush2.msra.mxu0 0.0
    %742 = vmatprep.subr.mxu0 0.0
    %743 = vmatpush2.msra.mxu0 0.0
    %744 = vmatprep.subr.mxu0 0.0
    %745 = vmatpush2.msra.mxu0 0.0
    %746 = vmatprep.subr.mxu0 0.0
    %747 = vmatpush2.msra.mxu0 0.0
    %748 = vmatprep.subr.mxu0 0.0
    %749 = vmatpush2.msra.mxu0 0.0
    %750 = vmatprep.mubr.f32.mxu0 0.0
    %751 = vmatmul.mubr.f32.gmra.mxu0 %v684
    %v752 = vpop.f32.mrf.mxu0
    %v753 = vadd.f32 %v682, %v752
    %v754 = vpop.f32.mrf.mxu0
    %755 = vdwg.mxu0
    %v756 = vsel %vm93, %v753, 0.0
    %757 = vadd.xlane.f32.xlu0 %v756
    %v758 = vpop.xlane.xlu0 %757
    %v759 = vmul.f32 %v758, %v286
    %v760 = vsub.f32 %v753, %v759
    %v761 = vmul.f32 %v760, %v760
    %v762 = vsel %vm93, %v761, 0.0
    %763 = vadd.xlane.f32.xlu0 %v762
    %v764 = vpop.xlane.xlu0 %763
    %v765 = vmul.f32 %v764, %v286
    %v766 = vadd.f32 %v765, 1e-05
    %v767 = vrsqrt.pop %v766
    %v768 = vmul.f32 %v760, %v767
    %v769 = vlaneseq
    %v770 = vshrl.u32 %v769, 7
    %v771 = vsub.s32 4, %v770
    %v772 = vrot.slane %v561, %v771
    %v773 = vmul.f32 %v768, %v772
    %v774 = vlaneseq
    %v775 = vshrl.u32 %v774, 7
    %v776 = vsub.s32 5, %v775
    %v777 = vrot.slane %v561, %v776
    %v778 = vadd.f32 %v773, %v777
    %vm779 = vcmp.gt.f32.partialorder %v778, 0.0
    %v780 = vmin.f32 %v778, 0.0
    %v781 = vmul.f32 %v780, 1.442695
    %v782 = vpow.pop %v781
    %v783 = vsub.f32 %v782, 1.0
    %v784 = vsel %vm779, %v778, %v783
    %s785 = scalar_lea.vmem %s4, 32
    %v786 = vld [vmem:[%s785] sm:$0xff]
    %v787 = vld [vmem:[%s785 + $0x8] sm:$0xff]
    %v788 = vld [vmem:[%s785 + $0x10] sm:$0xff]
    %v789 = vld [vmem:[%s785 + $0x18] sm:$0xff]
    %s790 = scalar_lea.vmem [#allocation7], 16
    %v791 = vld [vmem:[%s790] sm:$0xff]
    %v792 = vld [vmem:[%s790 + $0x8] sm:$0xff]
    %s793 = scalar_lea.vmem [#allocation5], 8
    %v794 = vld [vmem:[%s793] sm:$0xff]
    %v796 = vsel %vm320, %v794, 0
    %798 = vmatprep.subr.mxu0 0.0
    %799 = vmatpush1.msra.mxu0 0.0
    %800 = vmatprep.subr.mxu0 0.0
    %801 = vmatpush1.msra.mxu0 0.0
    %802 = vmatprep.subr.mxu0 0.0
    %803 = vmatpush1.msra.mxu0 0.0
    %804 = vmatprep.subr.mxu0 0.0
    %805 = vmatpush1.msra.mxu0 0.0
    %806 = vmatprep.subr.mxu0 0.0
    %807 = vmatpush1.msra.mxu0 0.0
    %808 = vmatprep.subr.mxu0 0.0
    %809 = vmatpush1.msra.mxu0 0.0
    %810 = vmatprep.subr.mxu0 0.0
    %811 = vmatpush1.msra.mxu0 0.0
    %812 = vmatprep.subr.mxu0 0.0
    %813 = vmatpush1.msra.mxu0 0.0
    %814 = vmatprep.subr.mxu0 0.0
    %815 = vmatpush1.msra.mxu0 0.0
    %816 = vmatprep.subr.mxu0 0.0
    %817 = vmatpush1.msra.mxu0 0.0
    %818 = vmatprep.subr.mxu0 0.0
    %819 = vmatpush1.msra.mxu0 0.0
    %820 = vmatprep.subr.mxu0 0.0
    %821 = vmatpush1.msra.mxu0 0.0
    %822 = vmatprep.subr.mxu0 0.0
    %823 = vmatpush1.msra.mxu0 0.0
    %824 = vmatprep.subr.mxu0 0.0
    %825 = vmatpush1.msra.mxu0 0.0
    %826 = vmatprep.subr.mxu0 0.0
    %827 = vmatpush1.msra.mxu0 %v792
    %828 = vmatprep.subr.mxu0 0.0
    %829 = vmatpush1.msra.mxu0 %v791
    %830 = vmatprep.subr.mxu0 0.0
    %831 = vmatpush2.msra.mxu0 0.0
    %832 = vmatprep.subr.mxu0 0.0
    %833 = vmatpush2.msra.mxu0 0.0
    %834 = vmatprep.subr.mxu0 0.0
    %835 = vmatpush2.msra.mxu0 0.0
    %836 = vmatprep.subr.mxu0 0.0
    %837 = vmatpush2.msra.mxu0 0.0
    %838 = vmatprep.subr.mxu0 0.0
    %839 = vmatpush2.msra.mxu0 0.0
    %840 = vmatprep.subr.mxu0 0.0
    %841 = vmatpush2.msra.mxu0 0.0
    %842 = vmatprep.subr.mxu0 0.0
    %843 = vmatpush2.msra.mxu0 0.0
    %844 = vmatprep.subr.mxu0 0.0
    %845 = vmatpush2.msra.mxu0 0.0
    %846 = vmatprep.subr.mxu0 0.0
    %847 = vmatpush2.msra.mxu0 0.0
    %848 = vmatprep.subr.mxu0 0.0
    %849 = vmatpush2.msra.mxu0 0.0
    %850 = vmatprep.subr.mxu0 0.0
    %851 = vmatpush2.msra.mxu0 0.0
    %852 = vmatprep.subr.mxu0 0.0
    %853 = vmatpush2.msra.mxu0 0.0
    %854 = vmatprep.subr.mxu0 0.0
    %855 = vmatpush2.msra.mxu0 0.0
    %856 = vmatprep.subr.mxu0 0.0
    %857 = vmatpush2.msra.mxu0 0.0
    %858 = vmatprep.subr.mxu0 0.0
    %859 = vmatpush2.msra.mxu0 0.0
    %860 = vmatprep.subr.mxu0 0.0
    %861 = vmatpush2.msra.mxu0 0.0
    %862 = vmatprep.mubr.f32.mxu0 0.0
    %863 = vmatmul.mubr.f32.gmra.mxu0 %v796
    %v864 = vpop.f32.mrf.mxu0
    %v865 = vadd.f32 0.0, %v864
    %v866 = vpop.f32.mrf.mxu0
    %867 = vdwg.mxu0
    %v869 = vsel %vm93, %v784, 0
    %871 = vmatprep.subr.mxu0 0.0
    %872 = vmatpush1.msra.mxu0 0.0
    %873 = vmatprep.subr.mxu0 0.0
    %874 = vmatpush1.msra.mxu0 0.0
    %875 = vmatprep.subr.mxu0 0.0
    %876 = vmatpush1.msra.mxu0 0.0
    %877 = vmatprep.subr.mxu0 0.0
    %878 = vmatpush1.msra.mxu0 0.0
    %879 = vmatprep.subr.mxu0 0.0
    %880 = vmatpush1.msra.mxu0 0.0
    %881 = vmatprep.subr.mxu0 0.0
    %882 = vmatpush1.msra.mxu0 0.0
    %883 = vmatprep.subr.mxu0 0.0
    %884 = vmatpush1.msra.mxu0 0.0
    %885 = vmatprep.subr.mxu0 0.0
    %886 = vmatpush1.msra.mxu0 0.0
    %887 = vmatprep.subr.mxu0 0.0
    %888 = vmatpush1.msra.mxu0 0.0
    %889 = vmatprep.subr.mxu0 0.0
    %890 = vmatpush1.msra.mxu0 0.0
    %891 = vmatprep.subr.mxu0 0.0
    %892 = vmatpush1.msra.mxu0 0.0
    %893 = vmatprep.subr.mxu0 0.0
    %894 = vmatpush1.msra.mxu0 0.0
    %895 = vmatprep.subr.mxu0 0.0
    %896 = vmatpush1.msra.mxu0 %v789
    %897 = vmatprep.subr.mxu0 0.0
    %898 = vmatpush1.msra.mxu0 %v788
    %899 = vmatprep.subr.mxu0 0.0
    %900 = vmatpush1.msra.mxu0 %v787
    %901 = vmatprep.subr.mxu0 0.0
    %902 = vmatpush1.msra.mxu0 %v786
    %903 = vmatprep.subr.mxu0 0.0
    %904 = vmatpush2.msra.mxu0 0.0
    %905 = vmatprep.subr.mxu0 0.0
    %906 = vmatpush2.msra.mxu0 0.0
    %907 = vmatprep.subr.mxu0 0.0
    %908 = vmatpush2.msra.mxu0 0.0
    %909 = vmatprep.subr.mxu0 0.0
    %910 = vmatpush2.msra.mxu0 0.0
    %911 = vmatprep.subr.mxu0 0.0
    %912 = vmatpush2.msra.mxu0 0.0
    %913 = vmatprep.subr.mxu0 0.0
    %914 = vmatpush2.msra.mxu0 0.0
    %915 = vmatprep.subr.mxu0 0.0
    %916 = vmatpush2.msra.mxu0 0.0
    %917 = vmatprep.subr.mxu0 0.0
    %918 = vmatpush2.msra.mxu0 0.0
    %919 = vmatprep.subr.mxu0 0.0
    %920 = vmatpush2.msra.mxu0 0.0
    %921 = vmatprep.subr.mxu0 0.0
    %922 = vmatpush2.msra.mxu0 0.0
    %923 = vmatprep.subr.mxu0 0.0
    %924 = vmatpush2.msra.mxu0 0.0
    %925 = vmatprep.subr.mxu0 0.0
    %926 = vmatpush2.msra.mxu0 0.0
    %927 = vmatprep.subr.mxu0 0.0
    %928 = vmatpush2.msra.mxu0 0.0
    %929 = vmatprep.subr.mxu0 0.0
    %930 = vmatpush2.msra.mxu0 0.0
    %931 = vmatprep.subr.mxu0 0.0
    %932 = vmatpush2.msra.mxu0 0.0
    %933 = vmatprep.subr.mxu0 0.0
    %934 = vmatpush2.msra.mxu0 0.0
    %935 = vmatprep.mubr.f32.mxu0 0.0
    %936 = vmatmul.mubr.f32.gmra.mxu0 %v869
    %v937 = vpop.f32.mrf.mxu0
    %v938 = vadd.f32 %v865, %v937
    %v939 = vpop.f32.mrf.mxu0
    %940 = vdwg.mxu0
    %v941 = vlaneseq
    %v942 = vshrl.u32 %v941, 7
    %v943 = vsub.s32 6, %v942
    %v944 = vrot.slane %v561, %v943
    %v945 = vadd.f32 %v938, %v944
    %vm946 = vcmp.gt.f32.partialorder %v945, 0.0
    %v947 = vmin.f32 %v945, 0.0
    %v948 = vmul.f32 %v947, 1.442695
    %v949 = vpow.pop %v948
    %v950 = vsub.f32 %v949, 1.0
    %v951 = vsel %vm946, %v945, %v950
    %s952 = scalar_lea.vmem %s6, 32
    %v953 = vld [vmem:[%s952] sm:$0xff]
    %v954 = vld [vmem:[%s952 + $0x8] sm:$0xff]
    %v955 = vld [vmem:[%s952 + $0x10] sm:$0xff]
    %v956 = vld [vmem:[%s952 + $0x18] sm:$0xff]
    %v957 = vlaneseq
    %v958 = vshrl.u32 %v957, 7
    %v959 = vsub.s32 7, %v958
    %v960 = vrot.slane %v561, %v959
    %v962 = vsel %vm93, %v951, 0
    %964 = vmatprep.subr.mxu0 0.0
    %965 = vmatpush1.msra.mxu0 0.0
    %966 = vmatprep.subr.mxu0 0.0
    %967 = vmatpush1.msra.mxu0 0.0
    %968 = vmatprep.subr.mxu0 0.0
    %969 = vmatpush1.msra.mxu0 0.0
    %970 = vmatprep.subr.mxu0 0.0
    %971 = vmatpush1.msra.mxu0 0.0
    %972 = vmatprep.subr.mxu0 0.0
    %973 = vmatpush1.msra.mxu0 0.0
    %974 = vmatprep.subr.mxu0 0.0
    %975 = vmatpush1.msra.mxu0 0.0
    %976 = vmatprep.subr.mxu0 0.0
    %977 = vmatpush1.msra.mxu0 0.0
    %978 = vmatprep.subr.mxu0 0.0
    %979 = vmatpush1.msra.mxu0 0.0
    %980 = vmatprep.subr.mxu0 0.0
    %981 = vmatpush1.msra.mxu0 0.0
    %982 = vmatprep.subr.mxu0 0.0
    %983 = vmatpush1.msra.mxu0 0.0
    %984 = vmatprep.subr.mxu0 0.0
    %985 = vmatpush1.msra.mxu0 0.0
    %986 = vmatprep.subr.mxu0 0.0
    %987 = vmatpush1.msra.mxu0 0.0
    %988 = vmatprep.subr.mxu0 0.0
    %989 = vmatpush1.msra.mxu0 %v956
    %990 = vmatprep.subr.mxu0 0.0
    %991 = vmatpush1.msra.mxu0 %v955
    %992 = vmatprep.subr.mxu0 0.0
    %993 = vmatpush1.msra.mxu0 %v954
    %994 = vmatprep.subr.mxu0 0.0
    %995 = vmatpush1.msra.mxu0 %v953
    %996 = vmatprep.subr.mxu0 0.0
    %997 = vmatpush2.msra.mxu0 0.0
    %998 = vmatprep.subr.mxu0 0.0
    %999 = vmatpush2.msra.mxu0 0.0
    %1000 = vmatprep.subr.mxu0 0.0
    %1001 = vmatpush2.msra.mxu0 0.0
    %1002 = vmatprep.subr.mxu0 0.0
    %1003 = vmatpush2.msra.mxu0 0.0
    %1004 = vmatprep.subr.mxu0 0.0
    %1005 = vmatpush2.msra.mxu0 0.0
    %1006 = vmatprep.subr.mxu0 0.0
    %1007 = vmatpush2.msra.mxu0 0.0
    %1008 = vmatprep.subr.mxu0 0.0
    %1009 = vmatpush2.msra.mxu0 0.0
    %1010 = vmatprep.subr.mxu0 0.0
    %1011 = vmatpush2.msra.mxu0 0.0
    %1012 = vmatprep.subr.mxu0 0.0
    %1013 = vmatpush2.msra.mxu0 0.0
    %1014 = vmatprep.subr.mxu0 0.0
    %1015 = vmatpush2.msra.mxu0 0.0
    %1016 = vmatprep.subr.mxu0 0.0
    %1017 = vmatpush2.msra.mxu0 0.0
    %1018 = vmatprep.subr.mxu0 0.0
    %1019 = vmatpush2.msra.mxu0 0.0
    %1020 = vmatprep.subr.mxu0 0.0
    %1021 = vmatpush2.msra.mxu0 0.0
    %1022 = vmatprep.subr.mxu0 0.0
    %1023 = vmatpush2.msra.mxu0 0.0
    %1024 = vmatprep.subr.mxu0 0.0
    %1025 = vmatpush2.msra.mxu0 0.0
    %1026 = vmatprep.subr.mxu0 0.0
    %1027 = vmatpush2.msra.mxu0 0.0
    %1028 = vmatprep.mubr.f32.mxu0 0.0
    %1029 = vmatmul.mubr.f32.gmra.mxu0 %v962
    %v1030 = vpop.f32.mrf.mxu0
    %v1031 = vadd.f32 %v960, %v1030
    %v1032 = vpop.f32.mrf.mxu0
    %1033 = vdwg.mxu0
    %s1034 = scalar_lea.vmem [#allocation10], 8
    %1035 = vst [vmem:[%s1034] sm:$0xff] %v1031
    // Predicated region
    $region50: #{tpu_custom_call.1} parent=1 // pred_check
      _
    $region51: #{tpu_custom_call.1} parent=1 // pred_check_branch
      %1037 = sbr.rel (0) target = $region53
    $region52: #{tpu_custom_call.1} parent=1 // pred_region
      %s1039 = ssub.s32 256, 256
      %1040 = vsyncadd [#allocation4], %s1039
      %s1041 = sshll.u32 [#allocation10], 4
      %s1042 = int_to_ptr.vmem [resolvable:$true] %s1041
      %1047 = dma.vmem_to_hbm [thread:$0]  %s1042, 256, %s8, [#allocation4], 128, 128, 8
    $region53: #{tpu_custom_call.1} parent=1 // pred_fallthru
      _
    // Predicated region
    $region54: #{tpu_custom_call.1} parent=1 // pred_check
      _
    $region55: #{tpu_custom_call.1} parent=1 // pred_check_branch
      %1049 = sbr.rel (0) target = $region57
    $region56: #{tpu_custom_call.1} parent=1 // pred_region
      %1050 = dma.done [#allocation4], 256
    $region57: #{tpu_custom_call.1} parent=1 // pred_fallthru
      _
    %1051 = vsyncpa [#allocation3], 1
    %1052 = vsyncpa [#allocation6], 1
    %1053 = vsyncpa [#allocation9], 1
    %1054 = vsyncpa [#allocation4], 1

</llo_original>
